<compile_context>
chip_gen: v6e
topology: v6e:2x2x1
jax: 0.10.0
libtpu: 0.0.40
codegen_flags: <defaults>
</compile_context>

<pallas_src>
import functools
import math

import jax
import jax.numpy as jnp
from jax.experimental import pallas as pl
from jax.experimental.pallas import tpu as pltpu

# ----------------------------- model config (small, roberta-like) ------------
VOCAB_SIZE = 100
HIDDEN = 32
NUM_LAYERS = 2
NUM_HEADS = 4
HEAD_DIM = HIDDEN // NUM_HEADS
INTERMEDIATE = 64
PAD_TOKEN_ID = 1
LN_EPS = 1e-5


# ----------------------------- fused encoder kernel --------------------------
def _encoder_kernel(emb_ref, bias_ref, eg_ref, eb_ref,
                    wqkvo_ref, bqk_ref, bo_ref, g1_ref, b1_ref,
                    win_ref, bin_ref, wout_ref, bout_ref, g2_ref, b2_ref,
                    o_ref, *, num_layers, num_heads, head_dim, eps):
    """Whole encoder (embedding LN + all layers) in one grid-free kernel body."""
    hidden = num_heads * head_dim
    scale = 1.0 / math.sqrt(head_dim)

    def layer_norm(x, g, b):
        mean = jnp.mean(x, axis=-1, keepdims=True)
        var = jnp.mean(jnp.square(x - mean), axis=-1, keepdims=True)
        return (x - mean) * jax.lax.rsqrt(var + eps) * g + b

    # Block-diagonal additive mask (rows only attend within their own batch
    # element), precomputed in the wrapper and loaded once.
    bias = bias_ref[...]                                           # (M, M) f32

    # Embedding LayerNorm initializes the resident activations.
    h = layer_norm(emb_ref[...], eg_ref[...], eb_ref[...])         # (M, H) f32

    for l in range(num_layers):          # static unroll; all weights in VMEM
        # ---- fused projection: [Wq | Wk | Wvo_0 ... Wvo_{NH-1}] -------------
        qkv = jnp.dot(h, wqkvo_ref[l],
                      preferred_element_type=jnp.float32)          # (M, 2H+NH*H)
        qk = qkv[:, :2 * hidden] + bqk_ref[l]                      # (M, 2H)

        # ---- attention: per-head softmax, V already carries Wo --------------
        # TODO(synk): could consolidate the per-head QK^T dots into one
        # lane-blocked MXU dot (perf review #6); kept as a static loop for
        # lowering safety at these toy shapes.
        attn = None
        for hh in range(num_heads):
            lo = hh * head_dim
            qh = qk[:, lo:lo + head_dim]                           # (M, dh)
            kh = qk[:, hidden + lo:hidden + lo + head_dim]         # (M, dh)
            vo = qkv[:, 2 * hidden + hh * hidden:
                     2 * hidden + (hh + 1) * hidden]               # (M, H)
            s = jax.lax.dot_general(qh, kh, (((1,), (1,)), ((), ())),
                                    preferred_element_type=jnp.float32)
            s = s * scale + bias
            s = s - jnp.max(s, axis=-1, keepdims=True)
            p = jnp.exp(s)
            p = p / jnp.sum(p, axis=-1, keepdims=True)
            ctx = jnp.dot(p, vo, preferred_element_type=jnp.float32)  # (M, H)
            attn = ctx if attn is None else attn + ctx
        attn = attn + bo_ref[l]

        h = layer_norm(attn + h, g1_ref[l], b1_ref[l])

        # ---- feed-forward ----------------------------------------------------
        inter = jnp.dot(h, win_ref[l],
                        preferred_element_type=jnp.float32) + bin_ref[l]
        # exact (erf) GELU to match HF RoBERTa semantics
        inter = 0.5 * inter * (1.0 + jax.lax.erf(inter * (1.0 / math.sqrt(2.0))))
        ffn = jnp.dot(inter, wout_ref[l],
                      preferred_element_type=jnp.float32) + bout_ref[l]
        h = layer_norm(ffn + h, g2_ref[l], b2_ref[l])

    o_ref[...] = h.astype(o_ref.dtype)        # single HBM writeback at the end


def pallas_encoder(emb, attn_bias, params):
    """emb: (B*S, HIDDEN) f32 -> final hidden states (B*S, HIDDEN) f32."""
    M, H = emb.shape
    vmem = pl.BlockSpec(memory_space=pltpu.MemorySpace.VMEM)   # whole array in VMEM

    return pl.pallas_call(
        functools.partial(_encoder_kernel, num_layers=NUM_LAYERS,
                          num_heads=NUM_HEADS, head_dim=HEAD_DIM, eps=LN_EPS),
        out_shape=jax.ShapeDtypeStruct((M, H), jnp.float32),
        in_specs=[vmem] * 15,
        out_specs=vmem,
    )(emb, attn_bias, params["emb_ln_g"], params["emb_ln_b"],
      params["wqkvo"], params["bqk"], params["bo"],
      params["ln1_g"], params["ln1_b"],
      params["w_in"], params["b_in"], params["w_out"], params["b_out"],
      params["ln2_g"], params["ln2_b"])


# ----------------------------- parameter construction ------------------------
def init_params(key):
    keys = iter(jax.random.split(key, 64))

    def w(shape, scale=0.02):
        return (scale * jax.random.normal(next(keys), shape)).astype(jnp.float32)

    def make_layer():
        wq = w((HIDDEN, HIDDEN))
        wk = w((HIDDEN, HIDDEN))
        wv = w((HIDDEN, HIDDEN))
        wo = w((HIDDEN, HIDDEN))
        # Fold Wo into V per head (exact refactor of (x Wv_h) Wo_h):
        #   Wvo_h = Wv_h @ Wo_h  -> fused projection width 2H + NUM_HEADS*H.
        # (bv_h @ Wo_h would fold into bo since softmax rows sum to 1; biases
        #  are zero here so the fold is a no-op.)
        wvo = jnp.concatenate(
            [wv[:, h * HEAD_DIM:(h + 1) * HEAD_DIM]
             @ wo[h * HEAD_DIM:(h + 1) * HEAD_DIM, :]
             for h in range(NUM_HEADS)], axis=1)                   # (H, NH*H)
        return {
            "wqkvo": jnp.concatenate([wq, wk, wvo], axis=1),       # (H, 2H+NH*H)
            "w_in": w((HIDDEN, INTERMEDIATE)),
            "w_out": w((INTERMEDIATE, HIDDEN)),
        }

    layers = [make_layer() for _ in range(NUM_LAYERS)]
    stack = lambda name: jnp.stack([lay[name] for lay in layers], axis=0)

    return {
        "word_emb": w((VOCAB_SIZE, HIDDEN)),
        "pos_emb": w((PAD_TOKEN_ID + 1 + 64, HIDDEN)),
        "type_emb": w((1, HIDDEN)),
        "emb_ln_g": jnp.ones((1, HIDDEN), jnp.float32),
        "emb_ln_b": jnp.zeros((1, HIDDEN), jnp.float32),
        "pool_w": w((HIDDEN, HIDDEN)),
        "pool_b": jnp.zeros((HIDDEN,), jnp.float32),
        # stacked per-layer weights
        "wqkvo": stack("wqkvo"),                                   # (L,H,2H+NH*H)
        "bqk": jnp.zeros((NUM_LAYERS, 1, 2 * HIDDEN), jnp.float32),
        "bo": jnp.zeros((NUM_LAYERS, 1, HIDDEN), jnp.float32),
        "ln1_g": jnp.ones((NUM_LAYERS, 1, HIDDEN), jnp.float32),
        "ln1_b": jnp.zeros((NUM_LAYERS, 1, HIDDEN), jnp.float32),
        "w_in": stack("w_in"),                                     # (L,H,I)
        "b_in": jnp.zeros((NUM_LAYERS, 1, INTERMEDIATE), jnp.float32),
        "w_out": stack("w_out"),                                   # (L,I,H)
        "b_out": jnp.zeros((NUM_LAYERS, 1, HIDDEN), jnp.float32),
        "ln2_g": jnp.ones((NUM_LAYERS, 1, HIDDEN), jnp.float32),
        "ln2_b": jnp.zeros((NUM_LAYERS, 1, HIDDEN), jnp.float32),
    }


# ----------------------------- forward pass -----------------------------------
def text_encoder_forward(params, input_ids):
    """Returns pooler_output: (B, HIDDEN) = tanh(W_p h[:, 0, :] + b_p)."""
    B, S = input_ids.shape
    M = B * S

    # --- embeddings (irregular gather kept in plain JAX) ----------------------
    # TODO(synk): embedding gather stays in JAX (not a rectangular-tile pattern);
    # position ids assume no PAD tokens (HF RoBERTa derives them from the mask).
    word = jnp.take(params["word_emb"], input_ids, axis=0)                 # (B,S,H)
    pos_ids = PAD_TOKEN_ID + 1 + jnp.arange(S, dtype=jnp.int32)
    pos = jnp.take(params["pos_emb"], pos_ids, axis=0)[None, :, :]         # (1,S,H)
    tok = params["type_emb"][0][None, None, :]                             # (1,1,H)
    emb = (word + pos + tok).reshape(M, HIDDEN).astype(jnp.float32)

    # --- block-diagonal attention bias, built once (constant-folded under jit)
    batch_id = jnp.arange(M, dtype=jnp.int32) // S
    attn_bias = jnp.where(batch_id[:, None] == batch_id[None, :],
                          0.0, -1e30).astype(jnp.float32)                  # (M,M)

    # --- fused encoder: embeddings-LN + all transformer layers in one kernel --
    h = pallas_encoder(emb, attn_bias, params)                             # (M,H)

    # --- pooler in plain JAX ((B,32)x(32,32) is pure dispatch overhead in pallas)
    cls = h.reshape(B, S, HIDDEN)[:, 0, :]
    pooled = jnp.tanh(cls @ params["pool_w"] + params["pool_b"])
    return pooled


# ----------------------------- main -------------------------------------------
if __name__ == "__main__":
    key = jax.random.PRNGKey(0)
    k_param, k_ids = jax.random.split(key)

    B, S = 2, 8
    params = init_params(k_param)
    input_ids = jax.random.randint(k_ids, (B, S), 0, VOCAB_SIZE, dtype=jnp.int32)

    fwd = jax.jit(text_encoder_forward)
    pooler_output = fwd(params, input_ids)
    jax.block_until_ready(pooler_output)

    assert pooler_output.shape == (B, HIDDEN)
    assert pooler_output.dtype == jnp.float32
    assert bool(jnp.all(jnp.isfinite(pooler_output)))
    print("KERNEL_OK")
</pallas_src>

<mosaic_0001>
module attributes {stable_mosaic.version = 11 : i64} {
  func.func @_encoder_kernel(%arg0: memref<16x32xf32, #tpu.memory_space<vmem>>, %arg1: memref<16x16xf32, #tpu.memory_space<vmem>>, %arg2: memref<1x32xf32, #tpu.memory_space<vmem>>, %arg3: memref<1x32xf32, #tpu.memory_space<vmem>>, %arg4: memref<2x32x192xf32, #tpu.memory_space<vmem>>, %arg5: memref<2x1x64xf32, #tpu.memory_space<vmem>>, %arg6: memref<2x1x32xf32, #tpu.memory_space<vmem>>, %arg7: memref<2x1x32xf32, #tpu.memory_space<vmem>>, %arg8: memref<2x1x32xf32, #tpu.memory_space<vmem>>, %arg9: memref<2x32x64xf32, #tpu.memory_space<vmem>>, %arg10: memref<2x1x64xf32, #tpu.memory_space<vmem>>, %arg11: memref<2x64x32xf32, #tpu.memory_space<vmem>>, %arg12: memref<2x1x32xf32, #tpu.memory_space<vmem>>, %arg13: memref<2x1x32xf32, #tpu.memory_space<vmem>>, %arg14: memref<2x1x32xf32, #tpu.memory_space<vmem>>, %arg15: memref<16x32xf32, #tpu.memory_space<vmem>>) attributes {dimension_semantics = [], scalar_prefetch = 0 : i64, scratch_operands = 0 : i64, tpu.core_type = #tpu.core_type<tc>} {
    %c0 = arith.constant 0 : index
    %c0_0 = arith.constant 0 : index
    %0 = vector.load %arg1[%c0, %c0_0] : memref<16x16xf32, #tpu.memory_space<vmem>>, vector<16x16xf32>
    %c0_1 = arith.constant 0 : index
    %c0_2 = arith.constant 0 : index
    %1 = vector.load %arg0[%c0_1, %c0_2] : memref<16x32xf32, #tpu.memory_space<vmem>>, vector<16x32xf32>
    %c0_3 = arith.constant 0 : index
    %c0_4 = arith.constant 0 : index
    %2 = vector.load %arg2[%c0_3, %c0_4] : memref<1x32xf32, #tpu.memory_space<vmem>>, vector<1x32xf32>
    %c0_5 = arith.constant 0 : index
    %c0_6 = arith.constant 0 : index
    %3 = vector.load %arg3[%c0_5, %c0_6] : memref<1x32xf32, #tpu.memory_space<vmem>>, vector<1x32xf32>
    %cst = arith.constant dense<0.000000e+00> : vector<16xf32>
    %4 = vector.multi_reduction <add>, %1, %cst [1] : vector<16x32xf32> to vector<16xf32>
    %5 = vector.shape_cast %4 : vector<16xf32> to vector<16x1xf32>
    %cst_7 = arith.constant 3.200000e+01 : f32
    %6 = vector.broadcast %cst_7 : f32 to vector<16x1xf32>
    %7 = arith.divf %5, %6 : vector<16x1xf32>
    %8 = vector.broadcast %7 : vector<16x1xf32> to vector<16x32xf32>
    %9 = arith.subf %1, %8 : vector<16x32xf32>
    %10 = arith.mulf %9, %9 : vector<16x32xf32>
    %cst_8 = arith.constant dense<0.000000e+00> : vector<16xf32>
    %11 = vector.multi_reduction <add>, %10, %cst_8 [1] : vector<16x32xf32> to vector<16xf32>
    %12 = vector.shape_cast %11 : vector<16xf32> to vector<16x1xf32>
    %cst_9 = arith.constant 3.200000e+01 : f32
    %13 = vector.broadcast %cst_9 : f32 to vector<16x1xf32>
    %14 = arith.divf %12, %13 : vector<16x1xf32>
    %15 = vector.broadcast %7 : vector<16x1xf32> to vector<16x32xf32>
    %16 = arith.subf %1, %15 : vector<16x32xf32>
    %cst_10 = arith.constant 9.99999974E-6 : f32
    %17 = vector.broadcast %cst_10 : f32 to vector<16x1xf32>
    %18 = arith.addf %14, %17 : vector<16x1xf32>
    %19 = math.rsqrt %18 : vector<16x1xf32>
    %20 = vector.broadcast %19 : vector<16x1xf32> to vector<16x32xf32>
    %21 = arith.mulf %16, %20 : vector<16x32xf32>
    %22 = vector.broadcast %2 : vector<1x32xf32> to vector<16x32xf32>
    %23 = arith.mulf %21, %22 : vector<16x32xf32>
    %24 = vector.broadcast %3 : vector<1x32xf32> to vector<16x32xf32>
    %25 = arith.addf %23, %24 : vector<16x32xf32>
    %c0_11 = arith.constant 0 : index
    %c0_12 = arith.constant 0 : index
    %c0_13 = arith.constant 0 : index
    %26 = vector.load %arg4[%c0_11, %c0_12, %c0_13] : memref<2x32x192xf32, #tpu.memory_space<vmem>>, vector<1x32x192xf32>
    %27 = vector.shape_cast %26 : vector<1x32x192xf32> to vector<32x192xf32>
    %cst_14 = arith.constant dense<0.000000e+00> : vector<16x192xf32>
    %28 = tpu.matmul %25, %27, %cst_14 {dimension_numbers = #tpu.dot_dimension_numbers<[1], [0], [0], [1], [0, 0, 1, 1], [], []>} : vector<16x32xf32>, vector<32x192xf32>, vector<16x192xf32> -> vector<16x192xf32>
    %29 = vector.extract_strided_slice %28 {offsets = [0, 0], sizes = [16, 64], strides = [1, 1]} : vector<16x192xf32> to vector<16x64xf32>
    %c0_15 = arith.constant 0 : index
    %c0_16 = arith.constant 0 : index
    %c0_17 = arith.constant 0 : index
    %30 = vector.load %arg5[%c0_15, %c0_16, %c0_17] : memref<2x1x64xf32, #tpu.memory_space<vmem>>, vector<1x1x64xf32>
    %31 = vector.shape_cast %30 : vector<1x1x64xf32> to vector<1x64xf32>
    %32 = vector.broadcast %31 : vector<1x64xf32> to vector<16x64xf32>
    %33 = arith.addf %29, %32 : vector<16x64xf32>
    %34 = vector.extract_strided_slice %33 {offsets = [0, 0], sizes = [16, 8], strides = [1, 1]} : vector<16x64xf32> to vector<16x8xf32>
    %35 = vector.extract_strided_slice %33 {offsets = [0, 32], sizes = [16, 8], strides = [1, 1]} : vector<16x64xf32> to vector<16x8xf32>
    %36 = vector.extract_strided_slice %28 {offsets = [0, 64], sizes = [16, 32], strides = [1, 1]} : vector<16x192xf32> to vector<16x32xf32>
    %cst_18 = arith.constant dense<0.000000e+00> : vector<16x16xf32>
    %37 = tpu.matmul %34, %35, %cst_18 {dimension_numbers = #tpu.dot_dimension_numbers<[1], [1], [0], [0], [0, 0, 1, 0], [], []>} : vector<16x8xf32>, vector<16x8xf32>, vector<16x16xf32> -> vector<16x16xf32>
    %cst_19 = arith.constant 0.353553385 : f32
    %38 = vector.broadcast %cst_19 : f32 to vector<16x16xf32>
    %39 = arith.mulf %37, %38 : vector<16x16xf32>
    %40 = arith.addf %39, %0 : vector<16x16xf32>
    %cst_20 = arith.constant dense<0xFF800000> : vector<16xf32>
    %41 = vector.multi_reduction <maximumf>, %40, %cst_20 [1] : vector<16x16xf32> to vector<16xf32>
    %42 = vector.shape_cast %41 : vector<16xf32> to vector<16x1xf32>
    %43 = vector.broadcast %42 : vector<16x1xf32> to vector<16x16xf32>
    %44 = arith.subf %40, %43 : vector<16x16xf32>
    %45 = math.exp %44 : vector<16x16xf32>
    %cst_21 = arith.constant dense<0.000000e+00> : vector<16xf32>
    %46 = vector.multi_reduction <add>, %45, %cst_21 [1] : vector<16x16xf32> to vector<16xf32>
    %47 = vector.shape_cast %46 : vector<16xf32> to vector<16x1xf32>
    %48 = vector.broadcast %47 : vector<16x1xf32> to vector<16x16xf32>
    %49 = arith.divf %45, %48 : vector<16x16xf32>
    %cst_22 = arith.constant dense<0.000000e+00> : vector<16x32xf32>
    %50 = tpu.matmul %49, %36, %cst_22 {dimension_numbers = #tpu.dot_dimension_numbers<[1], [0], [0], [1], [0, 0, 1, 1], [], []>} : vector<16x16xf32>, vector<16x32xf32>, vector<16x32xf32> -> vector<16x32xf32>
    %51 = vector.extract_strided_slice %33 {offsets = [0, 8], sizes = [16, 8], strides = [1, 1]} : vector<16x64xf32> to vector<16x8xf32>
    %52 = vector.extract_strided_slice %33 {offsets = [0, 40], sizes = [16, 8], strides = [1, 1]} : vector<16x64xf32> to vector<16x8xf32>
    %53 = vector.extract_strided_slice %28 {offsets = [0, 96], sizes = [16, 32], strides = [1, 1]} : vector<16x192xf32> to vector<16x32xf32>
    %cst_23 = arith.constant dense<0.000000e+00> : vector<16x16xf32>
    %54 = tpu.matmul %51, %52, %cst_23 {dimension_numbers = #tpu.dot_dimension_numbers<[1], [1], [0], [0], [0, 0, 1, 0], [], []>} : vector<16x8xf32>, vector<16x8xf32>, vector<16x16xf32> -> vector<16x16xf32>
    %cst_24 = arith.constant 0.353553385 : f32
    %55 = vector.broadcast %cst_24 : f32 to vector<16x16xf32>
    %56 = arith.mulf %54, %55 : vector<16x16xf32>
    %57 = arith.addf %56, %0 : vector<16x16xf32>
    %cst_25 = arith.constant dense<0xFF800000> : vector<16xf32>
    %58 = vector.multi_reduction <maximumf>, %57, %cst_25 [1] : vector<16x16xf32> to vector<16xf32>
    %59 = vector.shape_cast %58 : vector<16xf32> to vector<16x1xf32>
    %60 = vector.broadcast %59 : vector<16x1xf32> to vector<16x16xf32>
    %61 = arith.subf %57, %60 : vector<16x16xf32>
    %62 = math.exp %61 : vector<16x16xf32>
    %cst_26 = arith.constant dense<0.000000e+00> : vector<16xf32>
    %63 = vector.multi_reduction <add>, %62, %cst_26 [1] : vector<16x16xf32> to vector<16xf32>
    %64 = vector.shape_cast %63 : vector<16xf32> to vector<16x1xf32>
    %65 = vector.broadcast %64 : vector<16x1xf32> to vector<16x16xf32>
    %66 = arith.divf %62, %65 : vector<16x16xf32>
    %cst_27 = arith.constant dense<0.000000e+00> : vector<16x32xf32>
    %67 = tpu.matmul %66, %53, %cst_27 {dimension_numbers = #tpu.dot_dimension_numbers<[1], [0], [0], [1], [0, 0, 1, 1], [], []>} : vector<16x16xf32>, vector<16x32xf32>, vector<16x32xf32> -> vector<16x32xf32>
    %68 = arith.addf %50, %67 : vector<16x32xf32>
    %69 = vector.extract_strided_slice %33 {offsets = [0, 16], sizes = [16, 8], strides = [1, 1]} : vector<16x64xf32> to vector<16x8xf32>
    %70 = vector.extract_strided_slice %33 {offsets = [0, 48], sizes = [16, 8], strides = [1, 1]} : vector<16x64xf32> to vector<16x8xf32>
    %71 = vector.extract_strided_slice %28 {offsets = [0, 128], sizes = [16, 32], strides = [1, 1]} : vector<16x192xf32> to vector<16x32xf32>
    %cst_28 = arith.constant dense<0.000000e+00> : vector<16x16xf32>
    %72 = tpu.matmul %69, %70, %cst_28 {dimension_numbers = #tpu.dot_dimension_numbers<[1], [1], [0], [0], [0, 0, 1, 0], [], []>} : vector<16x8xf32>, vector<16x8xf32>, vector<16x16xf32> -> vector<16x16xf32>
    %cst_29 = arith.constant 0.353553385 : f32
    %73 = vector.broadcast %cst_29 : f32 to vector<16x16xf32>
    %74 = arith.mulf %72, %73 : vector<16x16xf32>
    %75 = arith.addf %74, %0 : vector<16x16xf32>
    %cst_30 = arith.constant dense<0xFF800000> : vector<16xf32>
    %76 = vector.multi_reduction <maximumf>, %75, %cst_30 [1] : vector<16x16xf32> to vector<16xf32>
    %77 = vector.shape_cast %76 : vector<16xf32> to vector<16x1xf32>
    %78 = vector.broadcast %77 : vector<16x1xf32> to vector<16x16xf32>
    %79 = arith.subf %75, %78 : vector<16x16xf32>
    %80 = math.exp %79 : vector<16x16xf32>
    %cst_31 = arith.constant dense<0.000000e+00> : vector<16xf32>
    %81 = vector.multi_reduction <add>, %80, %cst_31 [1] : vector<16x16xf32> to vector<16xf32>
    %82 = vector.shape_cast %81 : vector<16xf32> to vector<16x1xf32>
    %83 = vector.broadcast %82 : vector<16x1xf32> to vector<16x16xf32>
    %84 = arith.divf %80, %83 : vector<16x16xf32>
    %cst_32 = arith.constant dense<0.000000e+00> : vector<16x32xf32>
    %85 = tpu.matmul %84, %71, %cst_32 {dimension_numbers = #tpu.dot_dimension_numbers<[1], [0], [0], [1], [0, 0, 1, 1], [], []>} : vector<16x16xf32>, vector<16x32xf32>, vector<16x32xf32> -> vector<16x32xf32>
    %86 = arith.addf %68, %85 : vector<16x32xf32>
    %87 = vector.extract_strided_slice %33 {offsets = [0, 24], sizes = [16, 8], strides = [1, 1]} : vector<16x64xf32> to vector<16x8xf32>
    %88 = vector.extract_strided_slice %33 {offsets = [0, 56], sizes = [16, 8], strides = [1, 1]} : vector<16x64xf32> to vector<16x8xf32>
    %89 = vector.extract_strided_slice %28 {offsets = [0, 160], sizes = [16, 32], strides = [1, 1]} : vector<16x192xf32> to vector<16x32xf32>
    %cst_33 = arith.constant dense<0.000000e+00> : vector<16x16xf32>
    %90 = tpu.matmul %87, %88, %cst_33 {dimension_numbers = #tpu.dot_dimension_numbers<[1], [1], [0], [0], [0, 0, 1, 0], [], []>} : vector<16x8xf32>, vector<16x8xf32>, vector<16x16xf32> -> vector<16x16xf32>
    %cst_34 = arith.constant 0.353553385 : f32
    %91 = vector.broadcast %cst_34 : f32 to vector<16x16xf32>
    %92 = arith.mulf %90, %91 : vector<16x16xf32>
    %93 = arith.addf %92, %0 : vector<16x16xf32>
    %cst_35 = arith.constant dense<0xFF800000> : vector<16xf32>
    %94 = vector.multi_reduction <maximumf>, %93, %cst_35 [1] : vector<16x16xf32> to vector<16xf32>
    %95 = vector.shape_cast %94 : vector<16xf32> to vector<16x1xf32>
    %96 = vector.broadcast %95 : vector<16x1xf32> to vector<16x16xf32>
    %97 = arith.subf %93, %96 : vector<16x16xf32>
    %98 = math.exp %97 : vector<16x16xf32>
    %cst_36 = arith.constant dense<0.000000e+00> : vector<16xf32>
    %99 = vector.multi_reduction <add>, %98, %cst_36 [1] : vector<16x16xf32> to vector<16xf32>
    %100 = vector.shape_cast %99 : vector<16xf32> to vector<16x1xf32>
    %101 = vector.broadcast %100 : vector<16x1xf32> to vector<16x16xf32>
    %102 = arith.divf %98, %101 : vector<16x16xf32>
    %cst_37 = arith.constant dense<0.000000e+00> : vector<16x32xf32>
    %103 = tpu.matmul %102, %89, %cst_37 {dimension_numbers = #tpu.dot_dimension_numbers<[1], [0], [0], [1], [0, 0, 1, 1], [], []>} : vector<16x16xf32>, vector<16x32xf32>, vector<16x32xf32> -> vector<16x32xf32>
    %104 = arith.addf %86, %103 : vector<16x32xf32>
    %c0_38 = arith.constant 0 : index
    %c0_39 = arith.constant 0 : index
    %c0_40 = arith.constant 0 : index
    %105 = vector.load %arg6[%c0_38, %c0_39, %c0_40] : memref<2x1x32xf32, #tpu.memory_space<vmem>>, vector<1x1x32xf32>
    %106 = vector.shape_cast %105 : vector<1x1x32xf32> to vector<1x32xf32>
    %107 = vector.broadcast %106 : vector<1x32xf32> to vector<16x32xf32>
    %108 = arith.addf %104, %107 : vector<16x32xf32>
    %109 = arith.addf %108, %25 : vector<16x32xf32>
    %c0_41 = arith.constant 0 : index
    %c0_42 = arith.constant 0 : index
    %c0_43 = arith.constant 0 : index
    %110 = vector.load %arg7[%c0_41, %c0_42, %c0_43] : memref<2x1x32xf32, #tpu.memory_space<vmem>>, vector<1x1x32xf32>
    %111 = vector.shape_cast %110 : vector<1x1x32xf32> to vector<1x32xf32>
    %c0_44 = arith.constant 0 : index
    %c0_45 = arith.constant 0 : index
    %c0_46 = arith.constant 0 : index
    %112 = vector.load %arg8[%c0_44, %c0_45, %c0_46] : memref<2x1x32xf32, #tpu.memory_space<vmem>>, vector<1x1x32xf32>
    %113 = vector.shape_cast %112 : vector<1x1x32xf32> to vector<1x32xf32>
    %cst_47 = arith.constant dense<0.000000e+00> : vector<16xf32>
    %114 = vector.multi_reduction <add>, %109, %cst_47 [1] : vector<16x32xf32> to vector<16xf32>
    %115 = vector.shape_cast %114 : vector<16xf32> to vector<16x1xf32>
    %cst_48 = arith.constant 3.200000e+01 : f32
    %116 = vector.broadcast %cst_48 : f32 to vector<16x1xf32>
    %117 = arith.divf %115, %116 : vector<16x1xf32>
    %118 = vector.broadcast %117 : vector<16x1xf32> to vector<16x32xf32>
    %119 = arith.subf %109, %118 : vector<16x32xf32>
    %120 = arith.mulf %119, %119 : vector<16x32xf32>
    %cst_49 = arith.constant dense<0.000000e+00> : vector<16xf32>
    %121 = vector.multi_reduction <add>, %120, %cst_49 [1] : vector<16x32xf32> to vector<16xf32>
    %122 = vector.shape_cast %121 : vector<16xf32> to vector<16x1xf32>
    %cst_50 = arith.constant 3.200000e+01 : f32
    %123 = vector.broadcast %cst_50 : f32 to vector<16x1xf32>
    %124 = arith.divf %122, %123 : vector<16x1xf32>
    %125 = vector.broadcast %117 : vector<16x1xf32> to vector<16x32xf32>
    %126 = arith.subf %109, %125 : vector<16x32xf32>
    %cst_51 = arith.constant 9.99999974E-6 : f32
    %127 = vector.broadcast %cst_51 : f32 to vector<16x1xf32>
    %128 = arith.addf %124, %127 : vector<16x1xf32>
    %129 = math.rsqrt %128 : vector<16x1xf32>
    %130 = vector.broadcast %129 : vector<16x1xf32> to vector<16x32xf32>
    %131 = arith.mulf %126, %130 : vector<16x32xf32>
    %132 = vector.broadcast %111 : vector<1x32xf32> to vector<16x32xf32>
    %133 = arith.mulf %131, %132 : vector<16x32xf32>
    %134 = vector.broadcast %113 : vector<1x32xf32> to vector<16x32xf32>
    %135 = arith.addf %133, %134 : vector<16x32xf32>
    %c0_52 = arith.constant 0 : index
    %c0_53 = arith.constant 0 : index
    %c0_54 = arith.constant 0 : index
    %136 = vector.load %arg9[%c0_52, %c0_53, %c0_54] : memref<2x32x64xf32, #tpu.memory_space<vmem>>, vector<1x32x64xf32>
    %137 = vector.shape_cast %136 : vector<1x32x64xf32> to vector<32x64xf32>
    %cst_55 = arith.constant dense<0.000000e+00> : vector<16x64xf32>
    %138 = tpu.matmul %135, %137, %cst_55 {dimension_numbers = #tpu.dot_dimension_numbers<[1], [0], [0], [1], [0, 0, 1, 1], [], []>} : vector<16x32xf32>, vector<32x64xf32>, vector<16x64xf32> -> vector<16x64xf32>
    %c0_56 = arith.constant 0 : index
    %c0_57 = arith.constant 0 : index
    %c0_58 = arith.constant 0 : index
    %139 = vector.load %arg10[%c0_56, %c0_57, %c0_58] : memref<2x1x64xf32, #tpu.memory_space<vmem>>, vector<1x1x64xf32>
    %140 = vector.shape_cast %139 : vector<1x1x64xf32> to vector<1x64xf32>
    %141 = vector.broadcast %140 : vector<1x64xf32> to vector<16x64xf32>
    %142 = arith.addf %138, %141 : vector<16x64xf32>
    %cst_59 = arith.constant 5.000000e-01 : f32
    %143 = vector.broadcast %cst_59 : f32 to vector<16x64xf32>
    %144 = arith.mulf %143, %142 : vector<16x64xf32>
    %cst_60 = arith.constant 0.707106769 : f32
    %145 = vector.broadcast %cst_60 : f32 to vector<16x64xf32>
    %146 = arith.mulf %142, %145 : vector<16x64xf32>
    %147 = math.erf %146 : vector<16x64xf32>
    %cst_61 = arith.constant 1.000000e+00 : f32
    %148 = vector.broadcast %cst_61 : f32 to vector<16x64xf32>
    %149 = arith.addf %148, %147 : vector<16x64xf32>
    %150 = arith.mulf %144, %149 : vector<16x64xf32>
    %c0_62 = arith.constant 0 : index
    %c0_63 = arith.constant 0 : index
    %c0_64 = arith.constant 0 : index
    %151 = vector.load %arg11[%c0_62, %c0_63, %c0_64] : memref<2x64x32xf32, #tpu.memory_space<vmem>>, vector<1x64x32xf32>
    %152 = vector.shape_cast %151 : vector<1x64x32xf32> to vector<64x32xf32>
    %cst_65 = arith.constant dense<0.000000e+00> : vector<16x32xf32>
    %153 = tpu.matmul %150, %152, %cst_65 {dimension_numbers = #tpu.dot_dimension_numbers<[1], [0], [0], [1], [0, 0, 1, 1], [], []>} : vector<16x64xf32>, vector<64x32xf32>, vector<16x32xf32> -> vector<16x32xf32>
    %c0_66 = arith.constant 0 : index
    %c0_67 = arith.constant 0 : index
    %c0_68 = arith.constant 0 : index
    %154 = vector.load %arg12[%c0_66, %c0_67, %c0_68] : memref<2x1x32xf32, #tpu.memory_space<vmem>>, vector<1x1x32xf32>
    %155 = vector.shape_cast %154 : vector<1x1x32xf32> to vector<1x32xf32>
    %156 = vector.broadcast %155 : vector<1x32xf32> to vector<16x32xf32>
    %157 = arith.addf %153, %156 : vector<16x32xf32>
    %158 = arith.addf %157, %135 : vector<16x32xf32>
    %c0_69 = arith.constant 0 : index
    %c0_70 = arith.constant 0 : index
    %c0_71 = arith.constant 0 : index
    %159 = vector.load %arg13[%c0_69, %c0_70, %c0_71] : memref<2x1x32xf32, #tpu.memory_space<vmem>>, vector<1x1x32xf32>
    %160 = vector.shape_cast %159 : vector<1x1x32xf32> to vector<1x32xf32>
    %c0_72 = arith.constant 0 : index
    %c0_73 = arith.constant 0 : index
    %c0_74 = arith.constant 0 : index
    %161 = vector.load %arg14[%c0_72, %c0_73, %c0_74] : memref<2x1x32xf32, #tpu.memory_space<vmem>>, vector<1x1x32xf32>
    %162 = vector.shape_cast %161 : vector<1x1x32xf32> to vector<1x32xf32>
    %cst_75 = arith.constant dense<0.000000e+00> : vector<16xf32>
    %163 = vector.multi_reduction <add>, %158, %cst_75 [1] : vector<16x32xf32> to vector<16xf32>
    %164 = vector.shape_cast %163 : vector<16xf32> to vector<16x1xf32>
    %cst_76 = arith.constant 3.200000e+01 : f32
    %165 = vector.broadcast %cst_76 : f32 to vector<16x1xf32>
    %166 = arith.divf %164, %165 : vector<16x1xf32>
    %167 = vector.broadcast %166 : vector<16x1xf32> to vector<16x32xf32>
    %168 = arith.subf %158, %167 : vector<16x32xf32>
    %169 = arith.mulf %168, %168 : vector<16x32xf32>
    %cst_77 = arith.constant dense<0.000000e+00> : vector<16xf32>
    %170 = vector.multi_reduction <add>, %169, %cst_77 [1] : vector<16x32xf32> to vector<16xf32>
    %171 = vector.shape_cast %170 : vector<16xf32> to vector<16x1xf32>
    %cst_78 = arith.constant 3.200000e+01 : f32
    %172 = vector.broadcast %cst_78 : f32 to vector<16x1xf32>
    %173 = arith.divf %171, %172 : vector<16x1xf32>
    %174 = vector.broadcast %166 : vector<16x1xf32> to vector<16x32xf32>
    %175 = arith.subf %158, %174 : vector<16x32xf32>
    %cst_79 = arith.constant 9.99999974E-6 : f32
    %176 = vector.broadcast %cst_79 : f32 to vector<16x1xf32>
    %177 = arith.addf %173, %176 : vector<16x1xf32>
    %178 = math.rsqrt %177 : vector<16x1xf32>
    %179 = vector.broadcast %178 : vector<16x1xf32> to vector<16x32xf32>
    %180 = arith.mulf %175, %179 : vector<16x32xf32>
    %181 = vector.broadcast %160 : vector<1x32xf32> to vector<16x32xf32>
    %182 = arith.mulf %180, %181 : vector<16x32xf32>
    %183 = vector.broadcast %162 : vector<1x32xf32> to vector<16x32xf32>
    %184 = arith.addf %182, %183 : vector<16x32xf32>
    %c1 = arith.constant 1 : index
    %c0_80 = arith.constant 0 : index
    %c0_81 = arith.constant 0 : index
    %185 = vector.load %arg4[%c1, %c0_80, %c0_81] : memref<2x32x192xf32, #tpu.memory_space<vmem>>, vector<1x32x192xf32>
    %186 = vector.shape_cast %185 : vector<1x32x192xf32> to vector<32x192xf32>
    %cst_82 = arith.constant dense<0.000000e+00> : vector<16x192xf32>
    %187 = tpu.matmul %184, %186, %cst_82 {dimension_numbers = #tpu.dot_dimension_numbers<[1], [0], [0], [1], [0, 0, 1, 1], [], []>} : vector<16x32xf32>, vector<32x192xf32>, vector<16x192xf32> -> vector<16x192xf32>
    %188 = vector.extract_strided_slice %187 {offsets = [0, 0], sizes = [16, 64], strides = [1, 1]} : vector<16x192xf32> to vector<16x64xf32>
    %c1_83 = arith.constant 1 : index
    %c0_84 = arith.constant 0 : index
    %c0_85 = arith.constant 0 : index
    %189 = vector.load %arg5[%c1_83, %c0_84, %c0_85] : memref<2x1x64xf32, #tpu.memory_space<vmem>>, vector<1x1x64xf32>
    %190 = vector.shape_cast %189 : vector<1x1x64xf32> to vector<1x64xf32>
    %191 = vector.broadcast %190 : vector<1x64xf32> to vector<16x64xf32>
    %192 = arith.addf %188, %191 : vector<16x64xf32>
    %193 = vector.extract_strided_slice %192 {offsets = [0, 0], sizes = [16, 8], strides = [1, 1]} : vector<16x64xf32> to vector<16x8xf32>
    %194 = vector.extract_strided_slice %192 {offsets = [0, 32], sizes = [16, 8], strides = [1, 1]} : vector<16x64xf32> to vector<16x8xf32>
    %195 = vector.extract_strided_slice %187 {offsets = [0, 64], sizes = [16, 32], strides = [1, 1]} : vector<16x192xf32> to vector<16x32xf32>
    %cst_86 = arith.constant dense<0.000000e+00> : vector<16x16xf32>
    %196 = tpu.matmul %193, %194, %cst_86 {dimension_numbers = #tpu.dot_dimension_numbers<[1], [1], [0], [0], [0, 0, 1, 0], [], []>} : vector<16x8xf32>, vector<16x8xf32>, vector<16x16xf32> -> vector<16x16xf32>
    %cst_87 = arith.constant 0.353553385 : f32
    %197 = vector.broadcast %cst_87 : f32 to vector<16x16xf32>
    %198 = arith.mulf %196, %197 : vector<16x16xf32>
    %199 = arith.addf %198, %0 : vector<16x16xf32>
    %cst_88 = arith.constant dense<0xFF800000> : vector<16xf32>
    %200 = vector.multi_reduction <maximumf>, %199, %cst_88 [1] : vector<16x16xf32> to vector<16xf32>
    %201 = vector.shape_cast %200 : vector<16xf32> to vector<16x1xf32>
    %202 = vector.broadcast %201 : vector<16x1xf32> to vector<16x16xf32>
    %203 = arith.subf %199, %202 : vector<16x16xf32>
    %204 = math.exp %203 : vector<16x16xf32>
    %cst_89 = arith.constant dense<0.000000e+00> : vector<16xf32>
    %205 = vector.multi_reduction <add>, %204, %cst_89 [1] : vector<16x16xf32> to vector<16xf32>
    %206 = vector.shape_cast %205 : vector<16xf32> to vector<16x1xf32>
    %207 = vector.broadcast %206 : vector<16x1xf32> to vector<16x16xf32>
    %208 = arith.divf %204, %207 : vector<16x16xf32>
    %cst_90 = arith.constant dense<0.000000e+00> : vector<16x32xf32>
    %209 = tpu.matmul %208, %195, %cst_90 {dimension_numbers = #tpu.dot_dimension_numbers<[1], [0], [0], [1], [0, 0, 1, 1], [], []>} : vector<16x16xf32>, vector<16x32xf32>, vector<16x32xf32> -> vector<16x32xf32>
    %210 = vector.extract_strided_slice %192 {offsets = [0, 8], sizes = [16, 8], strides = [1, 1]} : vector<16x64xf32> to vector<16x8xf32>
    %211 = vector.extract_strided_slice %192 {offsets = [0, 40], sizes = [16, 8], strides = [1, 1]} : vector<16x64xf32> to vector<16x8xf32>
    %212 = vector.extract_strided_slice %187 {offsets = [0, 96], sizes = [16, 32], strides = [1, 1]} : vector<16x192xf32> to vector<16x32xf32>
    %cst_91 = arith.constant dense<0.000000e+00> : vector<16x16xf32>
    %213 = tpu.matmul %210, %211, %cst_91 {dimension_numbers = #tpu.dot_dimension_numbers<[1], [1], [0], [0], [0, 0, 1, 0], [], []>} : vector<16x8xf32>, vector<16x8xf32>, vector<16x16xf32> -> vector<16x16xf32>
    %cst_92 = arith.constant 0.353553385 : f32
    %214 = vector.broadcast %cst_92 : f32 to vector<16x16xf32>
    %215 = arith.mulf %213, %214 : vector<16x16xf32>
    %216 = arith.addf %215, %0 : vector<16x16xf32>
    %cst_93 = arith.constant dense<0xFF800000> : vector<16xf32>
    %217 = vector.multi_reduction <maximumf>, %216, %cst_93 [1] : vector<16x16xf32> to vector<16xf32>
    %218 = vector.shape_cast %217 : vector<16xf32> to vector<16x1xf32>
    %219 = vector.broadcast %218 : vector<16x1xf32> to vector<16x16xf32>
    %220 = arith.subf %216, %219 : vector<16x16xf32>
    %221 = math.exp %220 : vector<16x16xf32>
    %cst_94 = arith.constant dense<0.000000e+00> : vector<16xf32>
    %222 = vector.multi_reduction <add>, %221, %cst_94 [1] : vector<16x16xf32> to vector<16xf32>
    %223 = vector.shape_cast %222 : vector<16xf32> to vector<16x1xf32>
    %224 = vector.broadcast %223 : vector<16x1xf32> to vector<16x16xf32>
    %225 = arith.divf %221, %224 : vector<16x16xf32>
    %cst_95 = arith.constant dense<0.000000e+00> : vector<16x32xf32>
    %226 = tpu.matmul %225, %212, %cst_95 {dimension_numbers = #tpu.dot_dimension_numbers<[1], [0], [0], [1], [0, 0, 1, 1], [], []>} : vector<16x16xf32>, vector<16x32xf32>, vector<16x32xf32> -> vector<16x32xf32>
    %227 = arith.addf %209, %226 : vector<16x32xf32>
    %228 = vector.extract_strided_slice %192 {offsets = [0, 16], sizes = [16, 8], strides = [1, 1]} : vector<16x64xf32> to vector<16x8xf32>
    %229 = vector.extract_strided_slice %192 {offsets = [0, 48], sizes = [16, 8], strides = [1, 1]} : vector<16x64xf32> to vector<16x8xf32>
    %230 = vector.extract_strided_slice %187 {offsets = [0, 128], sizes = [16, 32], strides = [1, 1]} : vector<16x192xf32> to vector<16x32xf32>
    %cst_96 = arith.constant dense<0.000000e+00> : vector<16x16xf32>
    %231 = tpu.matmul %228, %229, %cst_96 {dimension_numbers = #tpu.dot_dimension_numbers<[1], [1], [0], [0], [0, 0, 1, 0], [], []>} : vector<16x8xf32>, vector<16x8xf32>, vector<16x16xf32> -> vector<16x16xf32>
    %cst_97 = arith.constant 0.353553385 : f32
    %232 = vector.broadcast %cst_97 : f32 to vector<16x16xf32>
    %233 = arith.mulf %231, %232 : vector<16x16xf32>
    %234 = arith.addf %233, %0 : vector<16x16xf32>
    %cst_98 = arith.constant dense<0xFF800000> : vector<16xf32>
    %235 = vector.multi_reduction <maximumf>, %234, %cst_98 [1] : vector<16x16xf32> to vector<16xf32>
    %236 = vector.shape_cast %235 : vector<16xf32> to vector<16x1xf32>
    %237 = vector.broadcast %236 : vector<16x1xf32> to vector<16x16xf32>
    %238 = arith.subf %234, %237 : vector<16x16xf32>
    %239 = math.exp %238 : vector<16x16xf32>
    %cst_99 = arith.constant dense<0.000000e+00> : vector<16xf32>
    %240 = vector.multi_reduction <add>, %239, %cst_99 [1] : vector<16x16xf32> to vector<16xf32>
    %241 = vector.shape_cast %240 : vector<16xf32> to vector<16x1xf32>
    %242 = vector.broadcast %241 : vector<16x1xf32> to vector<16x16xf32>
    %243 = arith.divf %239, %242 : vector<16x16xf32>
    %cst_100 = arith.constant dense<0.000000e+00> : vector<16x32xf32>
    %244 = tpu.matmul %243, %230, %cst_100 {dimension_numbers = #tpu.dot_dimension_numbers<[1], [0], [0], [1], [0, 0, 1, 1], [], []>} : vector<16x16xf32>, vector<16x32xf32>, vector<16x32xf32> -> vector<16x32xf32>
    %245 = arith.addf %227, %244 : vector<16x32xf32>
    %246 = vector.extract_strided_slice %192 {offsets = [0, 24], sizes = [16, 8], strides = [1, 1]} : vector<16x64xf32> to vector<16x8xf32>
    %247 = vector.extract_strided_slice %192 {offsets = [0, 56], sizes = [16, 8], strides = [1, 1]} : vector<16x64xf32> to vector<16x8xf32>
    %248 = vector.extract_strided_slice %187 {offsets = [0, 160], sizes = [16, 32], strides = [1, 1]} : vector<16x192xf32> to vector<16x32xf32>
    %cst_101 = arith.constant dense<0.000000e+00> : vector<16x16xf32>
    %249 = tpu.matmul %246, %247, %cst_101 {dimension_numbers = #tpu.dot_dimension_numbers<[1], [1], [0], [0], [0, 0, 1, 0], [], []>} : vector<16x8xf32>, vector<16x8xf32>, vector<16x16xf32> -> vector<16x16xf32>
    %cst_102 = arith.constant 0.353553385 : f32
    %250 = vector.broadcast %cst_102 : f32 to vector<16x16xf32>
    %251 = arith.mulf %249, %250 : vector<16x16xf32>
    %252 = arith.addf %251, %0 : vector<16x16xf32>
    %cst_103 = arith.constant dense<0xFF800000> : vector<16xf32>
    %253 = vector.multi_reduction <maximumf>, %252, %cst_103 [1] : vector<16x16xf32> to vector<16xf32>
    %254 = vector.shape_cast %253 : vector<16xf32> to vector<16x1xf32>
    %255 = vector.broadcast %254 : vector<16x1xf32> to vector<16x16xf32>
    %256 = arith.subf %252, %255 : vector<16x16xf32>
    %257 = math.exp %256 : vector<16x16xf32>
    %cst_104 = arith.constant dense<0.000000e+00> : vector<16xf32>
    %258 = vector.multi_reduction <add>, %257, %cst_104 [1] : vector<16x16xf32> to vector<16xf32>
    %259 = vector.shape_cast %258 : vector<16xf32> to vector<16x1xf32>
    %260 = vector.broadcast %259 : vector<16x1xf32> to vector<16x16xf32>
    %261 = arith.divf %257, %260 : vector<16x16xf32>
    %cst_105 = arith.constant dense<0.000000e+00> : vector<16x32xf32>
    %262 = tpu.matmul %261, %248, %cst_105 {dimension_numbers = #tpu.dot_dimension_numbers<[1], [0], [0], [1], [0, 0, 1, 1], [], []>} : vector<16x16xf32>, vector<16x32xf32>, vector<16x32xf32> -> vector<16x32xf32>
    %263 = arith.addf %245, %262 : vector<16x32xf32>
    %c1_106 = arith.constant 1 : index
    %c0_107 = arith.constant 0 : index
    %c0_108 = arith.constant 0 : index
    %264 = vector.load %arg6[%c1_106, %c0_107, %c0_108] : memref<2x1x32xf32, #tpu.memory_space<vmem>>, vector<1x1x32xf32>
    %265 = vector.shape_cast %264 : vector<1x1x32xf32> to vector<1x32xf32>
    %266 = vector.broadcast %265 : vector<1x32xf32> to vector<16x32xf32>
    %267 = arith.addf %263, %266 : vector<16x32xf32>
    %268 = arith.addf %267, %184 : vector<16x32xf32>
    %c1_109 = arith.constant 1 : index
    %c0_110 = arith.constant 0 : index
    %c0_111 = arith.constant 0 : index
    %269 = vector.load %arg7[%c1_109, %c0_110, %c0_111] : memref<2x1x32xf32, #tpu.memory_space<vmem>>, vector<1x1x32xf32>
    %270 = vector.shape_cast %269 : vector<1x1x32xf32> to vector<1x32xf32>
    %c1_112 = arith.constant 1 : index
    %c0_113 = arith.constant 0 : index
    %c0_114 = arith.constant 0 : index
    %271 = vector.load %arg8[%c1_112, %c0_113, %c0_114] : memref<2x1x32xf32, #tpu.memory_space<vmem>>, vector<1x1x32xf32>
    %272 = vector.shape_cast %271 : vector<1x1x32xf32> to vector<1x32xf32>
    %cst_115 = arith.constant dense<0.000000e+00> : vector<16xf32>
    %273 = vector.multi_reduction <add>, %268, %cst_115 [1] : vector<16x32xf32> to vector<16xf32>
    %274 = vector.shape_cast %273 : vector<16xf32> to vector<16x1xf32>
    %cst_116 = arith.constant 3.200000e+01 : f32
    %275 = vector.broadcast %cst_116 : f32 to vector<16x1xf32>
    %276 = arith.divf %274, %275 : vector<16x1xf32>
    %277 = vector.broadcast %276 : vector<16x1xf32> to vector<16x32xf32>
    %278 = arith.subf %268, %277 : vector<16x32xf32>
    %279 = arith.mulf %278, %278 : vector<16x32xf32>
    %cst_117 = arith.constant dense<0.000000e+00> : vector<16xf32>
    %280 = vector.multi_reduction <add>, %279, %cst_117 [1] : vector<16x32xf32> to vector<16xf32>
    %281 = vector.shape_cast %280 : vector<16xf32> to vector<16x1xf32>
    %cst_118 = arith.constant 3.200000e+01 : f32
    %282 = vector.broadcast %cst_118 : f32 to vector<16x1xf32>
    %283 = arith.divf %281, %282 : vector<16x1xf32>
    %284 = vector.broadcast %276 : vector<16x1xf32> to vector<16x32xf32>
    %285 = arith.subf %268, %284 : vector<16x32xf32>
    %cst_119 = arith.constant 9.99999974E-6 : f32
    %286 = vector.broadcast %cst_119 : f32 to vector<16x1xf32>
    %287 = arith.addf %283, %286 : vector<16x1xf32>
    %288 = math.rsqrt %287 : vector<16x1xf32>
    %289 = vector.broadcast %288 : vector<16x1xf32> to vector<16x32xf32>
    %290 = arith.mulf %285, %289 : vector<16x32xf32>
    %291 = vector.broadcast %270 : vector<1x32xf32> to vector<16x32xf32>
    %292 = arith.mulf %290, %291 : vector<16x32xf32>
    %293 = vector.broadcast %272 : vector<1x32xf32> to vector<16x32xf32>
    %294 = arith.addf %292, %293 : vector<16x32xf32>
    %c1_120 = arith.constant 1 : index
    %c0_121 = arith.constant 0 : index
    %c0_122 = arith.constant 0 : index
    %295 = vector.load %arg9[%c1_120, %c0_121, %c0_122] : memref<2x32x64xf32, #tpu.memory_space<vmem>>, vector<1x32x64xf32>
    %296 = vector.shape_cast %295 : vector<1x32x64xf32> to vector<32x64xf32>
    %cst_123 = arith.constant dense<0.000000e+00> : vector<16x64xf32>
    %297 = tpu.matmul %294, %296, %cst_123 {dimension_numbers = #tpu.dot_dimension_numbers<[1], [0], [0], [1], [0, 0, 1, 1], [], []>} : vector<16x32xf32>, vector<32x64xf32>, vector<16x64xf32> -> vector<16x64xf32>
    %c1_124 = arith.constant 1 : index
    %c0_125 = arith.constant 0 : index
    %c0_126 = arith.constant 0 : index
    %298 = vector.load %arg10[%c1_124, %c0_125, %c0_126] : memref<2x1x64xf32, #tpu.memory_space<vmem>>, vector<1x1x64xf32>
    %299 = vector.shape_cast %298 : vector<1x1x64xf32> to vector<1x64xf32>
    %300 = vector.broadcast %299 : vector<1x64xf32> to vector<16x64xf32>
    %301 = arith.addf %297, %300 : vector<16x64xf32>
    %cst_127 = arith.constant 5.000000e-01 : f32
    %302 = vector.broadcast %cst_127 : f32 to vector<16x64xf32>
    %303 = arith.mulf %302, %301 : vector<16x64xf32>
    %cst_128 = arith.constant 0.707106769 : f32
    %304 = vector.broadcast %cst_128 : f32 to vector<16x64xf32>
    %305 = arith.mulf %301, %304 : vector<16x64xf32>
    %306 = math.erf %305 : vector<16x64xf32>
    %cst_129 = arith.constant 1.000000e+00 : f32
    %307 = vector.broadcast %cst_129 : f32 to vector<16x64xf32>
    %308 = arith.addf %307, %306 : vector<16x64xf32>
    %309 = arith.mulf %303, %308 : vector<16x64xf32>
    %c1_130 = arith.constant 1 : index
    %c0_131 = arith.constant 0 : index
    %c0_132 = arith.constant 0 : index
    %310 = vector.load %arg11[%c1_130, %c0_131, %c0_132] : memref<2x64x32xf32, #tpu.memory_space<vmem>>, vector<1x64x32xf32>
    %311 = vector.shape_cast %310 : vector<1x64x32xf32> to vector<64x32xf32>
    %cst_133 = arith.constant dense<0.000000e+00> : vector<16x32xf32>
    %312 = tpu.matmul %309, %311, %cst_133 {dimension_numbers = #tpu.dot_dimension_numbers<[1], [0], [0], [1], [0, 0, 1, 1], [], []>} : vector<16x64xf32>, vector<64x32xf32>, vector<16x32xf32> -> vector<16x32xf32>
    %c1_134 = arith.constant 1 : index
    %c0_135 = arith.constant 0 : index
    %c0_136 = arith.constant 0 : index
    %313 = vector.load %arg12[%c1_134, %c0_135, %c0_136] : memref<2x1x32xf32, #tpu.memory_space<vmem>>, vector<1x1x32xf32>
    %314 = vector.shape_cast %313 : vector<1x1x32xf32> to vector<1x32xf32>
    %315 = vector.broadcast %314 : vector<1x32xf32> to vector<16x32xf32>
    %316 = arith.addf %312, %315 : vector<16x32xf32>
    %317 = arith.addf %316, %294 : vector<16x32xf32>
    %c1_137 = arith.constant 1 : index
    %c0_138 = arith.constant 0 : index
    %c0_139 = arith.constant 0 : index
    %318 = vector.load %arg13[%c1_137, %c0_138, %c0_139] : memref<2x1x32xf32, #tpu.memory_space<vmem>>, vector<1x1x32xf32>
    %319 = vector.shape_cast %318 : vector<1x1x32xf32> to vector<1x32xf32>
    %c1_140 = arith.constant 1 : index
    %c0_141 = arith.constant 0 : index
    %c0_142 = arith.constant 0 : index
    %320 = vector.load %arg14[%c1_140, %c0_141, %c0_142] : memref<2x1x32xf32, #tpu.memory_space<vmem>>, vector<1x1x32xf32>
    %321 = vector.shape_cast %320 : vector<1x1x32xf32> to vector<1x32xf32>
    %cst_143 = arith.constant dense<0.000000e+00> : vector<16xf32>
    %322 = vector.multi_reduction <add>, %317, %cst_143 [1] : vector<16x32xf32> to vector<16xf32>
    %323 = vector.shape_cast %322 : vector<16xf32> to vector<16x1xf32>
    %cst_144 = arith.constant 3.200000e+01 : f32
    %324 = vector.broadcast %cst_144 : f32 to vector<16x1xf32>
    %325 = arith.divf %323, %324 : vector<16x1xf32>
    %326 = vector.broadcast %325 : vector<16x1xf32> to vector<16x32xf32>
    %327 = arith.subf %317, %326 : vector<16x32xf32>
    %328 = arith.mulf %327, %327 : vector<16x32xf32>
    %cst_145 = arith.constant dense<0.000000e+00> : vector<16xf32>
    %329 = vector.multi_reduction <add>, %328, %cst_145 [1] : vector<16x32xf32> to vector<16xf32>
    %330 = vector.shape_cast %329 : vector<16xf32> to vector<16x1xf32>
    %cst_146 = arith.constant 3.200000e+01 : f32
    %331 = vector.broadcast %cst_146 : f32 to vector<16x1xf32>
    %332 = arith.divf %330, %331 : vector<16x1xf32>
    %333 = vector.broadcast %325 : vector<16x1xf32> to vector<16x32xf32>
    %334 = arith.subf %317, %333 : vector<16x32xf32>
    %cst_147 = arith.constant 9.99999974E-6 : f32
    %335 = vector.broadcast %cst_147 : f32 to vector<16x1xf32>
    %336 = arith.addf %332, %335 : vector<16x1xf32>
    %337 = math.rsqrt %336 : vector<16x1xf32>
    %338 = vector.broadcast %337 : vector<16x1xf32> to vector<16x32xf32>
    %339 = arith.mulf %334, %338 : vector<16x32xf32>
    %340 = vector.broadcast %319 : vector<1x32xf32> to vector<16x32xf32>
    %341 = arith.mulf %339, %340 : vector<16x32xf32>
    %342 = vector.broadcast %321 : vector<1x32xf32> to vector<16x32xf32>
    %343 = arith.addf %341, %342 : vector<16x32xf32>
    %c0_148 = arith.constant 0 : index
    %c0_149 = arith.constant 0 : index
    %344 = vector.load %arg15[%c0_148, %c0_149] : memref<16x32xf32, #tpu.memory_space<vmem>>, vector<16x32xf32>
    tpu.vector_store %arg15[%c0_148, %c0_149], %343 {strides = array<i32>} : memref<16x32xf32, #tpu.memory_space<vmem>>, vector<16x32xf32>,
    return
  }
}

</mosaic_0001>

<llo_original>
// kernel: text_encoder_forward.1
$region0: #{text_encoder_forward.1}
  #allocation0 [shape = 'u32[]', space=smem, size = 0x4, offset = 0x4, fixed_abs, tag = 'smem constant byte address 0x4 - core index']
  #allocation1 [shape = 'u32[144,128]{1,0:T(1,128)}', space=vmem, size = 0x12000, scoped, tag = 'internal scratch']
  %s0 = inlined_call_operand.vmem [shape: f32[16,32], index: 0, kind: input, shape index: {}]
  %s1 = inlined_call_operand.vmem [shape: f32[16,16], index: 1, kind: input, shape index: {}]
  %s2 = inlined_call_operand.vmem [shape: f32[1,32], index: 2, kind: input, shape index: {}]
  %s3 = inlined_call_operand.vmem [shape: f32[1,32], index: 3, kind: input, shape index: {}]
  %s4 = inlined_call_operand.vmem [shape: f32[2,32,192], index: 4, kind: input, shape index: {}]
  %s5 = inlined_call_operand.vmem [shape: f32[2,1,64], index: 5, kind: input, shape index: {}]
  %s6 = inlined_call_operand.vmem [shape: f32[2,1,32], index: 6, kind: input, shape index: {}]
  %s7 = inlined_call_operand.vmem [shape: f32[2,1,32], index: 7, kind: input, shape index: {}]
  %s8 = inlined_call_operand.vmem [shape: f32[2,1,32], index: 8, kind: input, shape index: {}]
  %s9 = inlined_call_operand.vmem [shape: f32[2,32,64], index: 9, kind: input, shape index: {}]
  %s10 = inlined_call_operand.vmem [shape: f32[2,1,64], index: 10, kind: input, shape index: {}]
  %s11 = inlined_call_operand.vmem [shape: f32[2,64,32], index: 11, kind: input, shape index: {}]
  %s12 = inlined_call_operand.vmem [shape: f32[2,1,32], index: 12, kind: input, shape index: {}]
  %s13 = inlined_call_operand.vmem [shape: f32[2,1,32], index: 13, kind: input, shape index: {}]
  %s14 = inlined_call_operand.vmem [shape: f32[2,1,32], index: 14, kind: input, shape index: {}]
  %s15 = inlined_call_operand.vmem [shape: f32[16,32], index: 15, kind: output, shape index: {}]
  %s16 = sld [smem:[#allocation0]]
  $region70: #{text_encoder_forward.1} parent=0
    _
  %s18 = ssub.s32 1, %s16
  %s19 = scalar_select 0, %s18, %s16
  // Predicated region
  $region2: #{text_encoder_forward.1} parent=0 // pred_check
    _
  $region3: #{text_encoder_forward.1} parent=0 // pred_check_branch
    %21 = sbr.rel (0) target = $region5
  $region4: #{text_encoder_forward.1} parent=0 // pred_region
    _
  $region5: #{text_encoder_forward.1} parent=0 // pred_fallthru
    _
  // Predicated region
  $region6: #{text_encoder_forward.1} parent=0 // pred_check
    _
  $region7: #{text_encoder_forward.1} parent=0 // pred_check_branch
    %23 = sbr.rel (0) target = $region9
  $region8: #{text_encoder_forward.1} parent=0 // pred_region
    _
  $region9: #{text_encoder_forward.1} parent=0 // pred_fallthru
    _
  // Predicated region
  $region10: #{text_encoder_forward.1} parent=0 // pred_check
    _
  $region11: #{text_encoder_forward.1} parent=0 // pred_check_branch
    %25 = sbr.rel (0) target = $region13
  $region12: #{text_encoder_forward.1} parent=0 // pred_region
    _
  $region13: #{text_encoder_forward.1} parent=0 // pred_fallthru
    _
  // Predicated region
  $region14: #{text_encoder_forward.1} parent=0 // pred_check
    _
  $region15: #{text_encoder_forward.1} parent=0 // pred_check_branch
    %27 = sbr.rel (0) target = $region17
  $region16: #{text_encoder_forward.1} parent=0 // pred_region
    _
  $region17: #{text_encoder_forward.1} parent=0 // pred_fallthru
    _
  // Predicated region
  $region18: #{text_encoder_forward.1} parent=0 // pred_check
    _
  $region19: #{text_encoder_forward.1} parent=0 // pred_check_branch
    %29 = sbr.rel (0) target = $region21
  $region20: #{text_encoder_forward.1} parent=0 // pred_region
    _
  $region21: #{text_encoder_forward.1} parent=0 // pred_fallthru
    _
  // Predicated region
  $region22: #{text_encoder_forward.1} parent=0 // pred_check
    _
  $region23: #{text_encoder_forward.1} parent=0 // pred_check_branch
    %31 = sbr.rel (0) target = $region25
  $region24: #{text_encoder_forward.1} parent=0 // pred_region
    _
  $region25: #{text_encoder_forward.1} parent=0 // pred_fallthru
    _
  // Predicated region
  $region26: #{text_encoder_forward.1} parent=0 // pred_check
    _
  $region27: #{text_encoder_forward.1} parent=0 // pred_check_branch
    %33 = sbr.rel (0) target = $region29
  $region28: #{text_encoder_forward.1} parent=0 // pred_region
    _
  $region29: #{text_encoder_forward.1} parent=0 // pred_fallthru
    _
  // Predicated region
  $region30: #{text_encoder_forward.1} parent=0 // pred_check
    _
  $region31: #{text_encoder_forward.1} parent=0 // pred_check_branch
    %35 = sbr.rel (0) target = $region33
  $region32: #{text_encoder_forward.1} parent=0 // pred_region
    _
  $region33: #{text_encoder_forward.1} parent=0 // pred_fallthru
    _
  // Predicated region
  $region34: #{text_encoder_forward.1} parent=0 // pred_check
    _
  $region35: #{text_encoder_forward.1} parent=0 // pred_check_branch
    %37 = sbr.rel (0) target = $region37
  $region36: #{text_encoder_forward.1} parent=0 // pred_region
    _
  $region37: #{text_encoder_forward.1} parent=0 // pred_fallthru
    _
  // Predicated region
  $region38: #{text_encoder_forward.1} parent=0 // pred_check
    _
  $region39: #{text_encoder_forward.1} parent=0 // pred_check_branch
    %39 = sbr.rel (0) target = $region41
  $region40: #{text_encoder_forward.1} parent=0 // pred_region
    _
  $region41: #{text_encoder_forward.1} parent=0 // pred_fallthru
    _
  // Predicated region
  $region42: #{text_encoder_forward.1} parent=0 // pred_check
    _
  $region43: #{text_encoder_forward.1} parent=0 // pred_check_branch
    %41 = sbr.rel (0) target = $region45
  $region44: #{text_encoder_forward.1} parent=0 // pred_region
    _
  $region45: #{text_encoder_forward.1} parent=0 // pred_fallthru
    _
  // Predicated region
  $region46: #{text_encoder_forward.1} parent=0 // pred_check
    _
  $region47: #{text_encoder_forward.1} parent=0 // pred_check_branch
    %43 = sbr.rel (0) target = $region49
  $region48: #{text_encoder_forward.1} parent=0 // pred_region
    _
  $region49: #{text_encoder_forward.1} parent=0 // pred_fallthru
    _
  // Predicated region
  $region50: #{text_encoder_forward.1} parent=0 // pred_check
    _
  $region51: #{text_encoder_forward.1} parent=0 // pred_check_branch
    %45 = sbr.rel (0) target = $region53
  $region52: #{text_encoder_forward.1} parent=0 // pred_region
    _
  $region53: #{text_encoder_forward.1} parent=0 // pred_fallthru
    _
  // Predicated region
  $region54: #{text_encoder_forward.1} parent=0 // pred_check
    _
  $region55: #{text_encoder_forward.1} parent=0 // pred_check_branch
    %47 = sbr.rel (0) target = $region57
  $region56: #{text_encoder_forward.1} parent=0 // pred_region
    _
  $region57: #{text_encoder_forward.1} parent=0 // pred_fallthru
    _
  // Predicated region
  $region58: #{text_encoder_forward.1} parent=0 // pred_check
    _
  $region59: #{text_encoder_forward.1} parent=0 // pred_check_branch
    %49 = sbr.rel (0) target = $region61
  $region60: #{text_encoder_forward.1} parent=0 // pred_region
    _
  $region61: #{text_encoder_forward.1} parent=0 // pred_fallthru
    _
  %v50 = vld [vmem:[%s1] sm:$0xff]
  %v51 = vld [vmem:[%s1 + $0x8] sm:$0xff]
  %v52 = vld [vmem:[%s0] sm:$0xff]
  %v53 = vld [vmem:[%s0 + $0x8] sm:$0xff]
  %v54 = vld [vmem:[%s2] sm:$0x1]
  %v55 = vld [vmem:[%s3] sm:$0x1]
  %vm56 = vcmask 261120
  %v57 = vsel %vm56, %v52, 0.0
  %58 = vadd.xlane.f32.xlu0 %v57
  %v59 = vpop.xlane.xlu0 %58
  %v60 = vsel %vm56, %v53, 0.0
  %61 = vadd.xlane.f32.xlu0 %v60
  %v62 = vpop.xlane.xlu0 %61
  %v63 = vrcp.pop 32.0
  %v64 = vmul.f32 %v59, %v63
  %v65 = vmul.f32 %v62, %v63
  %v66 = vsub.f32 %v52, %v64
  %v67 = vsub.f32 %v53, %v65
  %v68 = vmul.f32 %v66, %v66
  %v69 = vmul.f32 %v67, %v67
  %v70 = vsel %vm56, %v68, 0.0
  %71 = vadd.xlane.f32.xlu0 %v70
  %v72 = vpop.xlane.xlu0 %71
  %v73 = vsel %vm56, %v69, 0.0
  %74 = vadd.xlane.f32.xlu0 %v73
  %v75 = vpop.xlane.xlu0 %74
  %v76 = vmul.f32 %v72, %v63
  %v77 = vmul.f32 %v75, %v63
  %v78 = vadd.f32 %v76, 1e-05
  %v79 = vadd.f32 %v77, 1e-05
  %v80 = vrsqrt.pop %v78
  %v81 = vrsqrt.pop %v79
  %v82 = vmul.f32 %v66, %v80
  %v83 = vmul.f32 %v67, %v81
  %v85 = vlaneseq
  %v86 = vshrl.u32 %v85, 7
  %v87 = vsub.s32 0, %v86
  %v88 = vrot.slane %v54, %v87
  %v90 = vmul.f32 %v82, %v88
  %v91 = vmul.f32 %v83, %v88
  %v93 = vlaneseq
  %v94 = vshrl.u32 %v93, 7
  %v95 = vsub.s32 0, %v94
  %v96 = vrot.slane %v55, %v95
  %v98 = vadd.f32 %v90, %v96
  %v99 = vadd.f32 %v91, %v96
  %v100 = vld [vmem:[%s4] sm:$0xff]
  %v101 = vld [vmem:[%s4 + $0x8] sm:$0xff]
  %v102 = vld [vmem:[%s4 + $0x10] sm:$0xff]
  %v103 = vld [vmem:[%s4 + $0x18] sm:$0xff]
  %v104 = vld [vmem:[%s4 + $0x20] sm:$0xff]
  %v105 = vld [vmem:[%s4 + $0x28] sm:$0xff]
  %v106 = vld [vmem:[%s4 + $0x30] sm:$0xff]
  %v107 = vld [vmem:[%s4 + $0x38] sm:$0xff]
  %v109 = vsel %vm56, %v98, 0
  %v112 = vsel %vm56, %v99, 0
  %114 = vmatprep.subr.mxu0 0.0
  %115 = vmatpush1.msra.mxu0 0.0
  %116 = vmatprep.subr.mxu0 0.0
  %117 = vmatpush1.msra.mxu0 0.0
  %118 = vmatprep.subr.mxu0 0.0
  %119 = vmatpush1.msra.mxu0 0.0
  %120 = vmatprep.subr.mxu0 0.0
  %121 = vmatpush1.msra.mxu0 0.0
  %122 = vmatprep.subr.mxu0 0.0
  %123 = vmatpush1.msra.mxu0 0.0
  %124 = vmatprep.subr.mxu0 0.0
  %125 = vmatpush1.msra.mxu0 0.0
  %126 = vmatprep.subr.mxu0 0.0
  %127 = vmatpush1.msra.mxu0 0.0
  %128 = vmatprep.subr.mxu0 0.0
  %129 = vmatpush1.msra.mxu0 0.0
  %130 = vmatprep.subr.mxu0 0.0
  %131 = vmatpush1.msra.mxu0 0.0
  %132 = vmatprep.subr.mxu0 0.0
  %133 = vmatpush1.msra.mxu0 0.0
  %134 = vmatprep.subr.mxu0 0.0
  %135 = vmatpush1.msra.mxu0 0.0
  %136 = vmatprep.subr.mxu0 0.0
  %137 = vmatpush1.msra.mxu0 0.0
  %138 = vmatprep.subr.mxu0 %v107
  %139 = vmatpush1.msra.mxu0 %v106
  %140 = vmatprep.subr.mxu0 %v105
  %141 = vmatpush1.msra.mxu0 %v104
  %142 = vmatprep.subr.mxu0 %v103
  %143 = vmatpush1.msra.mxu0 %v102
  %144 = vmatprep.subr.mxu0 %v101
  %145 = vmatpush1.msra.mxu0 %v100
  %146 = vmatprep.subr.mxu0 0.0
  %147 = vmatpush2.msra.mxu0 0.0
  %148 = vmatprep.subr.mxu0 0.0
  %149 = vmatpush2.msra.mxu0 0.0
  %150 = vmatprep.subr.mxu0 0.0
  %151 = vmatpush2.msra.mxu0 0.0
  %152 = vmatprep.subr.mxu0 0.0
  %153 = vmatpush2.msra.mxu0 0.0
  %154 = vmatprep.subr.mxu0 0.0
  %155 = vmatpush2.msra.mxu0 0.0
  %156 = vmatprep.subr.mxu0 0.0
  %157 = vmatpush2.msra.mxu0 0.0
  %158 = vmatprep.subr.mxu0 0.0
  %159 = vmatpush2.msra.mxu0 0.0
  %160 = vmatprep.subr.mxu0 0.0
  %161 = vmatpush2.msra.mxu0 0.0
  %162 = vmatprep.subr.mxu0 0.0
  %163 = vmatpush2.msra.mxu0 0.0
  %164 = vmatprep.subr.mxu0 0.0
  %165 = vmatpush2.msra.mxu0 0.0
  %166 = vmatprep.subr.mxu0 0.0
  %167 = vmatpush2.msra.mxu0 0.0
  %168 = vmatprep.subr.mxu0 0.0
  %169 = vmatpush2.msra.mxu0 0.0
  %170 = vmatprep.subr.mxu0 0.0
  %171 = vmatpush2.msra.mxu0 0.0
  %172 = vmatprep.subr.mxu0 0.0
  %173 = vmatpush2.msra.mxu0 0.0
  %174 = vmatprep.subr.mxu0 0.0
  %175 = vmatpush2.msra.mxu0 0.0
  %176 = vmatprep.subr.mxu0 0.0
  %177 = vmatpush2.msra.mxu0 0.0
  %178 = vmatprep.mubr.f32.mxu0 0.0
  %179 = vmatmul.mubr.f32.gmra.mxu0 %v109
  %v180 = vpop.f32.mrf.mxu0
  %v181 = vadd.f32 0.0, %v180
  %v182 = vpop.f32.mrf.mxu0
  %v183 = vadd.f32 0.0, %v182
  %184 = vmatprep.mubr.f32.mxu0 0.0
  %185 = vmatmul.mubr.f32.gmra.mxu0 %v112
  %v186 = vpop.f32.mrf.mxu0
  %v187 = vadd.f32 0.0, %v186
  %v188 = vpop.f32.mrf.mxu0
  %v189 = vadd.f32 0.0, %v188
  %190 = vdwg.mxu0
  %v191 = vld [vmem:[%s5] sm:$0x1]
  %v193 = vlaneseq
  %v194 = vshrl.u32 %v193, 7
  %v195 = vsub.s32 0, %v194
  %v196 = vrot.slane %v191, %v195
  %v198 = vadd.f32 %v181, %v196
  %v199 = vadd.f32 %v187, %v196
  %202 = vrot.lane.b32.xlu0 %v198, 96
  %v203 = vpop.permute.xlu0 %202
  %204 = vrot.lane.b32.xlu0 %v199, 96
  %v205 = vpop.permute.xlu0 %204
  %vm206 = vcmask 64512
  %v207 = vsel %vm206, %v198, 0
  %v209 = vsel %vm206, %v199, 0
  %v211 = vsel %vm206, %v203, 0
  %v213 = vsel %vm206, %v205, 0
  %215 = vmatprep.subr.mxu0 0.0
  %216 = vmatpush1.xpose.msra.mxu0 0.0
  %217 = vmatprep.subr.mxu0 0.0
  %218 = vmatpush1.xpose.msra.mxu0 0.0
  %219 = vmatprep.subr.mxu0 0.0
  %220 = vmatpush1.xpose.msra.mxu0 0.0
  %221 = vmatprep.subr.mxu0 0.0
  %222 = vmatpush1.xpose.msra.mxu0 0.0
  %223 = vmatprep.subr.mxu0 0.0
  %224 = vmatpush1.xpose.msra.mxu0 0.0
  %225 = vmatprep.subr.mxu0 0.0
  %226 = vmatpush1.xpose.msra.mxu0 0.0
  %227 = vmatprep.subr.mxu0 0.0
  %228 = vmatpush1.xpose.msra.mxu0 0.0
  %229 = vmatprep.subr.mxu0 0.0
  %230 = vmatpush1.xpose.msra.mxu0 0.0
  %231 = vmatprep.subr.mxu0 0.0
  %232 = vmatpush1.xpose.msra.mxu0 0.0
  %233 = vmatprep.subr.mxu0 0.0
  %234 = vmatpush1.xpose.msra.mxu0 0.0
  %235 = vmatprep.subr.mxu0 0.0
  %236 = vmatpush1.xpose.msra.mxu0 0.0
  %237 = vmatprep.subr.mxu0 0.0
  %238 = vmatpush1.xpose.msra.mxu0 0.0
  %239 = vmatprep.subr.mxu0 0.0
  %240 = vmatpush1.xpose.msra.mxu0 0.0
  %241 = vmatprep.subr.mxu0 0.0
  %242 = vmatpush1.xpose.msra.mxu0 0.0
  %243 = vmatprep.subr.mxu0 0.0
  %244 = vmatpush1.xpose.msra.mxu0 %v213
  %245 = vmatprep.subr.mxu0 0.0
  %246 = vmatpush1.xpose.msra.mxu0 %v211
  %247 = vmatprep.subr.mxu0 0.0
  %248 = vmatpush2.xpose.msra.mxu0 0.0
  %249 = vmatprep.subr.mxu0 0.0
  %250 = vmatpush2.xpose.msra.mxu0 0.0
  %251 = vmatprep.subr.mxu0 0.0
  %252 = vmatpush2.xpose.msra.mxu0 0.0
  %253 = vmatprep.subr.mxu0 0.0
  %254 = vmatpush2.xpose.msra.mxu0 0.0
  %255 = vmatprep.subr.mxu0 0.0
  %256 = vmatpush2.xpose.msra.mxu0 0.0
  %257 = vmatprep.subr.mxu0 0.0
  %258 = vmatpush2.xpose.msra.mxu0 0.0
  %259 = vmatprep.subr.mxu0 0.0
  %260 = vmatpush2.xpose.msra.mxu0 0.0
  %261 = vmatprep.subr.mxu0 0.0
  %262 = vmatpush2.xpose.msra.mxu0 0.0
  %263 = vmatprep.subr.mxu0 0.0
  %264 = vmatpush2.xpose.msra.mxu0 0.0
  %265 = vmatprep.subr.mxu0 0.0
  %266 = vmatpush2.xpose.msra.mxu0 0.0
  %267 = vmatprep.subr.mxu0 0.0
  %268 = vmatpush2.xpose.msra.mxu0 0.0
  %269 = vmatprep.subr.mxu0 0.0
  %270 = vmatpush2.xpose.msra.mxu0 0.0
  %271 = vmatprep.subr.mxu0 0.0
  %272 = vmatpush2.xpose.msra.mxu0 0.0
  %273 = vmatprep.subr.mxu0 0.0
  %274 = vmatpush2.xpose.msra.mxu0 0.0
  %275 = vmatprep.subr.mxu0 0.0
  %276 = vmatpush2.xpose.msra.mxu0 0.0
  %277 = vmatprep.subr.mxu0 0.0
  %278 = vmatpush2.xpose.msra.mxu0 0.0
  %279 = vmatprep.mubr.f32.mxu0 0.0
  %280 = vmatmul.mubr.f32.gmra.mxu0 %v207
  %v281 = vpop.f32.mrf.mxu0
  %v282 = vadd.f32 0.0, %v281
  %v283 = vpop.f32.mrf.mxu0
  %284 = vmatprep.mubr.f32.mxu0 0.0
  %285 = vmatmul.mubr.f32.gmra.mxu0 %v209
  %v286 = vpop.f32.mrf.mxu0
  %v287 = vadd.f32 0.0, %v286
  %v288 = vpop.f32.mrf.mxu0
  %289 = vdwg.mxu0
  %v290 = vmul.f32 %v282, 0.35355338
  %v291 = vmul.f32 %v287, 0.35355338
  %v292 = vadd.f32 %v290, %v50
  %v293 = vadd.f32 %v291, %v51
  %vm294 = vcmask 130048
  %v295 = vsel %vm294, %v292, -inf
  %296 = vmax.xlane.f32.xlu0 %v295
  %v297 = vpop.xlane.xlu0 %296
  %v298 = vsel %vm294, %v293, -inf
  %299 = vmax.xlane.f32.xlu0 %v298
  %v300 = vpop.xlane.xlu0 %299
  %v301 = vsub.f32 %v292, %v297
  %v302 = vsub.f32 %v293, %v300
  %v303 = vmul.f32 %v301, 1.442695
  %v304 = vpow.pop %v303
  %v305 = vmul.f32 %v302, 1.442695
  %v306 = vpow.pop %v305
  %v307 = vsel %vm294, %v304, 0.0
  %308 = vadd.xlane.f32.xlu0 %v307
  %v309 = vpop.xlane.xlu0 %308
  %v310 = vsel %vm294, %v306, 0.0
  %311 = vadd.xlane.f32.xlu0 %v310
  %v312 = vpop.xlane.xlu0 %311
  %v313 = vrcp.pop %v309
  %v314 = vmul.f32 %v304, %v313
  %v315 = vrcp.pop %v312
  %v316 = vmul.f32 %v306, %v315
  %317 = vrot.lane.b32.xlu0 %v198, 120
  %v318 = vpop.permute.xlu0 %317
  %319 = vrot.lane.b32.xlu0 %v199, 120
  %v320 = vpop.permute.xlu0 %319
  %321 = vrot.lane.b32.xlu0 %v198, 88
  %v322 = vpop.permute.xlu0 %321
  %323 = vrot.lane.b32.xlu0 %v199, 88
  %v324 = vpop.permute.xlu0 %323
  %v325 = vsel %vm206, %v318, 0
  %v327 = vsel %vm206, %v320, 0
  %v329 = vsel %vm206, %v322, 0
  %v331 = vsel %vm206, %v324, 0
  %333 = vmatprep.subr.mxu0 0.0
  %334 = vmatpush1.xpose.msra.mxu0 0.0
  %335 = vmatprep.subr.mxu0 0.0
  %336 = vmatpush1.xpose.msra.mxu0 0.0
  %337 = vmatprep.subr.mxu0 0.0
  %338 = vmatpush1.xpose.msra.mxu0 0.0
  %339 = vmatprep.subr.mxu0 0.0
  %340 = vmatpush1.xpose.msra.mxu0 0.0
  %341 = vmatprep.subr.mxu0 0.0
  %342 = vmatpush1.xpose.msra.mxu0 0.0
  %343 = vmatprep.subr.mxu0 0.0
  %344 = vmatpush1.xpose.msra.mxu0 0.0
  %345 = vmatprep.subr.mxu0 0.0
  %346 = vmatpush1.xpose.msra.mxu0 0.0
  %347 = vmatprep.subr.mxu0 0.0
  %348 = vmatpush1.xpose.msra.mxu0 0.0
  %349 = vmatprep.subr.mxu0 0.0
  %350 = vmatpush1.xpose.msra.mxu0 0.0
  %351 = vmatprep.subr.mxu0 0.0
  %352 = vmatpush1.xpose.msra.mxu0 0.0
  %353 = vmatprep.subr.mxu0 0.0
  %354 = vmatpush1.xpose.msra.mxu0 0.0
  %355 = vmatprep.subr.mxu0 0.0
  %356 = vmatpush1.xpose.msra.mxu0 0.0
  %357 = vmatprep.subr.mxu0 0.0
  %358 = vmatpush1.xpose.msra.mxu0 0.0
  %359 = vmatprep.subr.mxu0 0.0
  %360 = vmatpush1.xpose.msra.mxu0 0.0
  %361 = vmatprep.subr.mxu0 0.0
  %362 = vmatpush1.xpose.msra.mxu0 %v331
  %363 = vmatprep.subr.mxu0 0.0
  %364 = vmatpush1.xpose.msra.mxu0 %v329
  %365 = vmatprep.subr.mxu0 0.0
  %366 = vmatpush2.xpose.msra.mxu0 0.0
  %367 = vmatprep.subr.mxu0 0.0
  %368 = vmatpush2.xpose.msra.mxu0 0.0
  %369 = vmatprep.subr.mxu0 0.0
  %370 = vmatpush2.xpose.msra.mxu0 0.0
  %371 = vmatprep.subr.mxu0 0.0
  %372 = vmatpush2.xpose.msra.mxu0 0.0
  %373 = vmatprep.subr.mxu0 0.0
  %374 = vmatpush2.xpose.msra.mxu0 0.0
  %375 = vmatprep.subr.mxu0 0.0
  %376 = vmatpush2.xpose.msra.mxu0 0.0
  %377 = vmatprep.subr.mxu0 0.0
  %378 = vmatpush2.xpose.msra.mxu0 0.0
  %379 = vmatprep.subr.mxu0 0.0
  %380 = vmatpush2.xpose.msra.mxu0 0.0
  %381 = vmatprep.subr.mxu0 0.0
  %382 = vmatpush2.xpose.msra.mxu0 0.0
  %383 = vmatprep.subr.mxu0 0.0
  %384 = vmatpush2.xpose.msra.mxu0 0.0
  %385 = vmatprep.subr.mxu0 0.0
  %386 = vmatpush2.xpose.msra.mxu0 0.0
  %387 = vmatprep.subr.mxu0 0.0
  %388 = vmatpush2.xpose.msra.mxu0 0.0
  %389 = vmatprep.subr.mxu0 0.0
  %390 = vmatpush2.xpose.msra.mxu0 0.0
  %391 = vmatprep.subr.mxu0 0.0
  %392 = vmatpush2.xpose.msra.mxu0 0.0
  %393 = vmatprep.subr.mxu0 0.0
  %394 = vmatpush2.xpose.msra.mxu0 0.0
  %395 = vmatprep.subr.mxu0 0.0
  %396 = vmatpush2.xpose.msra.mxu0 0.0
  %397 = vmatprep.mubr.f32.mxu0 0.0
  %398 = vmatmul.mubr.f32.gmra.mxu0 %v325
  %v399 = vpop.f32.mrf.mxu0
  %v400 = vadd.f32 0.0, %v399
  %v401 = vpop.f32.mrf.mxu0
  %402 = vmatprep.mubr.f32.mxu0 0.0
  %403 = vmatmul.mubr.f32.gmra.mxu0 %v327
  %v404 = vpop.f32.mrf.mxu0
  %v405 = vadd.f32 0.0, %v404
  %v406 = vpop.f32.mrf.mxu0
  %407 = vdwg.mxu0
  %v408 = vmul.f32 %v400, 0.35355338
  %v409 = vmul.f32 %v405, 0.35355338
  %v410 = vadd.f32 %v408, %v50
  %v411 = vadd.f32 %v409, %v51
  %v412 = vsel %vm294, %v410, -inf
  %413 = vmax.xlane.f32.xlu0 %v412
  %v414 = vpop.xlane.xlu0 %413
  %v415 = vsel %vm294, %v411, -inf
  %416 = vmax.xlane.f32.xlu0 %v415
  %v417 = vpop.xlane.xlu0 %416
  %v418 = vsub.f32 %v410, %v414
  %v419 = vsub.f32 %v411, %v417
  %v420 = vmul.f32 %v418, 1.442695
  %v421 = vpow.pop %v420
  %v422 = vmul.f32 %v419, 1.442695
  %v423 = vpow.pop %v422
  %v424 = vsel %vm294, %v421, 0.0
  %425 = vadd.xlane.f32.xlu0 %v424
  %v426 = vpop.xlane.xlu0 %425
  %v427 = vsel %vm294, %v423, 0.0
  %428 = vadd.xlane.f32.xlu0 %v427
  %v429 = vpop.xlane.xlu0 %428
  %v430 = vrcp.pop %v426
  %v431 = vmul.f32 %v421, %v430
  %v432 = vrcp.pop %v429
  %v433 = vmul.f32 %v423, %v432
  %436 = vrot.lane.b32.xlu0 %v181, 32
  %v437 = vpop.permute.xlu0 %436
  %438 = vrot.lane.b32.xlu0 %v187, 32
  %v439 = vpop.permute.xlu0 %438
  %v443 = vsel %vm294, %v431, 0
  %v446 = vsel %vm294, %v433, 0
  %448 = vmatprep.subr.mxu0 0.0
  %449 = vmatpush1.msra.mxu0 0.0
  %450 = vmatprep.subr.mxu0 0.0
  %451 = vmatpush1.msra.mxu0 0.0
  %452 = vmatprep.subr.mxu0 0.0
  %453 = vmatpush1.msra.mxu0 0.0
  %454 = vmatprep.subr.mxu0 0.0
  %455 = vmatpush1.msra.mxu0 0.0
  %456 = vmatprep.subr.mxu0 0.0
  %457 = vmatpush1.msra.mxu0 0.0
  %458 = vmatprep.subr.mxu0 0.0
  %459 = vmatpush1.msra.mxu0 0.0
  %460 = vmatprep.subr.mxu0 0.0
  %461 = vmatpush1.msra.mxu0 0.0
  %462 = vmatprep.subr.mxu0 0.0
  %463 = vmatpush1.msra.mxu0 0.0
  %464 = vmatprep.subr.mxu0 0.0
  %465 = vmatpush1.msra.mxu0 0.0
  %466 = vmatprep.subr.mxu0 0.0
  %467 = vmatpush1.msra.mxu0 0.0
  %468 = vmatprep.subr.mxu0 0.0
  %469 = vmatpush1.msra.mxu0 0.0
  %470 = vmatprep.subr.mxu0 0.0
  %471 = vmatpush1.msra.mxu0 0.0
  %472 = vmatprep.subr.mxu0 0.0
  %473 = vmatpush1.msra.mxu0 0.0
  %474 = vmatprep.subr.mxu0 0.0
  %475 = vmatpush1.msra.mxu0 0.0
  %476 = vmatprep.subr.mxu0 0.0
  %477 = vmatpush1.msra.mxu0 %v439
  %478 = vmatprep.subr.mxu0 0.0
  %479 = vmatpush1.msra.mxu0 %v437
  %480 = vmatprep.subr.mxu0 0.0
  %481 = vmatpush2.msra.mxu0 0.0
  %482 = vmatprep.subr.mxu0 0.0
  %483 = vmatpush2.msra.mxu0 0.0
  %484 = vmatprep.subr.mxu0 0.0
  %485 = vmatpush2.msra.mxu0 0.0
  %486 = vmatprep.subr.mxu0 0.0
  %487 = vmatpush2.msra.mxu0 0.0
  %488 = vmatprep.subr.mxu0 0.0
  %489 = vmatpush2.msra.mxu0 0.0
  %490 = vmatprep.subr.mxu0 0.0
  %491 = vmatpush2.msra.mxu0 0.0
  %492 = vmatprep.subr.mxu0 0.0
  %493 = vmatpush2.msra.mxu0 0.0
  %494 = vmatprep.subr.mxu0 0.0
  %495 = vmatpush2.msra.mxu0 0.0
  %496 = vmatprep.subr.mxu0 0.0
  %497 = vmatpush2.msra.mxu0 0.0
  %498 = vmatprep.subr.mxu0 0.0
  %499 = vmatpush2.msra.mxu0 0.0
  %500 = vmatprep.subr.mxu0 0.0
  %501 = vmatpush2.msra.mxu0 0.0
  %502 = vmatprep.subr.mxu0 0.0
  %503 = vmatpush2.msra.mxu0 0.0
  %504 = vmatprep.subr.mxu0 0.0
  %505 = vmatpush2.msra.mxu0 0.0
  %506 = vmatprep.subr.mxu0 0.0
  %507 = vmatpush2.msra.mxu0 0.0
  %508 = vmatprep.subr.mxu0 0.0
  %509 = vmatpush2.msra.mxu0 0.0
  %510 = vmatprep.subr.mxu0 0.0
  %511 = vmatpush2.msra.mxu0 0.0
  %512 = vmatprep.mubr.f32.mxu0 0.0
  %513 = vmatmul.mubr.f32.gmra.mxu0 %v443
  %v514 = vpop.f32.mrf.mxu0
  %v515 = vadd.f32 0.0, %v514
  %v516 = vpop.f32.mrf.mxu0
  %517 = vmatprep.mubr.f32.mxu0 0.0
  %518 = vmatmul.mubr.f32.gmra.mxu0 %v446
  %v519 = vpop.f32.mrf.mxu0
  %v520 = vadd.f32 0.0, %v519
  %v521 = vpop.f32.mrf.mxu0
  %522 = vdwg.mxu0
  %523 = vrot.lane.b32.xlu0 %v181, 64
  %v524 = vpop.permute.xlu0 %523
  %525 = vrot.lane.b32.xlu0 %v187, 64
  %v526 = vpop.permute.xlu0 %525
  %v530 = vsel %vm294, %v314, 0
  %v533 = vsel %vm294, %v316, 0
  %535 = vmatprep.subr.mxu0 0.0
  %536 = vmatpush1.msra.mxu0 0.0
  %537 = vmatprep.subr.mxu0 0.0
  %538 = vmatpush1.msra.mxu0 0.0
  %539 = vmatprep.subr.mxu0 0.0
  %540 = vmatpush1.msra.mxu0 0.0
  %541 = vmatprep.subr.mxu0 0.0
  %542 = vmatpush1.msra.mxu0 0.0
  %543 = vmatprep.subr.mxu0 0.0
  %544 = vmatpush1.msra.mxu0 0.0
  %545 = vmatprep.subr.mxu0 0.0
  %546 = vmatpush1.msra.mxu0 0.0
  %547 = vmatprep.subr.mxu0 0.0
  %548 = vmatpush1.msra.mxu0 0.0
  %549 = vmatprep.subr.mxu0 0.0
  %550 = vmatpush1.msra.mxu0 0.0
  %551 = vmatprep.subr.mxu0 0.0
  %552 = vmatpush1.msra.mxu0 0.0
  %553 = vmatprep.subr.mxu0 0.0
  %554 = vmatpush1.msra.mxu0 0.0
  %555 = vmatprep.subr.mxu0 0.0
  %556 = vmatpush1.msra.mxu0 0.0
  %557 = vmatprep.subr.mxu0 0.0
  %558 = vmatpush1.msra.mxu0 0.0
  %559 = vmatprep.subr.mxu0 0.0
  %560 = vmatpush1.msra.mxu0 0.0
  %561 = vmatprep.subr.mxu0 0.0
  %562 = vmatpush1.msra.mxu0 0.0
  %563 = vmatprep.subr.mxu0 0.0
  %564 = vmatpush1.msra.mxu0 %v526
  %565 = vmatprep.subr.mxu0 0.0
  %566 = vmatpush1.msra.mxu0 %v524
  %567 = vmatprep.subr.mxu0 0.0
  %568 = vmatpush2.msra.mxu0 0.0
  %569 = vmatprep.subr.mxu0 0.0
  %570 = vmatpush2.msra.mxu0 0.0
  %571 = vmatprep.subr.mxu0 0.0
  %572 = vmatpush2.msra.mxu0 0.0
  %573 = vmatprep.subr.mxu0 0.0
  %574 = vmatpush2.msra.mxu0 0.0
  %575 = vmatprep.subr.mxu0 0.0
  %576 = vmatpush2.msra.mxu0 0.0
  %577 = vmatprep.subr.mxu0 0.0
  %578 = vmatpush2.msra.mxu0 0.0
  %579 = vmatprep.subr.mxu0 0.0
  %580 = vmatpush2.msra.mxu0 0.0
  %581 = vmatprep.subr.mxu0 0.0
  %582 = vmatpush2.msra.mxu0 0.0
  %583 = vmatprep.subr.mxu0 0.0
  %584 = vmatpush2.msra.mxu0 0.0
  %585 = vmatprep.subr.mxu0 0.0
  %586 = vmatpush2.msra.mxu0 0.0
  %587 = vmatprep.subr.mxu0 0.0
  %588 = vmatpush2.msra.mxu0 0.0
  %589 = vmatprep.subr.mxu0 0.0
  %590 = vmatpush2.msra.mxu0 0.0
  %591 = vmatprep.subr.mxu0 0.0
  %592 = vmatpush2.msra.mxu0 0.0
  %593 = vmatprep.subr.mxu0 0.0
  %594 = vmatpush2.msra.mxu0 0.0
  %595 = vmatprep.subr.mxu0 0.0
  %596 = vmatpush2.msra.mxu0 0.0
  %597 = vmatprep.subr.mxu0 0.0
  %598 = vmatpush2.msra.mxu0 0.0
  %599 = vmatprep.mubr.f32.mxu0 0.0
  %600 = vmatmul.mubr.f32.gmra.mxu0 %v530
  %v601 = vpop.f32.mrf.mxu0
  %v602 = vadd.f32 %v515, %v601
  %v603 = vpop.f32.mrf.mxu0
  %604 = vmatprep.mubr.f32.mxu0 0.0
  %605 = vmatmul.mubr.f32.gmra.mxu0 %v533
  %v606 = vpop.f32.mrf.mxu0
  %v607 = vadd.f32 %v520, %v606
  %v608 = vpop.f32.mrf.mxu0
  %609 = vdwg.mxu0
  %610 = vrot.lane.b32.xlu0 %v198, 112
  %v611 = vpop.permute.xlu0 %610
  %612 = vrot.lane.b32.xlu0 %v199, 112
  %v613 = vpop.permute.xlu0 %612
  %614 = vrot.lane.b32.xlu0 %v198, 80
  %v615 = vpop.permute.xlu0 %614
  %616 = vrot.lane.b32.xlu0 %v199, 80
  %v617 = vpop.permute.xlu0 %616
  %v618 = vsel %vm206, %v611, 0
  %v620 = vsel %vm206, %v613, 0
  %v622 = vsel %vm206, %v615, 0
  %v624 = vsel %vm206, %v617, 0
  %626 = vmatprep.subr.mxu0 0.0
  %627 = vmatpush1.xpose.msra.mxu0 0.0
  %628 = vmatprep.subr.mxu0 0.0
  %629 = vmatpush1.xpose.msra.mxu0 0.0
  %630 = vmatprep.subr.mxu0 0.0
  %631 = vmatpush1.xpose.msra.mxu0 0.0
  %632 = vmatprep.subr.mxu0 0.0
  %633 = vmatpush1.xpose.msra.mxu0 0.0
  %634 = vmatprep.subr.mxu0 0.0
  %635 = vmatpush1.xpose.msra.mxu0 0.0
  %636 = vmatprep.subr.mxu0 0.0
  %637 = vmatpush1.xpose.msra.mxu0 0.0
  %638 = vmatprep.subr.mxu0 0.0
  %639 = vmatpush1.xpose.msra.mxu0 0.0
  %640 = vmatprep.subr.mxu0 0.0
  %641 = vmatpush1.xpose.msra.mxu0 0.0
  %642 = vmatprep.subr.mxu0 0.0
  %643 = vmatpush1.xpose.msra.mxu0 0.0
  %644 = vmatprep.subr.mxu0 0.0
  %645 = vmatpush1.xpose.msra.mxu0 0.0
  %646 = vmatprep.subr.mxu0 0.0
  %647 = vmatpush1.xpose.msra.mxu0 0.0
  %648 = vmatprep.subr.mxu0 0.0
  %649 = vmatpush1.xpose.msra.mxu0 0.0
  %650 = vmatprep.subr.mxu0 0.0
  %651 = vmatpush1.xpose.msra.mxu0 0.0
  %652 = vmatprep.subr.mxu0 0.0
  %653 = vmatpush1.xpose.msra.mxu0 0.0
  %654 = vmatprep.subr.mxu0 0.0
  %655 = vmatpush1.xpose.msra.mxu0 %v624
  %656 = vmatprep.subr.mxu0 0.0
  %657 = vmatpush1.xpose.msra.mxu0 %v622
  %658 = vmatprep.subr.mxu0 0.0
  %659 = vmatpush2.xpose.msra.mxu0 0.0
  %660 = vmatprep.subr.mxu0 0.0
  %661 = vmatpush2.xpose.msra.mxu0 0.0
  %662 = vmatprep.subr.mxu0 0.0
  %663 = vmatpush2.xpose.msra.mxu0 0.0
  %664 = vmatprep.subr.mxu0 0.0
  %665 = vmatpush2.xpose.msra.mxu0 0.0
  %666 = vmatprep.subr.mxu0 0.0
  %667 = vmatpush2.xpose.msra.mxu0 0.0
  %668 = vmatprep.subr.mxu0 0.0
  %669 = vmatpush2.xpose.msra.mxu0 0.0
  %670 = vmatprep.subr.mxu0 0.0
  %671 = vmatpush2.xpose.msra.mxu0 0.0
  %672 = vmatprep.subr.mxu0 0.0
  %673 = vmatpush2.xpose.msra.mxu0 0.0
  %674 = vmatprep.subr.mxu0 0.0
  %675 = vmatpush2.xpose.msra.mxu0 0.0
  %676 = vmatprep.subr.mxu0 0.0
  %677 = vmatpush2.xpose.msra.mxu0 0.0
  %678 = vmatprep.subr.mxu0 0.0
  %679 = vmatpush2.xpose.msra.mxu0 0.0
  %680 = vmatprep.subr.mxu0 0.0
  %681 = vmatpush2.xpose.msra.mxu0 0.0
  %682 = vmatprep.subr.mxu0 0.0
  %683 = vmatpush2.xpose.msra.mxu0 0.0
  %684 = vmatprep.subr.mxu0 0.0
  %685 = vmatpush2.xpose.msra.mxu0 0.0
  %686 = vmatprep.subr.mxu0 0.0
  %687 = vmatpush2.xpose.msra.mxu0 0.0
  %688 = vmatprep.subr.mxu0 0.0
  %689 = vmatpush2.xpose.msra.mxu0 0.0
  %690 = vmatprep.mubr.f32.mxu0 0.0
  %691 = vmatmul.mubr.f32.gmra.mxu0 %v618
  %v692 = vpop.f32.mrf.mxu0
  %v693 = vadd.f32 0.0, %v692
  %v694 = vpop.f32.mrf.mxu0
  %695 = vmatprep.mubr.f32.mxu0 0.0
  %696 = vmatmul.mubr.f32.gmra.mxu0 %v620
  %v697 = vpop.f32.mrf.mxu0
  %v698 = vadd.f32 0.0, %v697
  %v699 = vpop.f32.mrf.mxu0
  %700 = vdwg.mxu0
  %v701 = vmul.f32 %v693, 0.35355338
  %v702 = vmul.f32 %v698, 0.35355338
  %v703 = vadd.f32 %v701, %v50
  %v704 = vadd.f32 %v702, %v51
  %v705 = vsel %vm294, %v703, -inf
  %706 = vmax.xlane.f32.xlu0 %v705
  %v707 = vpop.xlane.xlu0 %706
  %v708 = vsel %vm294, %v704, -inf
  %709 = vmax.xlane.f32.xlu0 %v708
  %v710 = vpop.xlane.xlu0 %709
  %v711 = vsub.f32 %v703, %v707
  %v712 = vsub.f32 %v704, %v710
  %v713 = vmul.f32 %v711, 1.442695
  %v714 = vpow.pop %v713
  %v715 = vmul.f32 %v712, 1.442695
  %v716 = vpow.pop %v715
  %v717 = vsel %vm294, %v714, 0.0
  %718 = vadd.xlane.f32.xlu0 %v717
  %v719 = vpop.xlane.xlu0 %718
  %v720 = vsel %vm294, %v716, 0.0
  %721 = vadd.xlane.f32.xlu0 %v720
  %v722 = vpop.xlane.xlu0 %721
  %v723 = vrcp.pop %v719
  %v724 = vmul.f32 %v714, %v723
  %v725 = vrcp.pop %v722
  %v726 = vmul.f32 %v716, %v725
  %v728 = vsel %vm294, %v724, 0
  %v731 = vsel %vm294, %v726, 0
  %733 = vmatprep.subr.mxu0 0.0
  %734 = vmatpush1.msra.mxu0 0.0
  %735 = vmatprep.subr.mxu0 0.0
  %736 = vmatpush1.msra.mxu0 0.0
  %737 = vmatprep.subr.mxu0 0.0
  %738 = vmatpush1.msra.mxu0 0.0
  %739 = vmatprep.subr.mxu0 0.0
  %740 = vmatpush1.msra.mxu0 0.0
  %741 = vmatprep.subr.mxu0 0.0
  %742 = vmatpush1.msra.mxu0 0.0
  %743 = vmatprep.subr.mxu0 0.0
  %744 = vmatpush1.msra.mxu0 0.0
  %745 = vmatprep.subr.mxu0 0.0
  %746 = vmatpush1.msra.mxu0 0.0
  %747 = vmatprep.subr.mxu0 0.0
  %748 = vmatpush1.msra.mxu0 0.0
  %749 = vmatprep.subr.mxu0 0.0
  %750 = vmatpush1.msra.mxu0 0.0
  %751 = vmatprep.subr.mxu0 0.0
  %752 = vmatpush1.msra.mxu0 0.0
  %753 = vmatprep.subr.mxu0 0.0
  %754 = vmatpush1.msra.mxu0 0.0
  %755 = vmatprep.subr.mxu0 0.0
  %756 = vmatpush1.msra.mxu0 0.0
  %757 = vmatprep.subr.mxu0 0.0
  %758 = vmatpush1.msra.mxu0 0.0
  %759 = vmatprep.subr.mxu0 0.0
  %760 = vmatpush1.msra.mxu0 0.0
  %761 = vmatprep.subr.mxu0 0.0
  %762 = vmatpush1.msra.mxu0 %v189
  %763 = vmatprep.subr.mxu0 0.0
  %764 = vmatpush1.msra.mxu0 %v183
  %765 = vmatprep.subr.mxu0 0.0
  %766 = vmatpush2.msra.mxu0 0.0
  %767 = vmatprep.subr.mxu0 0.0
  %768 = vmatpush2.msra.mxu0 0.0
  %769 = vmatprep.subr.mxu0 0.0
  %770 = vmatpush2.msra.mxu0 0.0
  %771 = vmatprep.subr.mxu0 0.0
  %772 = vmatpush2.msra.mxu0 0.0
  %773 = vmatprep.subr.mxu0 0.0
  %774 = vmatpush2.msra.mxu0 0.0
  %775 = vmatprep.subr.mxu0 0.0
  %776 = vmatpush2.msra.mxu0 0.0
  %777 = vmatprep.subr.mxu0 0.0
  %778 = vmatpush2.msra.mxu0 0.0
  %779 = vmatprep.subr.mxu0 0.0
  %780 = vmatpush2.msra.mxu0 0.0
  %781 = vmatprep.subr.mxu0 0.0
  %782 = vmatpush2.msra.mxu0 0.0
  %783 = vmatprep.subr.mxu0 0.0
  %784 = vmatpush2.msra.mxu0 0.0
  %785 = vmatprep.subr.mxu0 0.0
  %786 = vmatpush2.msra.mxu0 0.0
  %787 = vmatprep.subr.mxu0 0.0
  %788 = vmatpush2.msra.mxu0 0.0
  %789 = vmatprep.subr.mxu0 0.0
  %790 = vmatpush2.msra.mxu0 0.0
  %791 = vmatprep.subr.mxu0 0.0
  %792 = vmatpush2.msra.mxu0 0.0
  %793 = vmatprep.subr.mxu0 0.0
  %794 = vmatpush2.msra.mxu0 0.0
  %795 = vmatprep.subr.mxu0 0.0
  %796 = vmatpush2.msra.mxu0 0.0
  %797 = vmatprep.mubr.f32.mxu0 0.0
  %798 = vmatmul.mubr.f32.gmra.mxu0 %v728
  %v799 = vpop.f32.mrf.mxu0
  %v800 = vadd.f32 0.0, %v799
  %v801 = vpop.f32.mrf.mxu0
  %802 = vmatprep.mubr.f32.mxu0 0.0
  %803 = vmatmul.mubr.f32.gmra.mxu0 %v731
  %v804 = vpop.f32.mrf.mxu0
  %v805 = vadd.f32 0.0, %v804
  %v806 = vpop.f32.mrf.mxu0
  %807 = vdwg.mxu0
  %v808 = vadd.f32 %v602, %v800
  %v809 = vadd.f32 %v607, %v805
  %810 = vrot.lane.b32.xlu0 %v198, 104
  %v811 = vpop.permute.xlu0 %810
  %812 = vrot.lane.b32.xlu0 %v199, 104
  %v813 = vpop.permute.xlu0 %812
  %814 = vrot.lane.b32.xlu0 %v198, 72
  %v815 = vpop.permute.xlu0 %814
  %816 = vrot.lane.b32.xlu0 %v199, 72
  %v817 = vpop.permute.xlu0 %816
  %v818 = vsel %vm206, %v811, 0
  %v820 = vsel %vm206, %v813, 0
  %v822 = vsel %vm206, %v815, 0
  %v824 = vsel %vm206, %v817, 0
  %826 = vmatprep.subr.mxu0 0.0
  %827 = vmatpush1.xpose.msra.mxu0 0.0
  %828 = vmatprep.subr.mxu0 0.0
  %829 = vmatpush1.xpose.msra.mxu0 0.0
  %830 = vmatprep.subr.mxu0 0.0
  %831 = vmatpush1.xpose.msra.mxu0 0.0
  %832 = vmatprep.subr.mxu0 0.0
  %833 = vmatpush1.xpose.msra.mxu0 0.0
  %834 = vmatprep.subr.mxu0 0.0
  %835 = vmatpush1.xpose.msra.mxu0 0.0
  %836 = vmatprep.subr.mxu0 0.0
  %837 = vmatpush1.xpose.msra.mxu0 0.0
  %838 = vmatprep.subr.mxu0 0.0
  %839 = vmatpush1.xpose.msra.mxu0 0.0
  %840 = vmatprep.subr.mxu0 0.0
  %841 = vmatpush1.xpose.msra.mxu0 0.0
  %842 = vmatprep.subr.mxu0 0.0
  %843 = vmatpush1.xpose.msra.mxu0 0.0
  %844 = vmatprep.subr.mxu0 0.0
  %845 = vmatpush1.xpose.msra.mxu0 0.0
  %846 = vmatprep.subr.mxu0 0.0
  %847 = vmatpush1.xpose.msra.mxu0 0.0
  %848 = vmatprep.subr.mxu0 0.0
  %849 = vmatpush1.xpose.msra.mxu0 0.0
  %850 = vmatprep.subr.mxu0 0.0
  %851 = vmatpush1.xpose.msra.mxu0 0.0
  %852 = vmatprep.subr.mxu0 0.0
  %853 = vmatpush1.xpose.msra.mxu0 0.0
  %854 = vmatprep.subr.mxu0 0.0
  %855 = vmatpush1.xpose.msra.mxu0 %v824
  %856 = vmatprep.subr.mxu0 0.0
  %857 = vmatpush1.xpose.msra.mxu0 %v822
  %858 = vmatprep.subr.mxu0 0.0
  %859 = vmatpush2.xpose.msra.mxu0 0.0
  %860 = vmatprep.subr.mxu0 0.0
  %861 = vmatpush2.xpose.msra.mxu0 0.0
  %862 = vmatprep.subr.mxu0 0.0
  %863 = vmatpush2.xpose.msra.mxu0 0.0
  %864 = vmatprep.subr.mxu0 0.0
  %865 = vmatpush2.xpose.msra.mxu0 0.0
  %866 = vmatprep.subr.mxu0 0.0
  %867 = vmatpush2.xpose.msra.mxu0 0.0
  %868 = vmatprep.subr.mxu0 0.0
  %869 = vmatpush2.xpose.msra.mxu0 0.0
  %870 = vmatprep.subr.mxu0 0.0
  %871 = vmatpush2.xpose.msra.mxu0 0.0
  %872 = vmatprep.subr.mxu0 0.0
  %873 = vmatpush2.xpose.msra.mxu0 0.0
  %874 = vmatprep.subr.mxu0 0.0
  %875 = vmatpush2.xpose.msra.mxu0 0.0
  %876 = vmatprep.subr.mxu0 0.0
  %877 = vmatpush2.xpose.msra.mxu0 0.0
  %878 = vmatprep.subr.mxu0 0.0
  %879 = vmatpush2.xpose.msra.mxu0 0.0
  %880 = vmatprep.subr.mxu0 0.0
  %881 = vmatpush2.xpose.msra.mxu0 0.0
  %882 = vmatprep.subr.mxu0 0.0
  %883 = vmatpush2.xpose.msra.mxu0 0.0
  %884 = vmatprep.subr.mxu0 0.0
  %885 = vmatpush2.xpose.msra.mxu0 0.0
  %886 = vmatprep.subr.mxu0 0.0
  %887 = vmatpush2.xpose.msra.mxu0 0.0
  %888 = vmatprep.subr.mxu0 0.0
  %889 = vmatpush2.xpose.msra.mxu0 0.0
  %890 = vmatprep.mubr.f32.mxu0 0.0
  %891 = vmatmul.mubr.f32.gmra.mxu0 %v818
  %v892 = vpop.f32.mrf.mxu0
  %v893 = vadd.f32 0.0, %v892
  %v894 = vpop.f32.mrf.mxu0
  %895 = vmatprep.mubr.f32.mxu0 0.0
  %896 = vmatmul.mubr.f32.gmra.mxu0 %v820
  %v897 = vpop.f32.mrf.mxu0
  %v898 = vadd.f32 0.0, %v897
  %v899 = vpop.f32.mrf.mxu0
  %900 = vdwg.mxu0
  %v901 = vmul.f32 %v893, 0.35355338
  %v902 = vmul.f32 %v898, 0.35355338
  %v903 = vadd.f32 %v901, %v50
  %v904 = vadd.f32 %v902, %v51
  %v905 = vsel %vm294, %v903, -inf
  %906 = vmax.xlane.f32.xlu0 %v905
  %v907 = vpop.xlane.xlu0 %906
  %v908 = vsel %vm294, %v904, -inf
  %909 = vmax.xlane.f32.xlu0 %v908
  %v910 = vpop.xlane.xlu0 %909
  %v911 = vsub.f32 %v903, %v907
  %v912 = vsub.f32 %v904, %v910
  %v913 = vmul.f32 %v911, 1.442695
  %v914 = vpow.pop %v913
  %v915 = vmul.f32 %v912, 1.442695
  %v916 = vpow.pop %v915
  %v917 = vsel %vm294, %v914, 0.0
  %918 = vadd.xlane.f32.xlu0 %v917
  %v919 = vpop.xlane.xlu0 %918
  %v920 = vsel %vm294, %v916, 0.0
  %921 = vadd.xlane.f32.xlu0 %v920
  %v922 = vpop.xlane.xlu0 %921
  %v923 = vrcp.pop %v919
  %v924 = vmul.f32 %v914, %v923
  %v925 = vrcp.pop %v922
  %v926 = vmul.f32 %v916, %v925
  %929 = vrot.lane.b32.xlu0 %v183, 96
  %v930 = vpop.permute.xlu0 %929
  %931 = vrot.lane.b32.xlu0 %v189, 96
  %v932 = vpop.permute.xlu0 %931
  %v936 = vsel %vm294, %v924, 0
  %v939 = vsel %vm294, %v926, 0
  %941 = vmatprep.subr.mxu0 0.0
  %942 = vmatpush1.msra.mxu0 0.0
  %943 = vmatprep.subr.mxu0 0.0
  %944 = vmatpush1.msra.mxu0 0.0
  %945 = vmatprep.subr.mxu0 0.0
  %946 = vmatpush1.msra.mxu0 0.0
  %947 = vmatprep.subr.mxu0 0.0
  %948 = vmatpush1.msra.mxu0 0.0
  %949 = vmatprep.subr.mxu0 0.0
  %950 = vmatpush1.msra.mxu0 0.0
  %951 = vmatprep.subr.mxu0 0.0
  %952 = vmatpush1.msra.mxu0 0.0
  %953 = vmatprep.subr.mxu0 0.0
  %954 = vmatpush1.msra.mxu0 0.0
  %955 = vmatprep.subr.mxu0 0.0
  %956 = vmatpush1.msra.mxu0 0.0
  %957 = vmatprep.subr.mxu0 0.0
  %958 = vmatpush1.msra.mxu0 0.0
  %959 = vmatprep.subr.mxu0 0.0
  %960 = vmatpush1.msra.mxu0 0.0
  %961 = vmatprep.subr.mxu0 0.0
  %962 = vmatpush1.msra.mxu0 0.0
  %963 = vmatprep.subr.mxu0 0.0
  %964 = vmatpush1.msra.mxu0 0.0
  %965 = vmatprep.subr.mxu0 0.0
  %966 = vmatpush1.msra.mxu0 0.0
  %967 = vmatprep.subr.mxu0 0.0
  %968 = vmatpush1.msra.mxu0 0.0
  %969 = vmatprep.subr.mxu0 0.0
  %970 = vmatpush1.msra.mxu0 %v932
  %971 = vmatprep.subr.mxu0 0.0
  %972 = vmatpush1.msra.mxu0 %v930
  %973 = vmatprep.subr.mxu0 0.0
  %974 = vmatpush2.msra.mxu0 0.0
  %975 = vmatprep.subr.mxu0 0.0
  %976 = vmatpush2.msra.mxu0 0.0
  %977 = vmatprep.subr.mxu0 0.0
  %978 = vmatpush2.msra.mxu0 0.0
  %979 = vmatprep.subr.mxu0 0.0
  %980 = vmatpush2.msra.mxu0 0.0
  %981 = vmatprep.subr.mxu0 0.0
  %982 = vmatpush2.msra.mxu0 0.0
  %983 = vmatprep.subr.mxu0 0.0
  %984 = vmatpush2.msra.mxu0 0.0
  %985 = vmatprep.subr.mxu0 0.0
  %986 = vmatpush2.msra.mxu0 0.0
  %987 = vmatprep.subr.mxu0 0.0
  %988 = vmatpush2.msra.mxu0 0.0
  %989 = vmatprep.subr.mxu0 0.0
  %990 = vmatpush2.msra.mxu0 0.0
  %991 = vmatprep.subr.mxu0 0.0
  %992 = vmatpush2.msra.mxu0 0.0
  %993 = vmatprep.subr.mxu0 0.0
  %994 = vmatpush2.msra.mxu0 0.0
  %995 = vmatprep.subr.mxu0 0.0
  %996 = vmatpush2.msra.mxu0 0.0
  %997 = vmatprep.subr.mxu0 0.0
  %998 = vmatpush2.msra.mxu0 0.0
  %999 = vmatprep.subr.mxu0 0.0
  %1000 = vmatpush2.msra.mxu0 0.0
  %1001 = vmatprep.subr.mxu0 0.0
  %1002 = vmatpush2.msra.mxu0 0.0
  %1003 = vmatprep.subr.mxu0 0.0
  %1004 = vmatpush2.msra.mxu0 0.0
  %1005 = vmatprep.mubr.f32.mxu0 0.0
  %1006 = vmatmul.mubr.f32.gmra.mxu0 %v936
  %v1007 = vpop.f32.mrf.mxu0
  %v1008 = vadd.f32 0.0, %v1007
  %v1009 = vpop.f32.mrf.mxu0
  %1010 = vmatprep.mubr.f32.mxu0 0.0
  %1011 = vmatmul.mubr.f32.gmra.mxu0 %v939
  %v1012 = vpop.f32.mrf.mxu0
  %v1013 = vadd.f32 0.0, %v1012
  %v1014 = vpop.f32.mrf.mxu0
  %1015 = vdwg.mxu0
  %v1016 = vadd.f32 %v808, %v1008
  %v1017 = vadd.f32 %v809, %v1013
  %v1018 = vld [vmem:[%s6] sm:$0x1]
  %v1020 = vlaneseq
  %v1021 = vshrl.u32 %v1020, 7
  %v1022 = vsub.s32 0, %v1021
  %v1023 = vrot.slane %v1018, %v1022
  %v1025 = vadd.f32 %v1016, %v1023
  %v1026 = vadd.f32 %v1017, %v1023
  %v1027 = vadd.f32 %v1025, %v98
  %v1028 = vadd.f32 %v1026, %v99
  %v1029 = vld [vmem:[%s7] sm:$0x1]
  %v1030 = vld [vmem:[%s8] sm:$0x1]
  %v1031 = vsel %vm56, %v1027, 0.0
  %1032 = vadd.xlane.f32.xlu0 %v1031
  %v1033 = vpop.xlane.xlu0 %1032
  %v1034 = vsel %vm56, %v1028, 0.0
  %1035 = vadd.xlane.f32.xlu0 %v1034
  %v1036 = vpop.xlane.xlu0 %1035
  %v1037 = vmul.f32 %v1033, %v63
  %v1038 = vmul.f32 %v1036, %v63
  %v1039 = vsub.f32 %v1027, %v1037
  %v1040 = vsub.f32 %v1028, %v1038
  %v1041 = vmul.f32 %v1039, %v1039
  %v1042 = vmul.f32 %v1040, %v1040
  %v1043 = vsel %vm56, %v1041, 0.0
  %1044 = vadd.xlane.f32.xlu0 %v1043
  %v1045 = vpop.xlane.xlu0 %1044
  %v1046 = vsel %vm56, %v1042, 0.0
  %1047 = vadd.xlane.f32.xlu0 %v1046
  %v1048 = vpop.xlane.xlu0 %1047
  %v1049 = vmul.f32 %v1045, %v63
  %v1050 = vmul.f32 %v1048, %v63
  %v1051 = vadd.f32 %v1049, 1e-05
  %v1052 = vadd.f32 %v1050, 1e-05
  %v1053 = vrsqrt.pop %v1051
  %v1054 = vrsqrt.pop %v1052
  %v1055 = vmul.f32 %v1039, %v1053
  %v1056 = vmul.f32 %v1040, %v1054
  %v1058 = vlaneseq
  %v1059 = vshrl.u32 %v1058, 7
  %v1060 = vsub.s32 0, %v1059
  %v1061 = vrot.slane %v1029, %v1060
  %v1063 = vmul.f32 %v1055, %v1061
  %v1064 = vmul.f32 %v1056, %v1061
  %v1066 = vlaneseq
  %v1067 = vshrl.u32 %v1066, 7
  %v1068 = vsub.s32 0, %v1067
  %v1069 = vrot.slane %v1030, %v1068
  %v1071 = vadd.f32 %v1063, %v1069
  %v1072 = vadd.f32 %v1064, %v1069
  %v1073 = vld [vmem:[%s9] sm:$0xff]
  %v1074 = vld [vmem:[%s9 + $0x8] sm:$0xff]
  %v1075 = vld [vmem:[%s9 + $0x10] sm:$0xff]
  %v1076 = vld [vmem:[%s9 + $0x18] sm:$0xff]
  %v1077 = vld [vmem:[%s10] sm:$0x1]
  %v1079 = vlaneseq
  %v1080 = vshrl.u32 %v1079, 7
  %v1081 = vsub.s32 0, %v1080
  %v1082 = vrot.slane %v1077, %v1081
  %v1085 = vsel %vm56, %v1071, 0
  %v1088 = vsel %vm56, %v1072, 0
  %1090 = vmatprep.subr.mxu0 0.0
  %1091 = vmatpush1.msra.mxu0 0.0
  %1092 = vmatprep.subr.mxu0 0.0
  %1093 = vmatpush1.msra.mxu0 0.0
  %1094 = vmatprep.subr.mxu0 0.0
  %1095 = vmatpush1.msra.mxu0 0.0
  %1096 = vmatprep.subr.mxu0 0.0
  %1097 = vmatpush1.msra.mxu0 0.0
  %1098 = vmatprep.subr.mxu0 0.0
  %1099 = vmatpush1.msra.mxu0 0.0
  %1100 = vmatprep.subr.mxu0 0.0
  %1101 = vmatpush1.msra.mxu0 0.0
  %1102 = vmatprep.subr.mxu0 0.0
  %1103 = vmatpush1.msra.mxu0 0.0
  %1104 = vmatprep.subr.mxu0 0.0
  %1105 = vmatpush1.msra.mxu0 0.0
  %1106 = vmatprep.subr.mxu0 0.0
  %1107 = vmatpush1.msra.mxu0 0.0
  %1108 = vmatprep.subr.mxu0 0.0
  %1109 = vmatpush1.msra.mxu0 0.0
  %1110 = vmatprep.subr.mxu0 0.0
  %1111 = vmatpush1.msra.mxu0 0.0
  %1112 = vmatprep.subr.mxu0 0.0
  %1113 = vmatpush1.msra.mxu0 0.0
  %1114 = vmatprep.subr.mxu0 0.0
  %1115 = vmatpush1.msra.mxu0 %v1076
  %1116 = vmatprep.subr.mxu0 0.0
  %1117 = vmatpush1.msra.mxu0 %v1075
  %1118 = vmatprep.subr.mxu0 0.0
  %1119 = vmatpush1.msra.mxu0 %v1074
  %1120 = vmatprep.subr.mxu0 0.0
  %1121 = vmatpush1.msra.mxu0 %v1073
  %1122 = vmatprep.subr.mxu0 0.0
  %1123 = vmatpush2.msra.mxu0 0.0
  %1124 = vmatprep.subr.mxu0 0.0
  %1125 = vmatpush2.msra.mxu0 0.0
  %1126 = vmatprep.subr.mxu0 0.0
  %1127 = vmatpush2.msra.mxu0 0.0
  %1128 = vmatprep.subr.mxu0 0.0
  %1129 = vmatpush2.msra.mxu0 0.0
  %1130 = vmatprep.subr.mxu0 0.0
  %1131 = vmatpush2.msra.mxu0 0.0
  %1132 = vmatprep.subr.mxu0 0.0
  %1133 = vmatpush2.msra.mxu0 0.0
  %1134 = vmatprep.subr.mxu0 0.0
  %1135 = vmatpush2.msra.mxu0 0.0
  %1136 = vmatprep.subr.mxu0 0.0
  %1137 = vmatpush2.msra.mxu0 0.0
  %1138 = vmatprep.subr.mxu0 0.0
  %1139 = vmatpush2.msra.mxu0 0.0
  %1140 = vmatprep.subr.mxu0 0.0
  %1141 = vmatpush2.msra.mxu0 0.0
  %1142 = vmatprep.subr.mxu0 0.0
  %1143 = vmatpush2.msra.mxu0 0.0
  %1144 = vmatprep.subr.mxu0 0.0
  %1145 = vmatpush2.msra.mxu0 0.0
  %1146 = vmatprep.subr.mxu0 0.0
  %1147 = vmatpush2.msra.mxu0 0.0
  %1148 = vmatprep.subr.mxu0 0.0
  %1149 = vmatpush2.msra.mxu0 0.0
  %1150 = vmatprep.subr.mxu0 0.0
  %1151 = vmatpush2.msra.mxu0 0.0
  %1152 = vmatprep.subr.mxu0 0.0
  %1153 = vmatpush2.msra.mxu0 0.0
  %1154 = vmatprep.mubr.f32.mxu0 0.0
  %1155 = vmatmul.mubr.f32.gmra.mxu0 %v1085
  %v1156 = vpop.f32.mrf.mxu0
  %v1157 = vadd.f32 %v1082, %v1156
  %v1158 = vpop.f32.mrf.mxu0
  %1159 = vmatprep.mubr.f32.mxu0 0.0
  %1160 = vmatmul.mubr.f32.gmra.mxu0 %v1088
  %v1161 = vpop.f32.mrf.mxu0
  %v1162 = vadd.f32 %v1082, %v1161
  %v1163 = vpop.f32.mrf.mxu0
  %1164 = vdwg.mxu0
  %v1165 = vmul.f32 %v1157, 0.5
  %v1166 = vmul.f32 %v1162, 0.5
  %v1167 = vmul.f32 %v1157, 0.70710677
  %v1168 = vmul.f32 %v1162, 0.70710677
  %v1169 = verf.f32.pop %v1167
  %v1170 = verf.f32.pop %v1168
  %v1171 = vadd.f32 %v1169, 1.0
  %v1172 = vadd.f32 %v1170, 1.0
  %v1173 = vmul.f32 %v1165, %v1171
  %v1174 = vmul.f32 %v1166, %v1172
  %v1175 = vld [vmem:[%s11] sm:$0xff]
  %v1176 = vld [vmem:[%s11 + $0x8] sm:$0xff]
  %v1177 = vld [vmem:[%s11 + $0x10] sm:$0xff]
  %v1178 = vld [vmem:[%s11 + $0x18] sm:$0xff]
  %v1179 = vld [vmem:[%s11 + $0x20] sm:$0xff]
  %v1180 = vld [vmem:[%s11 + $0x28] sm:$0xff]
  %v1181 = vld [vmem:[%s11 + $0x30] sm:$0xff]
  %v1182 = vld [vmem:[%s11 + $0x38] sm:$0xff]
  %v1183 = vld [vmem:[%s12] sm:$0x1]
  %v1185 = vlaneseq
  %v1186 = vshrl.u32 %v1185, 7
  %v1187 = vsub.s32 0, %v1186
  %v1188 = vrot.slane %v1183, %v1187
  %vm1190 = vcmask 523264
  %v1192 = vsel %vm1190, %v1173, 0
  %v1195 = vsel %vm1190, %v1174, 0
  %1197 = vmatprep.subr.mxu0 0.0
  %1198 = vmatpush1.msra.mxu0 0.0
  %1199 = vmatprep.subr.mxu0 0.0
  %1200 = vmatpush1.msra.mxu0 0.0
  %1201 = vmatprep.subr.mxu0 0.0
  %1202 = vmatpush1.msra.mxu0 0.0
  %1203 = vmatprep.subr.mxu0 0.0
  %1204 = vmatpush1.msra.mxu0 0.0
  %1205 = vmatprep.subr.mxu0 0.0
  %1206 = vmatpush1.msra.mxu0 0.0
  %1207 = vmatprep.subr.mxu0 0.0
  %1208 = vmatpush1.msra.mxu0 0.0
  %1209 = vmatprep.subr.mxu0 0.0
  %1210 = vmatpush1.msra.mxu0 0.0
  %1211 = vmatprep.subr.mxu0 0.0
  %1212 = vmatpush1.msra.mxu0 0.0
  %1213 = vmatprep.subr.mxu0 0.0
  %1214 = vmatpush1.msra.mxu0 %v1182
  %1215 = vmatprep.subr.mxu0 0.0
  %1216 = vmatpush1.msra.mxu0 %v1181
  %1217 = vmatprep.subr.mxu0 0.0
  %1218 = vmatpush1.msra.mxu0 %v1180
  %1219 = vmatprep.subr.mxu0 0.0
  %1220 = vmatpush1.msra.mxu0 %v1179
  %1221 = vmatprep.subr.mxu0 0.0
  %1222 = vmatpush1.msra.mxu0 %v1178
  %1223 = vmatprep.subr.mxu0 0.0
  %1224 = vmatpush1.msra.mxu0 %v1177
  %1225 = vmatprep.subr.mxu0 0.0
  %1226 = vmatpush1.msra.mxu0 %v1176
  %1227 = vmatprep.subr.mxu0 0.0
  %1228 = vmatpush1.msra.mxu0 %v1175
  %1229 = vmatprep.subr.mxu0 0.0
  %1230 = vmatpush2.msra.mxu0 0.0
  %1231 = vmatprep.subr.mxu0 0.0
  %1232 = vmatpush2.msra.mxu0 0.0
  %1233 = vmatprep.subr.mxu0 0.0
  %1234 = vmatpush2.msra.mxu0 0.0
  %1235 = vmatprep.subr.mxu0 0.0
  %1236 = vmatpush2.msra.mxu0 0.0
  %1237 = vmatprep.subr.mxu0 0.0
  %1238 = vmatpush2.msra.mxu0 0.0
  %1239 = vmatprep.subr.mxu0 0.0
  %1240 = vmatpush2.msra.mxu0 0.0
  %1241 = vmatprep.subr.mxu0 0.0
  %1242 = vmatpush2.msra.mxu0 0.0
  %1243 = vmatprep.subr.mxu0 0.0
  %1244 = vmatpush2.msra.mxu0 0.0
  %1245 = vmatprep.subr.mxu0 0.0
  %1246 = vmatpush2.msra.mxu0 0.0
  %1247 = vmatprep.subr.mxu0 0.0
  %1248 = vmatpush2.msra.mxu0 0.0
  %1249 = vmatprep.subr.mxu0 0.0
  %1250 = vmatpush2.msra.mxu0 0.0
  %1251 = vmatprep.subr.mxu0 0.0
  %1252 = vmatpush2.msra.mxu0 0.0
  %1253 = vmatprep.subr.mxu0 0.0
  %1254 = vmatpush2.msra.mxu0 0.0
  %1255 = vmatprep.subr.mxu0 0.0
  %1256 = vmatpush2.msra.mxu0 0.0
  %1257 = vmatprep.subr.mxu0 0.0
  %1258 = vmatpush2.msra.mxu0 0.0
  %1259 = vmatprep.subr.mxu0 0.0
  %1260 = vmatpush2.msra.mxu0 0.0
  %1261 = vmatprep.mubr.f32.mxu0 0.0
  %1262 = vmatmul.mubr.f32.gmra.mxu0 %v1192
  %v1263 = vpop.f32.mrf.mxu0
  %v1264 = vadd.f32 %v1188, %v1263
  %v1265 = vpop.f32.mrf.mxu0
  %1266 = vmatprep.mubr.f32.mxu0 0.0
  %1267 = vmatmul.mubr.f32.gmra.mxu0 %v1195
  %v1268 = vpop.f32.mrf.mxu0
  %v1269 = vadd.f32 %v1188, %v1268
  %v1270 = vpop.f32.mrf.mxu0
  %1271 = vdwg.mxu0
  %v1272 = vadd.f32 %v1264, %v1071
  %v1273 = vadd.f32 %v1269, %v1072
  %v1274 = vld [vmem:[%s13] sm:$0x1]
  %v1275 = vld [vmem:[%s14] sm:$0x1]
  %v1276 = vsel %vm56, %v1272, 0.0
  %1277 = vadd.xlane.f32.xlu0 %v1276
  %v1278 = vpop.xlane.xlu0 %1277
  %v1279 = vsel %vm56, %v1273, 0.0
  %1280 = vadd.xlane.f32.xlu0 %v1279
  %v1281 = vpop.xlane.xlu0 %1280
  %v1282 = vmul.f32 %v1278, %v63
  %v1283 = vmul.f32 %v1281, %v63
  %v1284 = vsub.f32 %v1272, %v1282
  %v1285 = vsub.f32 %v1273, %v1283
  %v1286 = vmul.f32 %v1284, %v1284
  %v1287 = vmul.f32 %v1285, %v1285
  %v1288 = vsel %vm56, %v1286, 0.0
  %1289 = vadd.xlane.f32.xlu0 %v1288
  %v1290 = vpop.xlane.xlu0 %1289
  %v1291 = vsel %vm56, %v1287, 0.0
  %1292 = vadd.xlane.f32.xlu0 %v1291
  %v1293 = vpop.xlane.xlu0 %1292
  %v1294 = vmul.f32 %v1290, %v63
  %v1295 = vmul.f32 %v1293, %v63
  %v1296 = vadd.f32 %v1294, 1e-05
  %v1297 = vadd.f32 %v1295, 1e-05
  %v1298 = vrsqrt.pop %v1296
  %v1299 = vrsqrt.pop %v1297
  %v1300 = vmul.f32 %v1284, %v1298
  %v1301 = vmul.f32 %v1285, %v1299
  %v1303 = vlaneseq
  %v1304 = vshrl.u32 %v1303, 7
  %v1305 = vsub.s32 0, %v1304
  %v1306 = vrot.slane %v1274, %v1305
  %v1308 = vmul.f32 %v1300, %v1306
  %v1309 = vmul.f32 %v1301, %v1306
  %v1311 = vlaneseq
  %v1312 = vshrl.u32 %v1311, 7
  %v1313 = vsub.s32 0, %v1312
  %v1314 = vrot.slane %v1275, %v1313
  %v1316 = vadd.f32 %v1308, %v1314
  %v1317 = vadd.f32 %v1309, %v1314
  %s1318 = scalar_lea.vmem %s4, 64
  %v1319 = vld [vmem:[%s1318] sm:$0xff]
  %v1320 = vld [vmem:[%s1318 + $0x8] sm:$0xff]
  %v1321 = vld [vmem:[%s1318 + $0x10] sm:$0xff]
  %v1322 = vld [vmem:[%s1318 + $0x18] sm:$0xff]
  %v1323 = vld [vmem:[%s1318 + $0x20] sm:$0xff]
  %v1324 = vld [vmem:[%s1318 + $0x28] sm:$0xff]
  %v1325 = vld [vmem:[%s1318 + $0x30] sm:$0xff]
  %v1326 = vld [vmem:[%s1318 + $0x38] sm:$0xff]
  %v1328 = vsel %vm56, %v1316, 0
  %v1331 = vsel %vm56, %v1317, 0
  %1333 = vmatprep.subr.mxu0 0.0
  %1334 = vmatpush1.msra.mxu0 0.0
  %1335 = vmatprep.subr.mxu0 0.0
  %1336 = vmatpush1.msra.mxu0 0.0
  %1337 = vmatprep.subr.mxu0 0.0
  %1338 = vmatpush1.msra.mxu0 0.0
  %1339 = vmatprep.subr.mxu0 0.0
  %1340 = vmatpush1.msra.mxu0 0.0
  %1341 = vmatprep.subr.mxu0 0.0
  %1342 = vmatpush1.msra.mxu0 0.0
  %1343 = vmatprep.subr.mxu0 0.0
  %1344 = vmatpush1.msra.mxu0 0.0
  %1345 = vmatprep.subr.mxu0 0.0
  %1346 = vmatpush1.msra.mxu0 0.0
  %1347 = vmatprep.subr.mxu0 0.0
  %1348 = vmatpush1.msra.mxu0 0.0
  %1349 = vmatprep.subr.mxu0 0.0
  %1350 = vmatpush1.msra.mxu0 0.0
  %1351 = vmatprep.subr.mxu0 0.0
  %1352 = vmatpush1.msra.mxu0 0.0
  %1353 = vmatprep.subr.mxu0 0.0
  %1354 = vmatpush1.msra.mxu0 0.0
  %1355 = vmatprep.subr.mxu0 0.0
  %1356 = vmatpush1.msra.mxu0 0.0
  %1357 = vmatprep.subr.mxu0 %v1326
  %1358 = vmatpush1.msra.mxu0 %v1325
  %1359 = vmatprep.subr.mxu0 %v1324
  %1360 = vmatpush1.msra.mxu0 %v1323
  %1361 = vmatprep.subr.mxu0 %v1322
  %1362 = vmatpush1.msra.mxu0 %v1321
  %1363 = vmatprep.subr.mxu0 %v1320
  %1364 = vmatpush1.msra.mxu0 %v1319
  %1365 = vmatprep.subr.mxu0 0.0
  %1366 = vmatpush2.msra.mxu0 0.0
  %1367 = vmatprep.subr.mxu0 0.0
  %1368 = vmatpush2.msra.mxu0 0.0
  %1369 = vmatprep.subr.mxu0 0.0
  %1370 = vmatpush2.msra.mxu0 0.0
  %1371 = vmatprep.subr.mxu0 0.0
  %1372 = vmatpush2.msra.mxu0 0.0
  %1373 = vmatprep.subr.mxu0 0.0
  %1374 = vmatpush2.msra.mxu0 0.0
  %1375 = vmatprep.subr.mxu0 0.0
  %1376 = vmatpush2.msra.mxu0 0.0
  %1377 = vmatprep.subr.mxu0 0.0
  %1378 = vmatpush2.msra.mxu0 0.0
  %1379 = vmatprep.subr.mxu0 0.0
  %1380 = vmatpush2.msra.mxu0 0.0
  %1381 = vmatprep.subr.mxu0 0.0
  %1382 = vmatpush2.msra.mxu0 0.0
  %1383 = vmatprep.subr.mxu0 0.0
  %1384 = vmatpush2.msra.mxu0 0.0
  %1385 = vmatprep.subr.mxu0 0.0
  %1386 = vmatpush2.msra.mxu0 0.0
  %1387 = vmatprep.subr.mxu0 0.0
  %1388 = vmatpush2.msra.mxu0 0.0
  %1389 = vmatprep.subr.mxu0 0.0
  %1390 = vmatpush2.msra.mxu0 0.0
  %1391 = vmatprep.subr.mxu0 0.0
  %1392 = vmatpush2.msra.mxu0 0.0
  %1393 = vmatprep.subr.mxu0 0.0
  %1394 = vmatpush2.msra.mxu0 0.0
  %1395 = vmatprep.subr.mxu0 0.0
  %1396 = vmatpush2.msra.mxu0 0.0
  %1397 = vmatprep.mubr.f32.mxu0 0.0
  %1398 = vmatmul.mubr.f32.gmra.mxu0 %v1328
  %v1399 = vpop.f32.mrf.mxu0
  %v1400 = vadd.f32 0.0, %v1399
  %v1401 = vpop.f32.mrf.mxu0
  %v1402 = vadd.f32 0.0, %v1401
  %1403 = vmatprep.mubr.f32.mxu0 0.0
  %1404 = vmatmul.mubr.f32.gmra.mxu0 %v1331
  %v1405 = vpop.f32.mrf.mxu0
  %v1406 = vadd.f32 0.0, %v1405
  %v1407 = vpop.f32.mrf.mxu0
  %v1408 = vadd.f32 0.0, %v1407
  %1409 = vdwg.mxu0
  %s1410 = scalar_lea.vmem %s5, 1
  %v1411 = vld [vmem:[%s1410] sm:$0x1]
  %v1413 = vlaneseq
  %v1414 = vshrl.u32 %v1413, 7
  %v1415 = vsub.s32 0, %v1414
  %v1416 = vrot.slane %v1411, %v1415
  %v1418 = vadd.f32 %v1400, %v1416
  %v1419 = vadd.f32 %v1406, %v1416
  %1422 = vrot.lane.b32.xlu0 %v1418, 96
  %v1423 = vpop.permute.xlu0 %1422
  %1424 = vrot.lane.b32.xlu0 %v1419, 96
  %v1425 = vpop.permute.xlu0 %1424
  %v1426 = vsel %vm206, %v1418, 0
  %v1428 = vsel %vm206, %v1419, 0
  %v1430 = vsel %vm206, %v1423, 0
  %v1432 = vsel %vm206, %v1425, 0
  %1434 = vmatprep.subr.mxu0 0.0
  %1435 = vmatpush1.xpose.msra.mxu0 0.0
  %1436 = vmatprep.subr.mxu0 0.0
  %1437 = vmatpush1.xpose.msra.mxu0 0.0
  %1438 = vmatprep.subr.mxu0 0.0
  %1439 = vmatpush1.xpose.msra.mxu0 0.0
  %1440 = vmatprep.subr.mxu0 0.0
  %1441 = vmatpush1.xpose.msra.mxu0 0.0
  %1442 = vmatprep.subr.mxu0 0.0
  %1443 = vmatpush1.xpose.msra.mxu0 0.0
  %1444 = vmatprep.subr.mxu0 0.0
  %1445 = vmatpush1.xpose.msra.mxu0 0.0
  %1446 = vmatprep.subr.mxu0 0.0
  %1447 = vmatpush1.xpose.msra.mxu0 0.0
  %1448 = vmatprep.subr.mxu0 0.0
  %1449 = vmatpush1.xpose.msra.mxu0 0.0
  %1450 = vmatprep.subr.mxu0 0.0
  %1451 = vmatpush1.xpose.msra.mxu0 0.0
  %1452 = vmatprep.subr.mxu0 0.0
  %1453 = vmatpush1.xpose.msra.mxu0 0.0
  %1454 = vmatprep.subr.mxu0 0.0
  %1455 = vmatpush1.xpose.msra.mxu0 0.0
  %1456 = vmatprep.subr.mxu0 0.0
  %1457 = vmatpush1.xpose.msra.mxu0 0.0
  %1458 = vmatprep.subr.mxu0 0.0
  %1459 = vmatpush1.xpose.msra.mxu0 0.0
  %1460 = vmatprep.subr.mxu0 0.0
  %1461 = vmatpush1.xpose.msra.mxu0 0.0
  %1462 = vmatprep.subr.mxu0 0.0
  %1463 = vmatpush1.xpose.msra.mxu0 %v1432
  %1464 = vmatprep.subr.mxu0 0.0
  %1465 = vmatpush1.xpose.msra.mxu0 %v1430
  %1466 = vmatprep.subr.mxu0 0.0
  %1467 = vmatpush2.xpose.msra.mxu0 0.0
  %1468 = vmatprep.subr.mxu0 0.0
  %1469 = vmatpush2.xpose.msra.mxu0 0.0
  %1470 = vmatprep.subr.mxu0 0.0
  %1471 = vmatpush2.xpose.msra.mxu0 0.0
  %1472 = vmatprep.subr.mxu0 0.0
  %1473 = vmatpush2.xpose.msra.mxu0 0.0
  %1474 = vmatprep.subr.mxu0 0.0
  %1475 = vmatpush2.xpose.msra.mxu0 0.0
  %1476 = vmatprep.subr.mxu0 0.0
  %1477 = vmatpush2.xpose.msra.mxu0 0.0
  %1478 = vmatprep.subr.mxu0 0.0
  %1479 = vmatpush2.xpose.msra.mxu0 0.0
  %1480 = vmatprep.subr.mxu0 0.0
  %1481 = vmatpush2.xpose.msra.mxu0 0.0
  %1482 = vmatprep.subr.mxu0 0.0
  %1483 = vmatpush2.xpose.msra.mxu0 0.0
  %1484 = vmatprep.subr.mxu0 0.0
  %1485 = vmatpush2.xpose.msra.mxu0 0.0
  %1486 = vmatprep.subr.mxu0 0.0
  %1487 = vmatpush2.xpose.msra.mxu0 0.0
  %1488 = vmatprep.subr.mxu0 0.0
  %1489 = vmatpush2.xpose.msra.mxu0 0.0
  %1490 = vmatprep.subr.mxu0 0.0
  %1491 = vmatpush2.xpose.msra.mxu0 0.0
  %1492 = vmatprep.subr.mxu0 0.0
  %1493 = vmatpush2.xpose.msra.mxu0 0.0
  %1494 = vmatprep.subr.mxu0 0.0
  %1495 = vmatpush2.xpose.msra.mxu0 0.0
  %1496 = vmatprep.subr.mxu0 0.0
  %1497 = vmatpush2.xpose.msra.mxu0 0.0
  %1498 = vmatprep.mubr.f32.mxu0 0.0
  %1499 = vmatmul.mubr.f32.gmra.mxu0 %v1426
  %v1500 = vpop.f32.mrf.mxu0
  %v1501 = vadd.f32 0.0, %v1500
  %v1502 = vpop.f32.mrf.mxu0
  %1503 = vmatprep.mubr.f32.mxu0 0.0
  %1504 = vmatmul.mubr.f32.gmra.mxu0 %v1428
  %v1505 = vpop.f32.mrf.mxu0
  %v1506 = vadd.f32 0.0, %v1505
  %v1507 = vpop.f32.mrf.mxu0
  %1508 = vdwg.mxu0
  %v1509 = vmul.f32 %v1501, 0.35355338
  %v1510 = vmul.f32 %v1506, 0.35355338
  %v1511 = vadd.f32 %v1509, %v50
  %v1512 = vadd.f32 %v1510, %v51
  %v1513 = vsel %vm294, %v1511, -inf
  %1514 = vmax.xlane.f32.xlu0 %v1513
  %v1515 = vpop.xlane.xlu0 %1514
  %v1516 = vsel %vm294, %v1512, -inf
  %1517 = vmax.xlane.f32.xlu0 %v1516
  %v1518 = vpop.xlane.xlu0 %1517
  %v1519 = vsub.f32 %v1511, %v1515
  %v1520 = vsub.f32 %v1512, %v1518
  %v1521 = vmul.f32 %v1519, 1.442695
  %v1522 = vpow.pop %v1521
  %v1523 = vmul.f32 %v1520, 1.442695
  %v1524 = vpow.pop %v1523
  %v1525 = vsel %vm294, %v1522, 0.0
  %1526 = vadd.xlane.f32.xlu0 %v1525
  %v1527 = vpop.xlane.xlu0 %1526
  %v1528 = vsel %vm294, %v1524, 0.0
  %1529 = vadd.xlane.f32.xlu0 %v1528
  %v1530 = vpop.xlane.xlu0 %1529
  %v1531 = vrcp.pop %v1527
  %v1532 = vmul.f32 %v1522, %v1531
  %v1533 = vrcp.pop %v1530
  %v1534 = vmul.f32 %v1524, %v1533
  %1535 = vrot.lane.b32.xlu0 %v1418, 120
  %v1536 = vpop.permute.xlu0 %1535
  %1537 = vrot.lane.b32.xlu0 %v1419, 120
  %v1538 = vpop.permute.xlu0 %1537
  %1539 = vrot.lane.b32.xlu0 %v1418, 88
  %v1540 = vpop.permute.xlu0 %1539
  %1541 = vrot.lane.b32.xlu0 %v1419, 88
  %v1542 = vpop.permute.xlu0 %1541
  %v1543 = vsel %vm206, %v1536, 0
  %v1545 = vsel %vm206, %v1538, 0
  %v1547 = vsel %vm206, %v1540, 0
  %v1549 = vsel %vm206, %v1542, 0
  %1551 = vmatprep.subr.mxu0 0.0
  %1552 = vmatpush1.xpose.msra.mxu0 0.0
  %1553 = vmatprep.subr.mxu0 0.0
  %1554 = vmatpush1.xpose.msra.mxu0 0.0
  %1555 = vmatprep.subr.mxu0 0.0
  %1556 = vmatpush1.xpose.msra.mxu0 0.0
  %1557 = vmatprep.subr.mxu0 0.0
  %1558 = vmatpush1.xpose.msra.mxu0 0.0
  %1559 = vmatprep.subr.mxu0 0.0
  %1560 = vmatpush1.xpose.msra.mxu0 0.0
  %1561 = vmatprep.subr.mxu0 0.0
  %1562 = vmatpush1.xpose.msra.mxu0 0.0
  %1563 = vmatprep.subr.mxu0 0.0
  %1564 = vmatpush1.xpose.msra.mxu0 0.0
  %1565 = vmatprep.subr.mxu0 0.0
  %1566 = vmatpush1.xpose.msra.mxu0 0.0
  %1567 = vmatprep.subr.mxu0 0.0
  %1568 = vmatpush1.xpose.msra.mxu0 0.0
  %1569 = vmatprep.subr.mxu0 0.0
  %1570 = vmatpush1.xpose.msra.mxu0 0.0
  %1571 = vmatprep.subr.mxu0 0.0
  %1572 = vmatpush1.xpose.msra.mxu0 0.0
  %1573 = vmatprep.subr.mxu0 0.0
  %1574 = vmatpush1.xpose.msra.mxu0 0.0
  %1575 = vmatprep.subr.mxu0 0.0
  %1576 = vmatpush1.xpose.msra.mxu0 0.0
  %1577 = vmatprep.subr.mxu0 0.0
  %1578 = vmatpush1.xpose.msra.mxu0 0.0
  %1579 = vmatprep.subr.mxu0 0.0
  %1580 = vmatpush1.xpose.msra.mxu0 %v1549
  %1581 = vmatprep.subr.mxu0 0.0
  %1582 = vmatpush1.xpose.msra.mxu0 %v1547
  %1583 = vmatprep.subr.mxu0 0.0
  %1584 = vmatpush2.xpose.msra.mxu0 0.0
  %1585 = vmatprep.subr.mxu0 0.0
  %1586 = vmatpush2.xpose.msra.mxu0 0.0
  %1587 = vmatprep.subr.mxu0 0.0
  %1588 = vmatpush2.xpose.msra.mxu0 0.0
  %1589 = vmatprep.subr.mxu0 0.0
  %1590 = vmatpush2.xpose.msra.mxu0 0.0
  %1591 = vmatprep.subr.mxu0 0.0
  %1592 = vmatpush2.xpose.msra.mxu0 0.0
  %1593 = vmatprep.subr.mxu0 0.0
  %1594 = vmatpush2.xpose.msra.mxu0 0.0
  %1595 = vmatprep.subr.mxu0 0.0
  %1596 = vmatpush2.xpose.msra.mxu0 0.0
  %1597 = vmatprep.subr.mxu0 0.0
  %1598 = vmatpush2.xpose.msra.mxu0 0.0
  %1599 = vmatprep.subr.mxu0 0.0
  %1600 = vmatpush2.xpose.msra.mxu0 0.0
  %1601 = vmatprep.subr.mxu0 0.0
  %1602 = vmatpush2.xpose.msra.mxu0 0.0
  %1603 = vmatprep.subr.mxu0 0.0
  %1604 = vmatpush2.xpose.msra.mxu0 0.0
  %1605 = vmatprep.subr.mxu0 0.0
  %1606 = vmatpush2.xpose.msra.mxu0 0.0
  %1607 = vmatprep.subr.mxu0 0.0
  %1608 = vmatpush2.xpose.msra.mxu0 0.0
  %1609 = vmatprep.subr.mxu0 0.0
  %1610 = vmatpush2.xpose.msra.mxu0 0.0
  %1611 = vmatprep.subr.mxu0 0.0
  %1612 = vmatpush2.xpose.msra.mxu0 0.0
  %1613 = vmatprep.subr.mxu0 0.0
  %1614 = vmatpush2.xpose.msra.mxu0 0.0
  %1615 = vmatprep.mubr.f32.mxu0 0.0
  %1616 = vmatmul.mubr.f32.gmra.mxu0 %v1543
  %v1617 = vpop.f32.mrf.mxu0
  %v1618 = vadd.f32 0.0, %v1617
  %v1619 = vpop.f32.mrf.mxu0
  %1620 = vmatprep.mubr.f32.mxu0 0.0
  %1621 = vmatmul.mubr.f32.gmra.mxu0 %v1545
  %v1622 = vpop.f32.mrf.mxu0
  %v1623 = vadd.f32 0.0, %v1622
  %v1624 = vpop.f32.mrf.mxu0
  %1625 = vdwg.mxu0
  %v1626 = vmul.f32 %v1618, 0.35355338
  %v1627 = vmul.f32 %v1623, 0.35355338
  %v1628 = vadd.f32 %v1626, %v50
  %v1629 = vadd.f32 %v1627, %v51
  %v1630 = vsel %vm294, %v1628, -inf
  %1631 = vmax.xlane.f32.xlu0 %v1630
  %v1632 = vpop.xlane.xlu0 %1631
  %v1633 = vsel %vm294, %v1629, -inf
  %1634 = vmax.xlane.f32.xlu0 %v1633
  %v1635 = vpop.xlane.xlu0 %1634
  %v1636 = vsub.f32 %v1628, %v1632
  %v1637 = vsub.f32 %v1629, %v1635
  %v1638 = vmul.f32 %v1636, 1.442695
  %v1639 = vpow.pop %v1638
  %v1640 = vmul.f32 %v1637, 1.442695
  %v1641 = vpow.pop %v1640
  %v1642 = vsel %vm294, %v1639, 0.0
  %1643 = vadd.xlane.f32.xlu0 %v1642
  %v1644 = vpop.xlane.xlu0 %1643
  %v1645 = vsel %vm294, %v1641, 0.0
  %1646 = vadd.xlane.f32.xlu0 %v1645
  %v1647 = vpop.xlane.xlu0 %1646
  %v1648 = vrcp.pop %v1644
  %v1649 = vmul.f32 %v1639, %v1648
  %v1650 = vrcp.pop %v1647
  %v1651 = vmul.f32 %v1641, %v1650
  %1654 = vrot.lane.b32.xlu0 %v1400, 32
  %v1655 = vpop.permute.xlu0 %1654
  %1656 = vrot.lane.b32.xlu0 %v1406, 32
  %v1657 = vpop.permute.xlu0 %1656
  %v1661 = vsel %vm294, %v1649, 0
  %v1664 = vsel %vm294, %v1651, 0
  %1666 = vmatprep.subr.mxu0 0.0
  %1667 = vmatpush1.msra.mxu0 0.0
  %1668 = vmatprep.subr.mxu0 0.0
  %1669 = vmatpush1.msra.mxu0 0.0
  %1670 = vmatprep.subr.mxu0 0.0
  %1671 = vmatpush1.msra.mxu0 0.0
  %1672 = vmatprep.subr.mxu0 0.0
  %1673 = vmatpush1.msra.mxu0 0.0
  %1674 = vmatprep.subr.mxu0 0.0
  %1675 = vmatpush1.msra.mxu0 0.0
  %1676 = vmatprep.subr.mxu0 0.0
  %1677 = vmatpush1.msra.mxu0 0.0
  %1678 = vmatprep.subr.mxu0 0.0
  %1679 = vmatpush1.msra.mxu0 0.0
  %1680 = vmatprep.subr.mxu0 0.0
  %1681 = vmatpush1.msra.mxu0 0.0
  %1682 = vmatprep.subr.mxu0 0.0
  %1683 = vmatpush1.msra.mxu0 0.0
  %1684 = vmatprep.subr.mxu0 0.0
  %1685 = vmatpush1.msra.mxu0 0.0
  %1686 = vmatprep.subr.mxu0 0.0
  %1687 = vmatpush1.msra.mxu0 0.0
  %1688 = vmatprep.subr.mxu0 0.0
  %1689 = vmatpush1.msra.mxu0 0.0
  %1690 = vmatprep.subr.mxu0 0.0
  %1691 = vmatpush1.msra.mxu0 0.0
  %1692 = vmatprep.subr.mxu0 0.0
  %1693 = vmatpush1.msra.mxu0 0.0
  %1694 = vmatprep.subr.mxu0 0.0
  %1695 = vmatpush1.msra.mxu0 %v1657
  %1696 = vmatprep.subr.mxu0 0.0
  %1697 = vmatpush1.msra.mxu0 %v1655
  %1698 = vmatprep.subr.mxu0 0.0
  %1699 = vmatpush2.msra.mxu0 0.0
  %1700 = vmatprep.subr.mxu0 0.0
  %1701 = vmatpush2.msra.mxu0 0.0
  %1702 = vmatprep.subr.mxu0 0.0
  %1703 = vmatpush2.msra.mxu0 0.0
  %1704 = vmatprep.subr.mxu0 0.0
  %1705 = vmatpush2.msra.mxu0 0.0
  %1706 = vmatprep.subr.mxu0 0.0
  %1707 = vmatpush2.msra.mxu0 0.0
  %1708 = vmatprep.subr.mxu0 0.0
  %1709 = vmatpush2.msra.mxu0 0.0
  %1710 = vmatprep.subr.mxu0 0.0
  %1711 = vmatpush2.msra.mxu0 0.0
  %1712 = vmatprep.subr.mxu0 0.0
  %1713 = vmatpush2.msra.mxu0 0.0
  %1714 = vmatprep.subr.mxu0 0.0
  %1715 = vmatpush2.msra.mxu0 0.0
  %1716 = vmatprep.subr.mxu0 0.0
  %1717 = vmatpush2.msra.mxu0 0.0
  %1718 = vmatprep.subr.mxu0 0.0
  %1719 = vmatpush2.msra.mxu0 0.0
  %1720 = vmatprep.subr.mxu0 0.0
  %1721 = vmatpush2.msra.mxu0 0.0
  %1722 = vmatprep.subr.mxu0 0.0
  %1723 = vmatpush2.msra.mxu0 0.0
  %1724 = vmatprep.subr.mxu0 0.0
  %1725 = vmatpush2.msra.mxu0 0.0
  %1726 = vmatprep.subr.mxu0 0.0
  %1727 = vmatpush2.msra.mxu0 0.0
  %1728 = vmatprep.subr.mxu0 0.0
  %1729 = vmatpush2.msra.mxu0 0.0
  %1730 = vmatprep.mubr.f32.mxu0 0.0
  %1731 = vmatmul.mubr.f32.gmra.mxu0 %v1661
  %v1732 = vpop.f32.mrf.mxu0
  %v1733 = vadd.f32 0.0, %v1732
  %v1734 = vpop.f32.mrf.mxu0
  %1735 = vmatprep.mubr.f32.mxu0 0.0
  %1736 = vmatmul.mubr.f32.gmra.mxu0 %v1664
  %v1737 = vpop.f32.mrf.mxu0
  %v1738 = vadd.f32 0.0, %v1737
  %v1739 = vpop.f32.mrf.mxu0
  %1740 = vdwg.mxu0
  %1741 = vrot.lane.b32.xlu0 %v1400, 64
  %v1742 = vpop.permute.xlu0 %1741
  %1743 = vrot.lane.b32.xlu0 %v1406, 64
  %v1744 = vpop.permute.xlu0 %1743
  %v1748 = vsel %vm294, %v1532, 0
  %v1751 = vsel %vm294, %v1534, 0
  %1753 = vmatprep.subr.mxu0 0.0
  %1754 = vmatpush1.msra.mxu0 0.0
  %1755 = vmatprep.subr.mxu0 0.0
  %1756 = vmatpush1.msra.mxu0 0.0
  %1757 = vmatprep.subr.mxu0 0.0
  %1758 = vmatpush1.msra.mxu0 0.0
  %1759 = vmatprep.subr.mxu0 0.0
  %1760 = vmatpush1.msra.mxu0 0.0
  %1761 = vmatprep.subr.mxu0 0.0
  %1762 = vmatpush1.msra.mxu0 0.0
  %1763 = vmatprep.subr.mxu0 0.0
  %1764 = vmatpush1.msra.mxu0 0.0
  %1765 = vmatprep.subr.mxu0 0.0
  %1766 = vmatpush1.msra.mxu0 0.0
  %1767 = vmatprep.subr.mxu0 0.0
  %1768 = vmatpush1.msra.mxu0 0.0
  %1769 = vmatprep.subr.mxu0 0.0
  %1770 = vmatpush1.msra.mxu0 0.0
  %1771 = vmatprep.subr.mxu0 0.0
  %1772 = vmatpush1.msra.mxu0 0.0
  %1773 = vmatprep.subr.mxu0 0.0
  %1774 = vmatpush1.msra.mxu0 0.0
  %1775 = vmatprep.subr.mxu0 0.0
  %1776 = vmatpush1.msra.mxu0 0.0
  %1777 = vmatprep.subr.mxu0 0.0
  %1778 = vmatpush1.msra.mxu0 0.0
  %1779 = vmatprep.subr.mxu0 0.0
  %1780 = vmatpush1.msra.mxu0 0.0
  %1781 = vmatprep.subr.mxu0 0.0
  %1782 = vmatpush1.msra.mxu0 %v1744
  %1783 = vmatprep.subr.mxu0 0.0
  %1784 = vmatpush1.msra.mxu0 %v1742
  %1785 = vmatprep.subr.mxu0 0.0
  %1786 = vmatpush2.msra.mxu0 0.0
  %1787 = vmatprep.subr.mxu0 0.0
  %1788 = vmatpush2.msra.mxu0 0.0
  %1789 = vmatprep.subr.mxu0 0.0
  %1790 = vmatpush2.msra.mxu0 0.0
  %1791 = vmatprep.subr.mxu0 0.0
  %1792 = vmatpush2.msra.mxu0 0.0
  %1793 = vmatprep.subr.mxu0 0.0
  %1794 = vmatpush2.msra.mxu0 0.0
  %1795 = vmatprep.subr.mxu0 0.0
  %1796 = vmatpush2.msra.mxu0 0.0
  %1797 = vmatprep.subr.mxu0 0.0
  %1798 = vmatpush2.msra.mxu0 0.0
  %1799 = vmatprep.subr.mxu0 0.0
  %1800 = vmatpush2.msra.mxu0 0.0
  %1801 = vmatprep.subr.mxu0 0.0
  %1802 = vmatpush2.msra.mxu0 0.0
  %1803 = vmatprep.subr.mxu0 0.0
  %1804 = vmatpush2.msra.mxu0 0.0
  %1805 = vmatprep.subr.mxu0 0.0
  %1806 = vmatpush2.msra.mxu0 0.0
  %1807 = vmatprep.subr.mxu0 0.0
  %1808 = vmatpush2.msra.mxu0 0.0
  %1809 = vmatprep.subr.mxu0 0.0
  %1810 = vmatpush2.msra.mxu0 0.0
  %1811 = vmatprep.subr.mxu0 0.0
  %1812 = vmatpush2.msra.mxu0 0.0
  %1813 = vmatprep.subr.mxu0 0.0
  %1814 = vmatpush2.msra.mxu0 0.0
  %1815 = vmatprep.subr.mxu0 0.0
  %1816 = vmatpush2.msra.mxu0 0.0
  %1817 = vmatprep.mubr.f32.mxu0 0.0
  %1818 = vmatmul.mubr.f32.gmra.mxu0 %v1748
  %v1819 = vpop.f32.mrf.mxu0
  %v1820 = vadd.f32 %v1733, %v1819
  %v1821 = vpop.f32.mrf.mxu0
  %1822 = vmatprep.mubr.f32.mxu0 0.0
  %1823 = vmatmul.mubr.f32.gmra.mxu0 %v1751
  %v1824 = vpop.f32.mrf.mxu0
  %v1825 = vadd.f32 %v1738, %v1824
  %v1826 = vpop.f32.mrf.mxu0
  %1827 = vdwg.mxu0
  %1828 = vrot.lane.b32.xlu0 %v1418, 112
  %v1829 = vpop.permute.xlu0 %1828
  %1830 = vrot.lane.b32.xlu0 %v1419, 112
  %v1831 = vpop.permute.xlu0 %1830
  %1832 = vrot.lane.b32.xlu0 %v1418, 80
  %v1833 = vpop.permute.xlu0 %1832
  %1834 = vrot.lane.b32.xlu0 %v1419, 80
  %v1835 = vpop.permute.xlu0 %1834
  %v1836 = vsel %vm206, %v1829, 0
  %v1838 = vsel %vm206, %v1831, 0
  %v1840 = vsel %vm206, %v1833, 0
  %v1842 = vsel %vm206, %v1835, 0
  %1844 = vmatprep.subr.mxu0 0.0
  %1845 = vmatpush1.xpose.msra.mxu0 0.0
  %1846 = vmatprep.subr.mxu0 0.0
  %1847 = vmatpush1.xpose.msra.mxu0 0.0
  %1848 = vmatprep.subr.mxu0 0.0
  %1849 = vmatpush1.xpose.msra.mxu0 0.0
  %1850 = vmatprep.subr.mxu0 0.0
  %1851 = vmatpush1.xpose.msra.mxu0 0.0
  %1852 = vmatprep.subr.mxu0 0.0
  %1853 = vmatpush1.xpose.msra.mxu0 0.0
  %1854 = vmatprep.subr.mxu0 0.0
  %1855 = vmatpush1.xpose.msra.mxu0 0.0
  %1856 = vmatprep.subr.mxu0 0.0
  %1857 = vmatpush1.xpose.msra.mxu0 0.0
  %1858 = vmatprep.subr.mxu0 0.0
  %1859 = vmatpush1.xpose.msra.mxu0 0.0
  %1860 = vmatprep.subr.mxu0 0.0
  %1861 = vmatpush1.xpose.msra.mxu0 0.0
  %1862 = vmatprep.subr.mxu0 0.0
  %1863 = vmatpush1.xpose.msra.mxu0 0.0
  %1864 = vmatprep.subr.mxu0 0.0
  %1865 = vmatpush1.xpose.msra.mxu0 0.0
  %1866 = vmatprep.subr.mxu0 0.0
  %1867 = vmatpush1.xpose.msra.mxu0 0.0
  %1868 = vmatprep.subr.mxu0 0.0
  %1869 = vmatpush1.xpose.msra.mxu0 0.0
  %1870 = vmatprep.subr.mxu0 0.0
  %1871 = vmatpush1.xpose.msra.mxu0 0.0
  %1872 = vmatprep.subr.mxu0 0.0
  %1873 = vmatpush1.xpose.msra.mxu0 %v1842
  %1874 = vmatprep.subr.mxu0 0.0
  %1875 = vmatpush1.xpose.msra.mxu0 %v1840
  %1876 = vmatprep.subr.mxu0 0.0
  %1877 = vmatpush2.xpose.msra.mxu0 0.0
  %1878 = vmatprep.subr.mxu0 0.0
  %1879 = vmatpush2.xpose.msra.mxu0 0.0
  %1880 = vmatprep.subr.mxu0 0.0
  %1881 = vmatpush2.xpose.msra.mxu0 0.0
  %1882 = vmatprep.subr.mxu0 0.0
  %1883 = vmatpush2.xpose.msra.mxu0 0.0
  %1884 = vmatprep.subr.mxu0 0.0
  %1885 = vmatpush2.xpose.msra.mxu0 0.0
  %1886 = vmatprep.subr.mxu0 0.0
  %1887 = vmatpush2.xpose.msra.mxu0 0.0
  %1888 = vmatprep.subr.mxu0 0.0
  %1889 = vmatpush2.xpose.msra.mxu0 0.0
  %1890 = vmatprep.subr.mxu0 0.0
  %1891 = vmatpush2.xpose.msra.mxu0 0.0
  %1892 = vmatprep.subr.mxu0 0.0
  %1893 = vmatpush2.xpose.msra.mxu0 0.0
  %1894 = vmatprep.subr.mxu0 0.0
  %1895 = vmatpush2.xpose.msra.mxu0 0.0
  %1896 = vmatprep.subr.mxu0 0.0
  %1897 = vmatpush2.xpose.msra.mxu0 0.0
  %1898 = vmatprep.subr.mxu0 0.0
  %1899 = vmatpush2.xpose.msra.mxu0 0.0
  %1900 = vmatprep.subr.mxu0 0.0
  %1901 = vmatpush2.xpose.msra.mxu0 0.0
  %1902 = vmatprep.subr.mxu0 0.0
  %1903 = vmatpush2.xpose.msra.mxu0 0.0
  %1904 = vmatprep.subr.mxu0 0.0
  %1905 = vmatpush2.xpose.msra.mxu0 0.0
  %1906 = vmatprep.subr.mxu0 0.0
  %1907 = vmatpush2.xpose.msra.mxu0 0.0
  %1908 = vmatprep.mubr.f32.mxu0 0.0
  %1909 = vmatmul.mubr.f32.gmra.mxu0 %v1836
  %v1910 = vpop.f32.mrf.mxu0
  %v1911 = vadd.f32 0.0, %v1910
  %v1912 = vpop.f32.mrf.mxu0
  %1913 = vmatprep.mubr.f32.mxu0 0.0
  %1914 = vmatmul.mubr.f32.gmra.mxu0 %v1838
  %v1915 = vpop.f32.mrf.mxu0
  %v1916 = vadd.f32 0.0, %v1915
  %v1917 = vpop.f32.mrf.mxu0
  %1918 = vdwg.mxu0
  %v1919 = vmul.f32 %v1911, 0.35355338
  %v1920 = vmul.f32 %v1916, 0.35355338
  %v1921 = vadd.f32 %v1919, %v50
  %v1922 = vadd.f32 %v1920, %v51
  %v1923 = vsel %vm294, %v1921, -inf
  %1924 = vmax.xlane.f32.xlu0 %v1923
  %v1925 = vpop.xlane.xlu0 %1924
  %v1926 = vsel %vm294, %v1922, -inf
  %1927 = vmax.xlane.f32.xlu0 %v1926
  %v1928 = vpop.xlane.xlu0 %1927
  %v1929 = vsub.f32 %v1921, %v1925
  %v1930 = vsub.f32 %v1922, %v1928
  %v1931 = vmul.f32 %v1929, 1.442695
  %v1932 = vpow.pop %v1931
  %v1933 = vmul.f32 %v1930, 1.442695
  %v1934 = vpow.pop %v1933
  %v1935 = vsel %vm294, %v1932, 0.0
  %1936 = vadd.xlane.f32.xlu0 %v1935
  %v1937 = vpop.xlane.xlu0 %1936
  %v1938 = vsel %vm294, %v1934, 0.0
  %1939 = vadd.xlane.f32.xlu0 %v1938
  %v1940 = vpop.xlane.xlu0 %1939
  %v1941 = vrcp.pop %v1937
  %v1942 = vmul.f32 %v1932, %v1941
  %v1943 = vrcp.pop %v1940
  %v1944 = vmul.f32 %v1934, %v1943
  %v1946 = vsel %vm294, %v1942, 0
  %v1949 = vsel %vm294, %v1944, 0
  %1951 = vmatprep.subr.mxu0 0.0
  %1952 = vmatpush1.msra.mxu0 0.0
  %1953 = vmatprep.subr.mxu0 0.0
  %1954 = vmatpush1.msra.mxu0 0.0
  %1955 = vmatprep.subr.mxu0 0.0
  %1956 = vmatpush1.msra.mxu0 0.0
  %1957 = vmatprep.subr.mxu0 0.0
  %1958 = vmatpush1.msra.mxu0 0.0
  %1959 = vmatprep.subr.mxu0 0.0
  %1960 = vmatpush1.msra.mxu0 0.0
  %1961 = vmatprep.subr.mxu0 0.0
  %1962 = vmatpush1.msra.mxu0 0.0
  %1963 = vmatprep.subr.mxu0 0.0
  %1964 = vmatpush1.msra.mxu0 0.0
  %1965 = vmatprep.subr.mxu0 0.0
  %1966 = vmatpush1.msra.mxu0 0.0
  %1967 = vmatprep.subr.mxu0 0.0
  %1968 = vmatpush1.msra.mxu0 0.0
  %1969 = vmatprep.subr.mxu0 0.0
  %1970 = vmatpush1.msra.mxu0 0.0
  %1971 = vmatprep.subr.mxu0 0.0
  %1972 = vmatpush1.msra.mxu0 0.0
  %1973 = vmatprep.subr.mxu0 0.0
  %1974 = vmatpush1.msra.mxu0 0.0
  %1975 = vmatprep.subr.mxu0 0.0
  %1976 = vmatpush1.msra.mxu0 0.0
  %1977 = vmatprep.subr.mxu0 0.0
  %1978 = vmatpush1.msra.mxu0 0.0
  %1979 = vmatprep.subr.mxu0 0.0
  %1980 = vmatpush1.msra.mxu0 %v1408
  %1981 = vmatprep.subr.mxu0 0.0
  %1982 = vmatpush1.msra.mxu0 %v1402
  %1983 = vmatprep.subr.mxu0 0.0
  %1984 = vmatpush2.msra.mxu0 0.0
  %1985 = vmatprep.subr.mxu0 0.0
  %1986 = vmatpush2.msra.mxu0 0.0
  %1987 = vmatprep.subr.mxu0 0.0
  %1988 = vmatpush2.msra.mxu0 0.0
  %1989 = vmatprep.subr.mxu0 0.0
  %1990 = vmatpush2.msra.mxu0 0.0
  %1991 = vmatprep.subr.mxu0 0.0
  %1992 = vmatpush2.msra.mxu0 0.0
  %1993 = vmatprep.subr.mxu0 0.0
  %1994 = vmatpush2.msra.mxu0 0.0
  %1995 = vmatprep.subr.mxu0 0.0
  %1996 = vmatpush2.msra.mxu0 0.0
  %1997 = vmatprep.subr.mxu0 0.0
  %1998 = vmatpush2.msra.mxu0 0.0
  %1999 = vmatprep.subr.mxu0 0.0
  %2000 = vmatpush2.msra.mxu0 0.0
  %2001 = vmatprep.subr.mxu0 0.0
  %2002 = vmatpush2.msra.mxu0 0.0
  %2003 = vmatprep.subr.mxu0 0.0
  %2004 = vmatpush2.msra.mxu0 0.0
  %2005 = vmatprep.subr.mxu0 0.0
  %2006 = vmatpush2.msra.mxu0 0.0
  %2007 = vmatprep.subr.mxu0 0.0
  %2008 = vmatpush2.msra.mxu0 0.0
  %2009 = vmatprep.subr.mxu0 0.0
  %2010 = vmatpush2.msra.mxu0 0.0
  %2011 = vmatprep.subr.mxu0 0.0
  %2012 = vmatpush2.msra.mxu0 0.0
  %2013 = vmatprep.subr.mxu0 0.0
  %2014 = vmatpush2.msra.mxu0 0.0
  %2015 = vmatprep.mubr.f32.mxu0 0.0
  %2016 = vmatmul.mubr.f32.gmra.mxu0 %v1946
  %v2017 = vpop.f32.mrf.mxu0
  %v2018 = vadd.f32 0.0, %v2017
  %v2019 = vpop.f32.mrf.mxu0
  %2020 = vmatprep.mubr.f32.mxu0 0.0
  %2021 = vmatmul.mubr.f32.gmra.mxu0 %v1949
  %v2022 = vpop.f32.mrf.mxu0
  %v2023 = vadd.f32 0.0, %v2022
  %v2024 = vpop.f32.mrf.mxu0
  %2025 = vdwg.mxu0
  %v2026 = vadd.f32 %v1820, %v2018
  %v2027 = vadd.f32 %v1825, %v2023
  %2028 = vrot.lane.b32.xlu0 %v1418, 104
  %v2029 = vpop.permute.xlu0 %2028
  %2030 = vrot.lane.b32.xlu0 %v1419, 104
  %v2031 = vpop.permute.xlu0 %2030
  %2032 = vrot.lane.b32.xlu0 %v1418, 72
  %v2033 = vpop.permute.xlu0 %2032
  %2034 = vrot.lane.b32.xlu0 %v1419, 72
  %v2035 = vpop.permute.xlu0 %2034
  %v2036 = vsel %vm206, %v2029, 0
  %v2038 = vsel %vm206, %v2031, 0
  %v2040 = vsel %vm206, %v2033, 0
  %v2042 = vsel %vm206, %v2035, 0
  %2044 = vmatprep.subr.mxu0 0.0
  %2045 = vmatpush1.xpose.msra.mxu0 0.0
  %2046 = vmatprep.subr.mxu0 0.0
  %2047 = vmatpush1.xpose.msra.mxu0 0.0
  %2048 = vmatprep.subr.mxu0 0.0
  %2049 = vmatpush1.xpose.msra.mxu0 0.0
  %2050 = vmatprep.subr.mxu0 0.0
  %2051 = vmatpush1.xpose.msra.mxu0 0.0
  %2052 = vmatprep.subr.mxu0 0.0
  %2053 = vmatpush1.xpose.msra.mxu0 0.0
  %2054 = vmatprep.subr.mxu0 0.0
  %2055 = vmatpush1.xpose.msra.mxu0 0.0
  %2056 = vmatprep.subr.mxu0 0.0
  %2057 = vmatpush1.xpose.msra.mxu0 0.0
  %2058 = vmatprep.subr.mxu0 0.0
  %2059 = vmatpush1.xpose.msra.mxu0 0.0
  %2060 = vmatprep.subr.mxu0 0.0
  %2061 = vmatpush1.xpose.msra.mxu0 0.0
  %2062 = vmatprep.subr.mxu0 0.0
  %2063 = vmatpush1.xpose.msra.mxu0 0.0
  %2064 = vmatprep.subr.mxu0 0.0
  %2065 = vmatpush1.xpose.msra.mxu0 0.0
  %2066 = vmatprep.subr.mxu0 0.0
  %2067 = vmatpush1.xpose.msra.mxu0 0.0
  %2068 = vmatprep.subr.mxu0 0.0
  %2069 = vmatpush1.xpose.msra.mxu0 0.0
  %2070 = vmatprep.subr.mxu0 0.0
  %2071 = vmatpush1.xpose.msra.mxu0 0.0
  %2072 = vmatprep.subr.mxu0 0.0
  %2073 = vmatpush1.xpose.msra.mxu0 %v2042
  %2074 = vmatprep.subr.mxu0 0.0
  %2075 = vmatpush1.xpose.msra.mxu0 %v2040
  %2076 = vmatprep.subr.mxu0 0.0
  %2077 = vmatpush2.xpose.msra.mxu0 0.0
  %2078 = vmatprep.subr.mxu0 0.0
  %2079 = vmatpush2.xpose.msra.mxu0 0.0
  %2080 = vmatprep.subr.mxu0 0.0
  %2081 = vmatpush2.xpose.msra.mxu0 0.0
  %2082 = vmatprep.subr.mxu0 0.0
  %2083 = vmatpush2.xpose.msra.mxu0 0.0
  %2084 = vmatprep.subr.mxu0 0.0
  %2085 = vmatpush2.xpose.msra.mxu0 0.0
  %2086 = vmatprep.subr.mxu0 0.0
  %2087 = vmatpush2.xpose.msra.mxu0 0.0
  %2088 = vmatprep.subr.mxu0 0.0
  %2089 = vmatpush2.xpose.msra.mxu0 0.0
  %2090 = vmatprep.subr.mxu0 0.0
  %2091 = vmatpush2.xpose.msra.mxu0 0.0
  %2092 = vmatprep.subr.mxu0 0.0
  %2093 = vmatpush2.xpose.msra.mxu0 0.0
  %2094 = vmatprep.subr.mxu0 0.0
  %2095 = vmatpush2.xpose.msra.mxu0 0.0
  %2096 = vmatprep.subr.mxu0 0.0
  %2097 = vmatpush2.xpose.msra.mxu0 0.0
  %2098 = vmatprep.subr.mxu0 0.0
  %2099 = vmatpush2.xpose.msra.mxu0 0.0
  %2100 = vmatprep.subr.mxu0 0.0
  %2101 = vmatpush2.xpose.msra.mxu0 0.0
  %2102 = vmatprep.subr.mxu0 0.0
  %2103 = vmatpush2.xpose.msra.mxu0 0.0
  %2104 = vmatprep.subr.mxu0 0.0
  %2105 = vmatpush2.xpose.msra.mxu0 0.0
  %2106 = vmatprep.subr.mxu0 0.0
  %2107 = vmatpush2.xpose.msra.mxu0 0.0
  %2108 = vmatprep.mubr.f32.mxu0 0.0
  %2109 = vmatmul.mubr.f32.gmra.mxu0 %v2036
  %v2110 = vpop.f32.mrf.mxu0
  %v2111 = vadd.f32 0.0, %v2110
  %v2112 = vpop.f32.mrf.mxu0
  %2113 = vmatprep.mubr.f32.mxu0 0.0
  %2114 = vmatmul.mubr.f32.gmra.mxu0 %v2038
  %v2115 = vpop.f32.mrf.mxu0
  %v2116 = vadd.f32 0.0, %v2115
  %v2117 = vpop.f32.mrf.mxu0
  %2118 = vdwg.mxu0
  %v2119 = vmul.f32 %v2111, 0.35355338
  %v2120 = vmul.f32 %v2116, 0.35355338
  %v2121 = vadd.f32 %v2119, %v50
  %v2122 = vadd.f32 %v2120, %v51
  %v2123 = vsel %vm294, %v2121, -inf
  %2124 = vmax.xlane.f32.xlu0 %v2123
  %v2125 = vpop.xlane.xlu0 %2124
  %v2126 = vsel %vm294, %v2122, -inf
  %2127 = vmax.xlane.f32.xlu0 %v2126
  %v2128 = vpop.xlane.xlu0 %2127
  %v2129 = vsub.f32 %v2121, %v2125
  %v2130 = vsub.f32 %v2122, %v2128
  %v2131 = vmul.f32 %v2129, 1.442695
  %v2132 = vpow.pop %v2131
  %v2133 = vmul.f32 %v2130, 1.442695
  %v2134 = vpow.pop %v2133
  %v2135 = vsel %vm294, %v2132, 0.0
  %2136 = vadd.xlane.f32.xlu0 %v2135
  %v2137 = vpop.xlane.xlu0 %2136
  %v2138 = vsel %vm294, %v2134, 0.0
  %2139 = vadd.xlane.f32.xlu0 %v2138
  %v2140 = vpop.xlane.xlu0 %2139
  %v2141 = vrcp.pop %v2137
  %v2142 = vmul.f32 %v2132, %v2141
  %v2143 = vrcp.pop %v2140
  %v2144 = vmul.f32 %v2134, %v2143
  %2147 = vrot.lane.b32.xlu0 %v1402, 96
  %v2148 = vpop.permute.xlu0 %2147
  %2149 = vrot.lane.b32.xlu0 %v1408, 96
  %v2150 = vpop.permute.xlu0 %2149
  %v2154 = vsel %vm294, %v2142, 0
  %v2157 = vsel %vm294, %v2144, 0
  %2159 = vmatprep.subr.mxu0 0.0
  %2160 = vmatpush1.msra.mxu0 0.0
  %2161 = vmatprep.subr.mxu0 0.0
  %2162 = vmatpush1.msra.mxu0 0.0
  %2163 = vmatprep.subr.mxu0 0.0
  %2164 = vmatpush1.msra.mxu0 0.0
  %2165 = vmatprep.subr.mxu0 0.0
  %2166 = vmatpush1.msra.mxu0 0.0
  %2167 = vmatprep.subr.mxu0 0.0
  %2168 = vmatpush1.msra.mxu0 0.0
  %2169 = vmatprep.subr.mxu0 0.0
  %2170 = vmatpush1.msra.mxu0 0.0
  %2171 = vmatprep.subr.mxu0 0.0
  %2172 = vmatpush1.msra.mxu0 0.0
  %2173 = vmatprep.subr.mxu0 0.0
  %2174 = vmatpush1.msra.mxu0 0.0
  %2175 = vmatprep.subr.mxu0 0.0
  %2176 = vmatpush1.msra.mxu0 0.0
  %2177 = vmatprep.subr.mxu0 0.0
  %2178 = vmatpush1.msra.mxu0 0.0
  %2179 = vmatprep.subr.mxu0 0.0
  %2180 = vmatpush1.msra.mxu0 0.0
  %2181 = vmatprep.subr.mxu0 0.0
  %2182 = vmatpush1.msra.mxu0 0.0
  %2183 = vmatprep.subr.mxu0 0.0
  %2184 = vmatpush1.msra.mxu0 0.0
  %2185 = vmatprep.subr.mxu0 0.0
  %2186 = vmatpush1.msra.mxu0 0.0
  %2187 = vmatprep.subr.mxu0 0.0
  %2188 = vmatpush1.msra.mxu0 %v2150
  %2189 = vmatprep.subr.mxu0 0.0
  %2190 = vmatpush1.msra.mxu0 %v2148
  %2191 = vmatprep.subr.mxu0 0.0
  %2192 = vmatpush2.msra.mxu0 0.0
  %2193 = vmatprep.subr.mxu0 0.0
  %2194 = vmatpush2.msra.mxu0 0.0
  %2195 = vmatprep.subr.mxu0 0.0
  %2196 = vmatpush2.msra.mxu0 0.0
  %2197 = vmatprep.subr.mxu0 0.0
  %2198 = vmatpush2.msra.mxu0 0.0
  %2199 = vmatprep.subr.mxu0 0.0
  %2200 = vmatpush2.msra.mxu0 0.0
  %2201 = vmatprep.subr.mxu0 0.0
  %2202 = vmatpush2.msra.mxu0 0.0
  %2203 = vmatprep.subr.mxu0 0.0
  %2204 = vmatpush2.msra.mxu0 0.0
  %2205 = vmatprep.subr.mxu0 0.0
  %2206 = vmatpush2.msra.mxu0 0.0
  %2207 = vmatprep.subr.mxu0 0.0
  %2208 = vmatpush2.msra.mxu0 0.0
  %2209 = vmatprep.subr.mxu0 0.0
  %2210 = vmatpush2.msra.mxu0 0.0
  %2211 = vmatprep.subr.mxu0 0.0
  %2212 = vmatpush2.msra.mxu0 0.0
  %2213 = vmatprep.subr.mxu0 0.0
  %2214 = vmatpush2.msra.mxu0 0.0
  %2215 = vmatprep.subr.mxu0 0.0
  %2216 = vmatpush2.msra.mxu0 0.0
  %2217 = vmatprep.subr.mxu0 0.0
  %2218 = vmatpush2.msra.mxu0 0.0
  %2219 = vmatprep.subr.mxu0 0.0
  %2220 = vmatpush2.msra.mxu0 0.0
  %2221 = vmatprep.subr.mxu0 0.0
  %2222 = vmatpush2.msra.mxu0 0.0
  %2223 = vmatprep.mubr.f32.mxu0 0.0
  %2224 = vmatmul.mubr.f32.gmra.mxu0 %v2154
  %v2225 = vpop.f32.mrf.mxu0
  %v2226 = vadd.f32 0.0, %v2225
  %v2227 = vpop.f32.mrf.mxu0
  %2228 = vmatprep.mubr.f32.mxu0 0.0
  %2229 = vmatmul.mubr.f32.gmra.mxu0 %v2157
  %v2230 = vpop.f32.mrf.mxu0
  %v2231 = vadd.f32 0.0, %v2230
  %v2232 = vpop.f32.mrf.mxu0
  %2233 = vdwg.mxu0
  %v2234 = vadd.f32 %v2026, %v2226
  %v2235 = vadd.f32 %v2027, %v2231
  %s2236 = scalar_lea.vmem %s6, 1
  %v2237 = vld [vmem:[%s2236] sm:$0x1]
  %v2239 = vlaneseq
  %v2240 = vshrl.u32 %v2239, 7
  %v2241 = vsub.s32 0, %v2240
  %v2242 = vrot.slane %v2237, %v2241
  %v2244 = vadd.f32 %v2234, %v2242
  %v2245 = vadd.f32 %v2235, %v2242
  %v2246 = vadd.f32 %v2244, %v1316
  %v2247 = vadd.f32 %v2245, %v1317
  %s2248 = scalar_lea.vmem %s7, 1
  %v2249 = vld [vmem:[%s2248] sm:$0x1]
  %s2250 = scalar_lea.vmem %s8, 1
  %v2251 = vld [vmem:[%s2250] sm:$0x1]
  %v2252 = vsel %vm56, %v2246, 0.0
  %2253 = vadd.xlane.f32.xlu0 %v2252
  %v2254 = vpop.xlane.xlu0 %2253
  %v2255 = vsel %vm56, %v2247, 0.0
  %2256 = vadd.xlane.f32.xlu0 %v2255
  %v2257 = vpop.xlane.xlu0 %2256
  %v2258 = vmul.f32 %v2254, %v63
  %v2259 = vmul.f32 %v2257, %v63
  %v2260 = vsub.f32 %v2246, %v2258
  %v2261 = vsub.f32 %v2247, %v2259
  %v2262 = vmul.f32 %v2260, %v2260
  %v2263 = vmul.f32 %v2261, %v2261
  %v2264 = vsel %vm56, %v2262, 0.0
  %2265 = vadd.xlane.f32.xlu0 %v2264
  %v2266 = vpop.xlane.xlu0 %2265
  %v2267 = vsel %vm56, %v2263, 0.0
  %2268 = vadd.xlane.f32.xlu0 %v2267
  %v2269 = vpop.xlane.xlu0 %2268
  %v2270 = vmul.f32 %v2266, %v63
  %v2271 = vmul.f32 %v2269, %v63
  %v2272 = vadd.f32 %v2270, 1e-05
  %v2273 = vadd.f32 %v2271, 1e-05
  %v2274 = vrsqrt.pop %v2272
  %v2275 = vrsqrt.pop %v2273
  %v2276 = vmul.f32 %v2260, %v2274
  %v2277 = vmul.f32 %v2261, %v2275
  %v2279 = vlaneseq
  %v2280 = vshrl.u32 %v2279, 7
  %v2281 = vsub.s32 0, %v2280
  %v2282 = vrot.slane %v2249, %v2281
  %v2284 = vmul.f32 %v2276, %v2282
  %v2285 = vmul.f32 %v2277, %v2282
  %v2287 = vlaneseq
  %v2288 = vshrl.u32 %v2287, 7
  %v2289 = vsub.s32 0, %v2288
  %v2290 = vrot.slane %v2251, %v2289
  %v2292 = vadd.f32 %v2284, %v2290
  %v2293 = vadd.f32 %v2285, %v2290
  %s2294 = scalar_lea.vmem %s9, 32
  %v2295 = vld [vmem:[%s2294] sm:$0xff]
  %v2296 = vld [vmem:[%s2294 + $0x8] sm:$0xff]
  %v2297 = vld [vmem:[%s2294 + $0x10] sm:$0xff]
  %v2298 = vld [vmem:[%s2294 + $0x18] sm:$0xff]
  %s2299 = scalar_lea.vmem %s10, 1
  %v2300 = vld [vmem:[%s2299] sm:$0x1]
  %v2302 = vlaneseq
  %v2303 = vshrl.u32 %v2302, 7
  %v2304 = vsub.s32 0, %v2303
  %v2305 = vrot.slane %v2300, %v2304
  %v2308 = vsel %vm56, %v2292, 0
  %v2311 = vsel %vm56, %v2293, 0
  %2313 = vmatprep.subr.mxu0 0.0
  %2314 = vmatpush1.msra.mxu0 0.0
  %2315 = vmatprep.subr.mxu0 0.0
  %2316 = vmatpush1.msra.mxu0 0.0
  %2317 = vmatprep.subr.mxu0 0.0
  %2318 = vmatpush1.msra.mxu0 0.0
  %2319 = vmatprep.subr.mxu0 0.0
  %2320 = vmatpush1.msra.mxu0 0.0
  %2321 = vmatprep.subr.mxu0 0.0
  %2322 = vmatpush1.msra.mxu0 0.0
  %2323 = vmatprep.subr.mxu0 0.0
  %2324 = vmatpush1.msra.mxu0 0.0
  %2325 = vmatprep.subr.mxu0 0.0
  %2326 = vmatpush1.msra.mxu0 0.0
  %2327 = vmatprep.subr.mxu0 0.0
  %2328 = vmatpush1.msra.mxu0 0.0
  %2329 = vmatprep.subr.mxu0 0.0
  %2330 = vmatpush1.msra.mxu0 0.0
  %2331 = vmatprep.subr.mxu0 0.0
  %2332 = vmatpush1.msra.mxu0 0.0
  %2333 = vmatprep.subr.mxu0 0.0
  %2334 = vmatpush1.msra.mxu0 0.0
  %2335 = vmatprep.subr.mxu0 0.0
  %2336 = vmatpush1.msra.mxu0 0.0
  %2337 = vmatprep.subr.mxu0 0.0
  %2338 = vmatpush1.msra.mxu0 %v2298
  %2339 = vmatprep.subr.mxu0 0.0
  %2340 = vmatpush1.msra.mxu0 %v2297
  %2341 = vmatprep.subr.mxu0 0.0
  %2342 = vmatpush1.msra.mxu0 %v2296
  %2343 = vmatprep.subr.mxu0 0.0
  %2344 = vmatpush1.msra.mxu0 %v2295
  %2345 = vmatprep.subr.mxu0 0.0
  %2346 = vmatpush2.msra.mxu0 0.0
  %2347 = vmatprep.subr.mxu0 0.0
  %2348 = vmatpush2.msra.mxu0 0.0
  %2349 = vmatprep.subr.mxu0 0.0
  %2350 = vmatpush2.msra.mxu0 0.0
  %2351 = vmatprep.subr.mxu0 0.0
  %2352 = vmatpush2.msra.mxu0 0.0
  %2353 = vmatprep.subr.mxu0 0.0
  %2354 = vmatpush2.msra.mxu0 0.0
  %2355 = vmatprep.subr.mxu0 0.0
  %2356 = vmatpush2.msra.mxu0 0.0
  %2357 = vmatprep.subr.mxu0 0.0
  %2358 = vmatpush2.msra.mxu0 0.0
  %2359 = vmatprep.subr.mxu0 0.0
  %2360 = vmatpush2.msra.mxu0 0.0
  %2361 = vmatprep.subr.mxu0 0.0
  %2362 = vmatpush2.msra.mxu0 0.0
  %2363 = vmatprep.subr.mxu0 0.0
  %2364 = vmatpush2.msra.mxu0 0.0
  %2365 = vmatprep.subr.mxu0 0.0
  %2366 = vmatpush2.msra.mxu0 0.0
  %2367 = vmatprep.subr.mxu0 0.0
  %2368 = vmatpush2.msra.mxu0 0.0
  %2369 = vmatprep.subr.mxu0 0.0
  %2370 = vmatpush2.msra.mxu0 0.0
  %2371 = vmatprep.subr.mxu0 0.0
  %2372 = vmatpush2.msra.mxu0 0.0
  %2373 = vmatprep.subr.mxu0 0.0
  %2374 = vmatpush2.msra.mxu0 0.0
  %2375 = vmatprep.subr.mxu0 0.0
  %2376 = vmatpush2.msra.mxu0 0.0
  %2377 = vmatprep.mubr.f32.mxu0 0.0
  %2378 = vmatmul.mubr.f32.gmra.mxu0 %v2308
  %v2379 = vpop.f32.mrf.mxu0
  %v2380 = vadd.f32 %v2305, %v2379
  %v2381 = vpop.f32.mrf.mxu0
  %2382 = vmatprep.mubr.f32.mxu0 0.0
  %2383 = vmatmul.mubr.f32.gmra.mxu0 %v2311
  %v2384 = vpop.f32.mrf.mxu0
  %v2385 = vadd.f32 %v2305, %v2384
  %v2386 = vpop.f32.mrf.mxu0
  %2387 = vdwg.mxu0
  %v2388 = vmul.f32 %v2380, 0.5
  %v2389 = vmul.f32 %v2385, 0.5
  %v2390 = vmul.f32 %v2380, 0.70710677
  %v2391 = vmul.f32 %v2385, 0.70710677
  %v2392 = verf.f32.pop %v2390
  %v2393 = verf.f32.pop %v2391
  %v2394 = vadd.f32 %v2392, 1.0
  %v2395 = vadd.f32 %v2393, 1.0
  %v2396 = vmul.f32 %v2388, %v2394
  %v2397 = vmul.f32 %v2389, %v2395
  %s2398 = scalar_lea.vmem %s11, 64
  %v2399 = vld [vmem:[%s2398] sm:$0xff]
  %v2400 = vld [vmem:[%s2398 + $0x8] sm:$0xff]
  %v2401 = vld [vmem:[%s2398 + $0x10] sm:$0xff]
  %v2402 = vld [vmem:[%s2398 + $0x18] sm:$0xff]
  %v2403 = vld [vmem:[%s2398 + $0x20] sm:$0xff]
  %v2404 = vld [vmem:[%s2398 + $0x28] sm:$0xff]
  %v2405 = vld [vmem:[%s2398 + $0x30] sm:$0xff]
  %v2406 = vld [vmem:[%s2398 + $0x38] sm:$0xff]
  %s2407 = scalar_lea.vmem %s12, 1
  %v2408 = vld [vmem:[%s2407] sm:$0x1]
  %v2410 = vlaneseq
  %v2411 = vshrl.u32 %v2410, 7
  %v2412 = vsub.s32 0, %v2411
  %v2413 = vrot.slane %v2408, %v2412
  %v2416 = vsel %vm1190, %v2396, 0
  %v2419 = vsel %vm1190, %v2397, 0
  %2421 = vmatprep.subr.mxu0 0.0
  %2422 = vmatpush1.msra.mxu0 0.0
  %2423 = vmatprep.subr.mxu0 0.0
  %2424 = vmatpush1.msra.mxu0 0.0
  %2425 = vmatprep.subr.mxu0 0.0
  %2426 = vmatpush1.msra.mxu0 0.0
  %2427 = vmatprep.subr.mxu0 0.0
  %2428 = vmatpush1.msra.mxu0 0.0
  %2429 = vmatprep.subr.mxu0 0.0
  %2430 = vmatpush1.msra.mxu0 0.0
  %2431 = vmatprep.subr.mxu0 0.0
  %2432 = vmatpush1.msra.mxu0 0.0
  %2433 = vmatprep.subr.mxu0 0.0
  %2434 = vmatpush1.msra.mxu0 0.0
  %2435 = vmatprep.subr.mxu0 0.0
  %2436 = vmatpush1.msra.mxu0 0.0
  %2437 = vmatprep.subr.mxu0 0.0
  %2438 = vmatpush1.msra.mxu0 %v2406
  %2439 = vmatprep.subr.mxu0 0.0
  %2440 = vmatpush1.msra.mxu0 %v2405
  %2441 = vmatprep.subr.mxu0 0.0
  %2442 = vmatpush1.msra.mxu0 %v2404
  %2443 = vmatprep.subr.mxu0 0.0
  %2444 = vmatpush1.msra.mxu0 %v2403
  %2445 = vmatprep.subr.mxu0 0.0
  %2446 = vmatpush1.msra.mxu0 %v2402
  %2447 = vmatprep.subr.mxu0 0.0
  %2448 = vmatpush1.msra.mxu0 %v2401
  %2449 = vmatprep.subr.mxu0 0.0
  %2450 = vmatpush1.msra.mxu0 %v2400
  %2451 = vmatprep.subr.mxu0 0.0
  %2452 = vmatpush1.msra.mxu0 %v2399
  %2453 = vmatprep.subr.mxu0 0.0
  %2454 = vmatpush2.msra.mxu0 0.0
  %2455 = vmatprep.subr.mxu0 0.0
  %2456 = vmatpush2.msra.mxu0 0.0
  %2457 = vmatprep.subr.mxu0 0.0
  %2458 = vmatpush2.msra.mxu0 0.0
  %2459 = vmatprep.subr.mxu0 0.0
  %2460 = vmatpush2.msra.mxu0 0.0
  %2461 = vmatprep.subr.mxu0 0.0
  %2462 = vmatpush2.msra.mxu0 0.0
  %2463 = vmatprep.subr.mxu0 0.0
  %2464 = vmatpush2.msra.mxu0 0.0
  %2465 = vmatprep.subr.mxu0 0.0
  %2466 = vmatpush2.msra.mxu0 0.0
  %2467 = vmatprep.subr.mxu0 0.0
  %2468 = vmatpush2.msra.mxu0 0.0
  %2469 = vmatprep.subr.mxu0 0.0
  %2470 = vmatpush2.msra.mxu0 0.0
  %2471 = vmatprep.subr.mxu0 0.0
  %2472 = vmatpush2.msra.mxu0 0.0
  %2473 = vmatprep.subr.mxu0 0.0
  %2474 = vmatpush2.msra.mxu0 0.0
  %2475 = vmatprep.subr.mxu0 0.0
  %2476 = vmatpush2.msra.mxu0 0.0
  %2477 = vmatprep.subr.mxu0 0.0
  %2478 = vmatpush2.msra.mxu0 0.0
  %2479 = vmatprep.subr.mxu0 0.0
  %2480 = vmatpush2.msra.mxu0 0.0
  %2481 = vmatprep.subr.mxu0 0.0
  %2482 = vmatpush2.msra.mxu0 0.0
  %2483 = vmatprep.subr.mxu0 0.0
  %2484 = vmatpush2.msra.mxu0 0.0
  %2485 = vmatprep.mubr.f32.mxu0 0.0
  %2486 = vmatmul.mubr.f32.gmra.mxu0 %v2416
  %v2487 = vpop.f32.mrf.mxu0
  %v2488 = vadd.f32 %v2413, %v2487
  %v2489 = vpop.f32.mrf.mxu0
  %2490 = vmatprep.mubr.f32.mxu0 0.0
  %2491 = vmatmul.mubr.f32.gmra.mxu0 %v2419
  %v2492 = vpop.f32.mrf.mxu0
  %v2493 = vadd.f32 %v2413, %v2492
  %v2494 = vpop.f32.mrf.mxu0
  %2495 = vdwg.mxu0
  %v2496 = vadd.f32 %v2488, %v2292
  %v2497 = vadd.f32 %v2493, %v2293
  %s2498 = scalar_lea.vmem %s13, 1
  %v2499 = vld [vmem:[%s2498] sm:$0x1]
  %s2500 = scalar_lea.vmem %s14, 1
  %v2501 = vld [vmem:[%s2500] sm:$0x1]
  %v2502 = vsel %vm56, %v2496, 0.0
  %2503 = vadd.xlane.f32.xlu0 %v2502
  %v2504 = vpop.xlane.xlu0 %2503
  %v2505 = vsel %vm56, %v2497, 0.0
  %2506 = vadd.xlane.f32.xlu0 %v2505
  %v2507 = vpop.xlane.xlu0 %2506
  %v2508 = vmul.f32 %v2504, %v63
  %v2509 = vmul.f32 %v2507, %v63
  %v2510 = vsub.f32 %v2496, %v2508
  %v2511 = vsub.f32 %v2497, %v2509
  %v2512 = vmul.f32 %v2510, %v2510
  %v2513 = vmul.f32 %v2511, %v2511
  %v2514 = vsel %vm56, %v2512, 0.0
  %2515 = vadd.xlane.f32.xlu0 %v2514
  %v2516 = vpop.xlane.xlu0 %2515
  %v2517 = vsel %vm56, %v2513, 0.0
  %2518 = vadd.xlane.f32.xlu0 %v2517
  %v2519 = vpop.xlane.xlu0 %2518
  %v2520 = vmul.f32 %v2516, %v63
  %v2521 = vmul.f32 %v2519, %v63
  %v2522 = vadd.f32 %v2520, 1e-05
  %v2523 = vadd.f32 %v2521, 1e-05
  %v2524 = vrsqrt.pop %v2522
  %v2525 = vrsqrt.pop %v2523
  %v2526 = vmul.f32 %v2510, %v2524
  %v2527 = vmul.f32 %v2511, %v2525
  %v2529 = vlaneseq
  %v2530 = vshrl.u32 %v2529, 7
  %v2531 = vsub.s32 0, %v2530
  %v2532 = vrot.slane %v2499, %v2531
  %v2534 = vmul.f32 %v2526, %v2532
  %v2535 = vmul.f32 %v2527, %v2532
  %v2537 = vlaneseq
  %v2538 = vshrl.u32 %v2537, 7
  %v2539 = vsub.s32 0, %v2538
  %v2540 = vrot.slane %v2501, %v2539
  %v2542 = vadd.f32 %v2534, %v2540
  %v2543 = vadd.f32 %v2535, %v2540
  %2544 = vst.msk [vmem:[%s15] sm:$0xff] %vm56, %v2542
  %2545 = vst.msk [vmem:[%s15 + $0x8] sm:$0xff] %vm56, %v2543
  // Predicated region
  $region62: #{text_encoder_forward.1} parent=0 // pred_check
    _
  $region63: #{text_encoder_forward.1} parent=0 // pred_check_branch
    %2547 = sbr.rel (0) target = $region65
  $region64: #{text_encoder_forward.1} parent=0 // pred_region
    _
  $region65: #{text_encoder_forward.1} parent=0 // pred_fallthru
    _
  // Predicated region
  $region66: #{text_encoder_forward.1} parent=0 // pred_check
    _
  $region67: #{text_encoder_forward.1} parent=0 // pred_check_branch
    %2549 = sbr.rel (0) target = $region69
  $region68: #{text_encoder_forward.1} parent=0 // pred_region
    _
  $region69: #{text_encoder_forward.1} parent=0 // pred_fallthru
    _

</llo_original>
